<compile_context>
chip_gen: v7x
topology: tpu7x:2x2x1
jax: 0.10.0
libtpu: 0.0.40
codegen_flags: <defaults>
</compile_context>

<pallas_src>
import functools
import math

import numpy as np

import jax
import jax.numpy as jnp
from jax import lax
from jax.experimental import pallas as pl
from jax.experimental.pallas import tpu as pltpu


# ---------------------------------------------------------------------------
# Generic tiled GEMM + fused bias kernel (conv-as-im2col and EqualLinear).
# ---------------------------------------------------------------------------
def _matmul_bias_kernel(x_ref, w_ref, b_ref, o_ref, acc_ref):
    @pl.when(pl.program_id(2) == 0)
    def _():
        acc_ref[...] = jnp.zeros_like(acc_ref)

    acc_ref[...] += jnp.dot(
        x_ref[...], w_ref[...], preferred_element_type=jnp.float32
    )

    @pl.when(pl.program_id(2) == pl.num_programs(2) - 1)
    def _():
        o_ref[...] = (acc_ref[...] + b_ref[...].astype(jnp.float32)).astype(o_ref.dtype)


def _round_up(v, m):
    return (v + m - 1) // m * m


def pallas_matmul_bias(x, w, b, out_dtype=None, tm=256, tn=128, tk=128):
    """out = x @ w + b via an MXU-tiled Pallas kernel; pads M/K/N lane/sublane dense."""
    M, K = x.shape
    K2, N = w.shape
    assert K == K2
    out_dtype = out_dtype or x.dtype

    tm_eff = min(tm, _round_up(M, 8))
    tn_eff = min(tn, _round_up(N, 128))
    tk_eff = min(tk, _round_up(K, 128))
    Mp, Kp, Np = _round_up(M, tm_eff), _round_up(K, tk_eff), _round_up(N, tn_eff)

    xp = jnp.pad(x, ((0, Mp - M), (0, Kp - K)))
    wp = jnp.pad(w, ((0, Kp - K), (0, Np - N)))
    bp = jnp.pad(b.reshape(1, -1), ((0, 0), (0, Np - N)))

    out = pl.pallas_call(
        _matmul_bias_kernel,
        out_shape=jax.ShapeDtypeStruct((Mp, Np), out_dtype),
        grid_spec=pltpu.PrefetchScalarGridSpec(
            num_scalar_prefetch=0,
            grid=(Mp // tm_eff, Np // tn_eff, Kp // tk_eff),
            in_specs=[
                pl.BlockSpec((tm_eff, tk_eff), lambda i, j, k: (i, k)),
                pl.BlockSpec((tk_eff, tn_eff), lambda i, j, k: (k, j)),
                pl.BlockSpec((1, tn_eff), lambda i, j, k: (0, j)),
            ],
            out_specs=pl.BlockSpec((tm_eff, tn_eff), lambda i, j, k: (i, j)),
            scratch_shapes=[pltpu.VMEM((tm_eff, tn_eff), jnp.float32)],
        ),
        compiler_params=pltpu.CompilerParams(
            dimension_semantics=("parallel", "parallel", "arbitrary"),
            vmem_limit_bytes=32 * 1024 * 1024,
        ),
    )(xp, wp, bp)
    return out[:M, :N]


# ---------------------------------------------------------------------------
# EqualConv3d (stride=1) as im2col + GEMM.
# ---------------------------------------------------------------------------
def equal_conv3d_ndhwc(x_ndhwc, weight_oidhw, bias, padding=1):
    N, D, H, W, Cin = x_ndhwc.shape
    Cout, Cin_w, kD, kH, kW = weight_oidhw.shape
    assert Cin == Cin_w
    # TODO(synk): only stride=1 / symmetric padding implemented (what StyledConvBlock uses).
    scale = math.sqrt(2.0 / (Cin * kD * kH * kW))
    Do = D + 2 * padding - kD + 1
    Ho = H + 2 * padding - kH + 1
    Wo = W + 2 * padding - kW + 1

    xp = jnp.pad(
        x_ndhwc,
        ((0, 0), (padding, padding), (padding, padding), (padding, padding), (0, 0)),
    )
    # im2col glue: the overlapping-window gather has no rectangular BlockSpec form,
    # so all taps are folded into the GEMM contraction dimension K = kD*kH*kW*Cin.
    taps = []
    for kd in range(kD):
        for kh in range(kH):
            for kw in range(kW):
                taps.append(xp[:, kd:kd + Do, kh:kh + Ho, kw:kw + Wo, :])
    patches = jnp.stack(taps, axis=-2)                          # (N,Do,Ho,Wo,T,Cin)
    lhs = patches.reshape(N * Do * Ho * Wo, kD * kH * kW * Cin)
    # Equal-LR scale folded into the weight once (not per tap, not per grid step).
    rhs = jnp.transpose(weight_oidhw, (2, 3, 4, 1, 0)).reshape(
        kD * kH * kW * Cin, Cout) * scale
    out2d = pallas_matmul_bias(lhs, rhs, bias, out_dtype=x_ndhwc.dtype)
    return out2d.reshape(N, Do, Ho, Wo, Cout)


# ---------------------------------------------------------------------------
# Fused NoiseInjection + LeakyReLU + InstanceNorm3d + AdaIN kernel.
# ---------------------------------------------------------------------------
def _noise_lrelu_adain_kernel(y_ref, nz_ref, nw_ref, g_ref, bt_ref, o_ref, *,
                              neg_slope, eps):
    y = y_ref[0].astype(jnp.float32)             # (S, C)
    nz = nz_ref[0].astype(jnp.float32)           # (S, 1)
    nw = nw_ref[0].astype(jnp.float32)           # (1, C) equal-lr-scaled noise weight
    x = y + nz * nw                              # NoiseInjection
    x = jnp.where(x >= 0, x, neg_slope * x)      # LeakyReLU(0.2)
    mean = jnp.mean(x, axis=0, keepdims=True)    # per-channel over spatial
    cen = x - mean
    var = jnp.mean(cen * cen, axis=0, keepdims=True)
    xn = cen * lax.rsqrt(var + eps)              # InstanceNorm3d (no affine)
    out = g_ref[0].astype(jnp.float32) * xn + bt_ref[0].astype(jnp.float32)
    o_ref[0] = out.astype(o_ref.dtype)


def pallas_noise_lrelu_adain(y_ndhwc, noise_ndhw1, noise_w_eff, gamma, beta,
                             neg_slope=0.2, eps=1e-5):
    N, D, H, W, C = y_ndhwc.shape
    S = D * H * W
    y2 = y_ndhwc.reshape(N, S, C)
    nz2 = noise_ndhw1.reshape(N, S, 1)
    nw = noise_w_eff.reshape(1, 1, C)
    g = gamma.reshape(N, 1, C)
    bt = beta.reshape(N, 1, C)
    # TODO(synk): for very large D*H*W*C, tile the instance-norm reduction (two-pass)
    # instead of one full-volume block per batch element.
    kernel = functools.partial(_noise_lrelu_adain_kernel, neg_slope=neg_slope, eps=eps)
    out = pl.pallas_call(
        kernel,
        out_shape=jax.ShapeDtypeStruct((N, S, C), y_ndhwc.dtype),
        grid_spec=pltpu.PrefetchScalarGridSpec(
            num_scalar_prefetch=0,
            grid=(N,),
            in_specs=[
                pl.BlockSpec((1, S, C), lambda n: (n, 0, 0)),
                pl.BlockSpec((1, S, 1), lambda n: (n, 0, 0)),
                pl.BlockSpec((1, 1, C), lambda n: (0, 0, 0)),
                pl.BlockSpec((1, 1, C), lambda n: (n, 0, 0)),
                pl.BlockSpec((1, 1, C), lambda n: (n, 0, 0)),
            ],
            out_specs=pl.BlockSpec((1, S, C), lambda n: (n, 0, 0)),
        ),
        compiler_params=pltpu.CompilerParams(dimension_semantics=("parallel",)),
    )(y2, nz2, nw, g, bt)
    return out.reshape(N, D, H, W, C)


# ---------------------------------------------------------------------------
# StyledConvBlock forward.
# ---------------------------------------------------------------------------
def adain_style(style, lin_w, lin_b):
    """EqualLinear(style) -> (gamma, beta), each (B, C)."""
    scale = math.sqrt(2.0 / lin_w.shape[1])
    out = pallas_matmul_bias(style, (lin_w * scale).T, lin_b, out_dtype=style.dtype)
    C = lin_w.shape[0] // 2
    return out[:, :C], out[:, C:]


def styled_conv_block_forward(x_ncdhw, style, noise_ncdhw, params):
    """StyledConvBlock forward (initial=False, upsample=False path)."""
    x = jnp.transpose(x_ncdhw, (0, 2, 3, 4, 1))        # NDHWC (channels -> lanes)
    nz = jnp.transpose(noise_ncdhw, (0, 2, 3, 4, 1))   # (N, D, H, W, 1)

    def half(h, conv_w, conv_b, noise_w, ad_w, ad_b):
        h = equal_conv3d_ndhwc(h, conv_w, conv_b, padding=1)
        C = conv_w.shape[0]
        nw_eff = noise_w.reshape(-1) * math.sqrt(2.0 / C)   # equal_lr(NoiseInjection)
        gamma, beta = adain_style(style, ad_w, ad_b)
        return pallas_noise_lrelu_adain(h, nz, nw_eff, gamma, beta)

    h = half(x, params["conv1_w"], params["conv1_b"], params["noise1_w"],
             params["adain1_w"], params["adain1_b"])
    h = half(h, params["conv2_w"], params["conv2_b"], params["noise2_w"],
             params["adain2_w"], params["adain2_b"])
    return jnp.transpose(h, (0, 4, 1, 2, 3))            # back to NCDHW


# ---------------------------------------------------------------------------
# Pure-JAX reference (mirrors the PyTorch module).
# ---------------------------------------------------------------------------
def reference_styled_conv_block(x, style, noise, params, eps=1e-5):
    P = lax.Precision.HIGHEST

    def eq_conv(h, w, b):
        Cout, Cin, kD, kH, kW = w.shape
        s = math.sqrt(2.0 / (Cin * kD * kH * kW))
        out = lax.conv_general_dilated(
            h, w * s, window_strides=(1, 1, 1), padding=[(1, 1)] * 3,
            dimension_numbers=("NCDHW", "OIDHW", "NCDHW"), precision=P)
        return out + b.reshape(1, -1, 1, 1, 1)

    def half(h, conv_w, conv_b, noise_w, ad_w, ad_b):
        h = eq_conv(h, conv_w, conv_b)
        C = conv_w.shape[0]
        h = h + (noise_w.reshape(1, C, 1, 1, 1) * math.sqrt(2.0 / C)) * noise
        h = jnp.where(h >= 0, h, 0.2 * h)
        st = jnp.dot(style, (ad_w * math.sqrt(2.0 / ad_w.shape[1])).T, precision=P) + ad_b
        gamma = st[:, :C].reshape(-1, C, 1, 1, 1)
        beta = st[:, C:].reshape(-1, C, 1, 1, 1)
        mean = h.mean(axis=(2, 3, 4), keepdims=True)
        var = ((h - mean) ** 2).mean(axis=(2, 3, 4), keepdims=True)
        return gamma * ((h - mean) / jnp.sqrt(var + eps)) + beta

    h = half(x, params["conv1_w"], params["conv1_b"], params["noise1_w"],
             params["adain1_w"], params["adain1_b"])
    h = half(h, params["conv2_w"], params["conv2_b"], params["noise2_w"],
             params["adain2_w"], params["adain2_b"])
    return h


if __name__ == "__main__":
    N, in_ch, out_ch, style_dim = 2, 4, 8, 64
    D = H = W = 8
    f32 = jnp.float32

    keys = jax.random.split(jax.random.PRNGKey(0), 9)
    params = {
        "conv1_w": jax.random.normal(keys[0], (out_ch, in_ch, 3, 3, 3), f32),
        "conv1_b": jnp.zeros((out_ch,), f32),
        "noise1_w": 0.1 * jax.random.normal(keys[1], (out_ch,), f32),
        "adain1_w": jax.random.normal(keys[2], (2 * out_ch, style_dim), f32),
        "adain1_b": jnp.concatenate([jnp.ones((out_ch,), f32), jnp.zeros((out_ch,), f32)]),
        "conv2_w": jax.random.normal(keys[3], (out_ch, out_ch, 3, 3, 3), f32),
        "conv2_b": jnp.zeros((out_ch,), f32),
        "noise2_w": 0.1 * jax.random.normal(keys[4], (out_ch,), f32),
        "adain2_w": jax.random.normal(keys[5], (2 * out_ch, style_dim), f32),
        "adain2_b": jnp.concatenate([jnp.ones((out_ch,), f32), jnp.zeros((out_ch,), f32)]),
    }
    x = jax.random.normal(keys[6], (N, in_ch, D, H, W), f32)
    style = jax.random.normal(keys[7], (N, style_dim), f32)
    noise = jax.random.normal(keys[8], (N, 1, D, H, W), f32)

    out = jax.jit(styled_conv_block_forward)(x, style, noise, params)
    out = jax.block_until_ready(out)

    ref = jax.block_until_ready(
        jax.jit(reference_styled_conv_block)(x, style, noise, params))
    np.testing.assert_allclose(np.asarray(out), np.asarray(ref), rtol=5e-3, atol=5e-3)

    print("KERNEL_OK")
</pallas_src>

<mosaic_0001>
module attributes {stable_mosaic.version = 11 : i64} {
  func.func @_matmul_bias_kernel(%arg0: i32, %arg1: i32, %arg2: i32, %arg3: memref<256x128xf32, #tpu.memory_space<vmem>>, %arg4: memref<128x128xf32, #tpu.memory_space<vmem>>, %arg5: memref<1x128xf32, #tpu.memory_space<vmem>>, %arg6: memref<256x128xf32, #tpu.memory_space<vmem>>, %arg7: memref<256x128xf32, #tpu.memory_space<vmem>>) attributes {dimension_semantics = [#tpu.dimension_semantics<parallel>, #tpu.dimension_semantics<parallel>, #tpu.dimension_semantics<arbitrary>], iteration_bounds = array<i64: 4, 1, 1>, scalar_prefetch = 0 : i64, scratch_operands = 1 : i64, tpu.core_type = #tpu.core_type<tc>, window_params = [{transform_indices = @transform_0, window_bounds = array<i64: 256, 128>}, {transform_indices = @transform_1, window_bounds = array<i64: 128, 128>}, {transform_indices = @transform_2, window_bounds = array<i64: 1, 128>}, {transform_indices = @transform_3, window_bounds = array<i64: 256, 128>}]} {
    %c0_i32 = arith.constant 0 : i32
    %0 = arith.cmpi eq, %arg2, %c0_i32 : i32
    %1 = arith.extui %0 : i1 to i32
    %c0_i32_0 = arith.constant 0 : i32
    %2 = arith.cmpi ne, %1, %c0_i32_0 : i32
    scf.if %2 {
      %cst_10 = arith.constant 0.000000e+00 : f32
      %12 = vector.broadcast %cst_10 : f32 to vector<256x128xf32>
      %c0_11 = arith.constant 0 : index
      %c0_12 = arith.constant 0 : index
      %13 = vector.load %arg7[%c0_11, %c0_12] : memref<256x128xf32, #tpu.memory_space<vmem>>, vector<256x128xf32>
      tpu.vector_store %arg7[%c0_11, %c0_12], %12 {strides = array<i32>} : memref<256x128xf32, #tpu.memory_space<vmem>>, vector<256x128xf32>,
    } else {
    }
    %c0 = arith.constant 0 : index
    %c0_1 = arith.constant 0 : index
    %3 = vector.load %arg7[%c0, %c0_1] : memref<256x128xf32, #tpu.memory_space<vmem>>, vector<256x128xf32>
    %c0_2 = arith.constant 0 : index
    %c0_3 = arith.constant 0 : index
    %4 = vector.load %arg3[%c0_2, %c0_3] : memref<256x128xf32, #tpu.memory_space<vmem>>, vector<256x128xf32>
    %c0_4 = arith.constant 0 : index
    %c0_5 = arith.constant 0 : index
    %5 = vector.load %arg4[%c0_4, %c0_5] : memref<128x128xf32, #tpu.memory_space<vmem>>, vector<128x128xf32>
    %cst = arith.constant dense<0.000000e+00> : vector<256x128xf32>
    %6 = tpu.matmul %4, %5, %cst {dimension_numbers = #tpu.dot_dimension_numbers<[1], [0], [0], [1], [0, 0, 1, 1], [], []>} : vector<256x128xf32>, vector<128x128xf32>, vector<256x128xf32> -> vector<256x128xf32>
    %7 = arith.addf %3, %6 : vector<256x128xf32>
    %c0_6 = arith.constant 0 : index
    %c0_7 = arith.constant 0 : index
    %8 = vector.load %arg7[%c0_6, %c0_7] : memref<256x128xf32, #tpu.memory_space<vmem>>, vector<256x128xf32>
    tpu.vector_store %arg7[%c0_6, %c0_7], %7 {strides = array<i32>} : memref<256x128xf32, #tpu.memory_space<vmem>>, vector<256x128xf32>,
    %c0_i32_8 = arith.constant 0 : i32
    %9 = arith.cmpi eq, %arg2, %c0_i32_8 : i32
    %10 = arith.extui %9 : i1 to i32
    %c0_i32_9 = arith.constant 0 : i32
    %11 = arith.cmpi ne, %10, %c0_i32_9 : i32
    scf.if %11 {
      %c0_10 = arith.constant 0 : index
      %c0_11 = arith.constant 0 : index
      %12 = vector.load %arg7[%c0_10, %c0_11] : memref<256x128xf32, #tpu.memory_space<vmem>>, vector<256x128xf32>
      %c0_12 = arith.constant 0 : index
      %c0_13 = arith.constant 0 : index
      %13 = vector.load %arg5[%c0_12, %c0_13] : memref<1x128xf32, #tpu.memory_space<vmem>>, vector<1x128xf32>
      %14 = vector.broadcast %13 : vector<1x128xf32> to vector<256x128xf32>
      %15 = arith.addf %12, %14 : vector<256x128xf32>
      %c0_14 = arith.constant 0 : index
      %c0_15 = arith.constant 0 : index
      %16 = vector.load %arg6[%c0_14, %c0_15] : memref<256x128xf32, #tpu.memory_space<vmem>>, vector<256x128xf32>
      tpu.vector_store %arg6[%c0_14, %c0_15], %15 {strides = array<i32>} : memref<256x128xf32, #tpu.memory_space<vmem>>, vector<256x128xf32>,
    } else {
    }
    return
  }
  func.func @transform_0(%arg0: i32, %arg1: i32, %arg2: i32) -> (i32, i32) {
    %c0_i32 = arith.constant 0 : i32
    return %arg0, %arg2 : i32, i32
  }
  func.func @transform_1(%arg0: i32, %arg1: i32, %arg2: i32) -> (i32, i32) {
    %c0_i32 = arith.constant 0 : i32
    return %arg2, %arg1 : i32, i32
  }
  func.func @transform_2(%arg0: i32, %arg1: i32, %arg2: i32) -> (i32, i32) {
    %c0_i32 = arith.constant 0 : i32
    %c0_i32_0 = arith.constant 0 : i32
    return %c0_i32, %arg1 : i32, i32
  }
  func.func @transform_3(%arg0: i32, %arg1: i32, %arg2: i32) -> (i32, i32) {
    %c0_i32 = arith.constant 0 : i32
    return %arg0, %arg1 : i32, i32
  }
}

module attributes {stable_mosaic.version = 11 : i64} {
  func.func @_matmul_bias_kernel(%arg0: i32, %arg1: i32, %arg2: i32, %arg3: memref<8x128xf32, #tpu.memory_space<vmem>>, %arg4: memref<128x128xf32, #tpu.memory_space<vmem>>, %arg5: memref<1x128xf32, #tpu.memory_space<vmem>>, %arg6: memref<8x128xf32, #tpu.memory_space<vmem>>, %arg7: memref<8x128xf32, #tpu.memory_space<vmem>>) attributes {dimension_semantics = [#tpu.dimension_semantics<parallel>, #tpu.dimension_semantics<parallel>, #tpu.dimension_semantics<arbitrary>], iteration_bounds = array<i64: 1, 1, 1>, scalar_prefetch = 0 : i64, scratch_operands = 1 : i64, tpu.core_type = #tpu.core_type<tc>, window_params = [{transform_indices = @transform_0, window_bounds = array<i64: 8, 128>}, {transform_indices = @transform_1, window_bounds = array<i64: 128, 128>}, {transform_indices = @transform_2, window_bounds = array<i64: 1, 128>}, {transform_indices = @transform_3, window_bounds = array<i64: 8, 128>}]} {
    %c0_i32 = arith.constant 0 : i32
    %0 = arith.cmpi eq, %arg2, %c0_i32 : i32
    %1 = arith.extui %0 : i1 to i32
    %c0_i32_0 = arith.constant 0 : i32
    %2 = arith.cmpi ne, %1, %c0_i32_0 : i32
    scf.if %2 {
      %cst_10 = arith.constant 0.000000e+00 : f32
      %12 = vector.broadcast %cst_10 : f32 to vector<8x128xf32>
      %c0_11 = arith.constant 0 : index
      %c0_12 = arith.constant 0 : index
      %13 = vector.load %arg7[%c0_11, %c0_12] : memref<8x128xf32, #tpu.memory_space<vmem>>, vector<8x128xf32>
      tpu.vector_store %arg7[%c0_11, %c0_12], %12 {strides = array<i32>} : memref<8x128xf32, #tpu.memory_space<vmem>>, vector<8x128xf32>,
    } else {
    }
    %c0 = arith.constant 0 : index
    %c0_1 = arith.constant 0 : index
    %3 = vector.load %arg7[%c0, %c0_1] : memref<8x128xf32, #tpu.memory_space<vmem>>, vector<8x128xf32>
    %c0_2 = arith.constant 0 : index
    %c0_3 = arith.constant 0 : index
    %4 = vector.load %arg3[%c0_2, %c0_3] : memref<8x128xf32, #tpu.memory_space<vmem>>, vector<8x128xf32>
    %c0_4 = arith.constant 0 : index
    %c0_5 = arith.constant 0 : index
    %5 = vector.load %arg4[%c0_4, %c0_5] : memref<128x128xf32, #tpu.memory_space<vmem>>, vector<128x128xf32>
    %cst = arith.constant dense<0.000000e+00> : vector<8x128xf32>
    %6 = tpu.matmul %4, %5, %cst {dimension_numbers = #tpu.dot_dimension_numbers<[1], [0], [0], [1], [0, 0, 1, 1], [], []>} : vector<8x128xf32>, vector<128x128xf32>, vector<8x128xf32> -> vector<8x128xf32>
    %7 = arith.addf %3, %6 : vector<8x128xf32>
    %c0_6 = arith.constant 0 : index
    %c0_7 = arith.constant 0 : index
    %8 = vector.load %arg7[%c0_6, %c0_7] : memref<8x128xf32, #tpu.memory_space<vmem>>, vector<8x128xf32>
    tpu.vector_store %arg7[%c0_6, %c0_7], %7 {strides = array<i32>} : memref<8x128xf32, #tpu.memory_space<vmem>>, vector<8x128xf32>,
    %c0_i32_8 = arith.constant 0 : i32
    %9 = arith.cmpi eq, %arg2, %c0_i32_8 : i32
    %10 = arith.extui %9 : i1 to i32
    %c0_i32_9 = arith.constant 0 : i32
    %11 = arith.cmpi ne, %10, %c0_i32_9 : i32
    scf.if %11 {
      %c0_10 = arith.constant 0 : index
      %c0_11 = arith.constant 0 : index
      %12 = vector.load %arg7[%c0_10, %c0_11] : memref<8x128xf32, #tpu.memory_space<vmem>>, vector<8x128xf32>
      %c0_12 = arith.constant 0 : index
      %c0_13 = arith.constant 0 : index
      %13 = vector.load %arg5[%c0_12, %c0_13] : memref<1x128xf32, #tpu.memory_space<vmem>>, vector<1x128xf32>
      %14 = vector.broadcast %13 : vector<1x128xf32> to vector<8x128xf32>
      %15 = arith.addf %12, %14 : vector<8x128xf32>
      %c0_14 = arith.constant 0 : index
      %c0_15 = arith.constant 0 : index
      %16 = vector.load %arg6[%c0_14, %c0_15] : memref<8x128xf32, #tpu.memory_space<vmem>>, vector<8x128xf32>
      tpu.vector_store %arg6[%c0_14, %c0_15], %15 {strides = array<i32>} : memref<8x128xf32, #tpu.memory_space<vmem>>, vector<8x128xf32>,
    } else {
    }
    return
  }
  func.func @transform_0(%arg0: i32, %arg1: i32, %arg2: i32) -> (i32, i32) {
    %c0_i32 = arith.constant 0 : i32
    return %arg0, %arg2 : i32, i32
  }
  func.func @transform_1(%arg0: i32, %arg1: i32, %arg2: i32) -> (i32, i32) {
    %c0_i32 = arith.constant 0 : i32
    return %arg2, %arg1 : i32, i32
  }
  func.func @transform_2(%arg0: i32, %arg1: i32, %arg2: i32) -> (i32, i32) {
    %c0_i32 = arith.constant 0 : i32
    %c0_i32_0 = arith.constant 0 : i32
    return %c0_i32, %arg1 : i32, i32
  }
  func.func @transform_3(%arg0: i32, %arg1: i32, %arg2: i32) -> (i32, i32) {
    %c0_i32 = arith.constant 0 : i32
    return %arg0, %arg1 : i32, i32
  }
}

module attributes {stable_mosaic.version = 11 : i64} {
  func.func @_noise_lrelu_adain_kernel(%arg0: i32, %arg1: memref<1x512x8xf32, #tpu.memory_space<vmem>>, %arg2: memref<1x512x1xf32, #tpu.memory_space<vmem>>, %arg3: memref<1x1x8xf32, #tpu.memory_space<vmem>>, %arg4: memref<1x1x8xf32, #tpu.memory_space<vmem>>, %arg5: memref<1x1x8xf32, #tpu.memory_space<vmem>>, %arg6: memref<1x512x8xf32, #tpu.memory_space<vmem>>) attributes {dimension_semantics = [#tpu.dimension_semantics<parallel>], iteration_bounds = array<i64: 2>, scalar_prefetch = 0 : i64, scratch_operands = 0 : i64, tpu.core_type = #tpu.core_type<tc>, window_params = [{transform_indices = @transform_0, window_bounds = array<i64: 1, 512, 8>}, {transform_indices = @transform_1, window_bounds = array<i64: 1, 512, 1>}, {pipeline_mode = #tpu.pipeline_mode<synchronous>, transform_indices = @transform_2, window_bounds = array<i64: 1, 1, 8>}, {transform_indices = @transform_3, window_bounds = array<i64: 1, 1, 8>}, {transform_indices = @transform_4, window_bounds = array<i64: 1, 1, 8>}, {transform_indices = @transform_5, window_bounds = array<i64: 1, 512, 8>}]} {
    %c0 = arith.constant 0 : index
    %c0_0 = arith.constant 0 : index
    %c0_1 = arith.constant 0 : index
    %0 = vector.load %arg1[%c0, %c0_0, %c0_1] : memref<1x512x8xf32, #tpu.memory_space<vmem>>, vector<1x512x8xf32>
    %1 = vector.shape_cast %0 : vector<1x512x8xf32> to vector<512x8xf32>
    %c0_2 = arith.constant 0 : index
    %c0_3 = arith.constant 0 : index
    %c0_4 = arith.constant 0 : index
    %2 = vector.load %arg2[%c0_2, %c0_3, %c0_4] : memref<1x512x1xf32, #tpu.memory_space<vmem>>, vector<1x512x1xf32>
    %3 = vector.shape_cast %2 : vector<1x512x1xf32> to vector<512x1xf32>
    %c0_5 = arith.constant 0 : index
    %c0_6 = arith.constant 0 : index
    %c0_7 = arith.constant 0 : index
    %4 = vector.load %arg3[%c0_5, %c0_6, %c0_7] : memref<1x1x8xf32, #tpu.memory_space<vmem>>, vector<1x1x8xf32>
    %5 = vector.shape_cast %4 : vector<1x1x8xf32> to vector<1x8xf32>
    %6 = vector.broadcast %3 : vector<512x1xf32> to vector<512x8xf32>
    %7 = vector.broadcast %5 : vector<1x8xf32> to vector<512x8xf32>
    %8 = arith.mulf %6, %7 : vector<512x8xf32>
    %9 = arith.addf %1, %8 : vector<512x8xf32>
    %cst = arith.constant 0.000000e+00 : f32
    %10 = vector.broadcast %cst : f32 to vector<512x8xf32>
    %11 = arith.cmpf oge, %9, %10 : vector<512x8xf32>
    %cst_8 = arith.constant 2.000000e-01 : f32
    %12 = vector.broadcast %cst_8 : f32 to vector<512x8xf32>
    %13 = arith.mulf %12, %9 : vector<512x8xf32>
    %14 = arith.select %11, %9, %13 : vector<512x8xi1>, vector<512x8xf32>
    %cst_9 = arith.constant dense<0.000000e+00> : vector<8xf32>
    %15 = vector.multi_reduction <add>, %14, %cst_9 [0] : vector<512x8xf32> to vector<8xf32>
    %16 = vector.shape_cast %15 : vector<8xf32> to vector<1x8xf32>
    %cst_10 = arith.constant 5.120000e+02 : f32
    %17 = vector.broadcast %cst_10 : f32 to vector<1x8xf32>
    %18 = arith.divf %16, %17 : vector<1x8xf32>
    %19 = vector.broadcast %18 : vector<1x8xf32> to vector<512x8xf32>
    %20 = arith.subf %14, %19 : vector<512x8xf32>
    %21 = arith.mulf %20, %20 : vector<512x8xf32>
    %cst_11 = arith.constant dense<0.000000e+00> : vector<8xf32>
    %22 = vector.multi_reduction <add>, %21, %cst_11 [0] : vector<512x8xf32> to vector<8xf32>
    %23 = vector.shape_cast %22 : vector<8xf32> to vector<1x8xf32>
    %cst_12 = arith.constant 5.120000e+02 : f32
    %24 = vector.broadcast %cst_12 : f32 to vector<1x8xf32>
    %25 = arith.divf %23, %24 : vector<1x8xf32>
    %cst_13 = arith.constant 9.99999974E-6 : f32
    %26 = vector.broadcast %cst_13 : f32 to vector<1x8xf32>
    %27 = arith.addf %25, %26 : vector<1x8xf32>
    %28 = math.rsqrt %27 : vector<1x8xf32>
    %29 = vector.broadcast %28 : vector<1x8xf32> to vector<512x8xf32>
    %30 = arith.mulf %20, %29 : vector<512x8xf32>
    %c0_14 = arith.constant 0 : index
    %c0_15 = arith.constant 0 : index
    %c0_16 = arith.constant 0 : index
    %31 = vector.load %arg4[%c0_14, %c0_15, %c0_16] : memref<1x1x8xf32, #tpu.memory_space<vmem>>, vector<1x1x8xf32>
    %32 = vector.shape_cast %31 : vector<1x1x8xf32> to vector<1x8xf32>
    %33 = vector.broadcast %32 : vector<1x8xf32> to vector<512x8xf32>
    %34 = arith.mulf %33, %30 : vector<512x8xf32>
    %c0_17 = arith.constant 0 : index
    %c0_18 = arith.constant 0 : index
    %c0_19 = arith.constant 0 : index
    %35 = vector.load %arg5[%c0_17, %c0_18, %c0_19] : memref<1x1x8xf32, #tpu.memory_space<vmem>>, vector<1x1x8xf32>
    %36 = vector.shape_cast %35 : vector<1x1x8xf32> to vector<1x8xf32>
    %37 = vector.broadcast %36 : vector<1x8xf32> to vector<512x8xf32>
    %38 = arith.addf %34, %37 : vector<512x8xf32>
    %c0_20 = arith.constant 0 : index
    %c0_21 = arith.constant 0 : index
    %c0_22 = arith.constant 0 : index
    %39 = vector.load %arg6[%c0_20, %c0_21, %c0_22] : memref<1x512x8xf32, #tpu.memory_space<vmem>>, vector<1x512x8xf32>
    %40 = vector.shape_cast %39 : vector<1x512x8xf32> to vector<512x8xf32>
    %41 = vector.shape_cast %38 : vector<512x8xf32> to vector<1x512x8xf32>
    tpu.vector_store %arg6[%c0_20, %c0_21, %c0_22], %41 {strides = array<i32>} : memref<1x512x8xf32, #tpu.memory_space<vmem>>, vector<1x512x8xf32>,
    return
  }
  func.func @transform_0(%arg0: i32) -> (i32, i32, i32) {
    %c0_i32 = arith.constant 0 : i32
    %c0_i32_0 = arith.constant 0 : i32
    %c0_i32_1 = arith.constant 0 : i32
    return %arg0, %c0_i32, %c0_i32_0 : i32, i32, i32
  }
  func.func @transform_1(%arg0: i32) -> (i32, i32, i32) {
    %c0_i32 = arith.constant 0 : i32
    %c0_i32_0 = arith.constant 0 : i32
    %c0_i32_1 = arith.constant 0 : i32
    return %arg0, %c0_i32, %c0_i32_0 : i32, i32, i32
  }
  func.func @transform_2(%arg0: i32) -> (i32, i32, i32) {
    %c0_i32 = arith.constant 0 : i32
    %c0_i32_0 = arith.constant 0 : i32
    %c0_i32_1 = arith.constant 0 : i32
    %c0_i32_2 = arith.constant 0 : i32
    return %c0_i32, %c0_i32_0, %c0_i32_1 : i32, i32, i32
  }
  func.func @transform_3(%arg0: i32) -> (i32, i32, i32) {
    %c0_i32 = arith.constant 0 : i32
    %c0_i32_0 = arith.constant 0 : i32
    %c0_i32_1 = arith.constant 0 : i32
    return %arg0, %c0_i32, %c0_i32_0 : i32, i32, i32
  }
  func.func @transform_4(%arg0: i32) -> (i32, i32, i32) {
    %c0_i32 = arith.constant 0 : i32
    %c0_i32_0 = arith.constant 0 : i32
    %c0_i32_1 = arith.constant 0 : i32
    return %arg0, %c0_i32, %c0_i32_0 : i32, i32, i32
  }
  func.func @transform_5(%arg0: i32) -> (i32, i32, i32) {
    %c0_i32 = arith.constant 0 : i32
    %c0_i32_0 = arith.constant 0 : i32
    %c0_i32_1 = arith.constant 0 : i32
    return %arg0, %c0_i32, %c0_i32_0 : i32, i32, i32
  }
}

module attributes {stable_mosaic.version = 11 : i64} {
  func.func @_matmul_bias_kernel(%arg0: i32, %arg1: i32, %arg2: i32, %arg3: memref<256x128xf32, #tpu.memory_space<vmem>>, %arg4: memref<128x128xf32, #tpu.memory_space<vmem>>, %arg5: memref<1x128xf32, #tpu.memory_space<vmem>>, %arg6: memref<256x128xf32, #tpu.memory_space<vmem>>, %arg7: memref<256x128xf32, #tpu.memory_space<vmem>>) attributes {dimension_semantics = [#tpu.dimension_semantics<parallel>, #tpu.dimension_semantics<parallel>, #tpu.dimension_semantics<arbitrary>], iteration_bounds = array<i64: 4, 1, 2>, scalar_prefetch = 0 : i64, scratch_operands = 1 : i64, tpu.core_type = #tpu.core_type<tc>, window_params = [{transform_indices = @transform_0, window_bounds = array<i64: 256, 128>}, {transform_indices = @transform_1, window_bounds = array<i64: 128, 128>}, {transform_indices = @transform_2, window_bounds = array<i64: 1, 128>}, {transform_indices = @transform_3, window_bounds = array<i64: 256, 128>}]} {
    %c0_i32 = arith.constant 0 : i32
    %0 = arith.cmpi eq, %arg2, %c0_i32 : i32
    %1 = arith.extui %0 : i1 to i32
    %c0_i32_0 = arith.constant 0 : i32
    %2 = arith.cmpi ne, %1, %c0_i32_0 : i32
    scf.if %2 {
      %cst_9 = arith.constant 0.000000e+00 : f32
      %12 = vector.broadcast %cst_9 : f32 to vector<256x128xf32>
      %c0_10 = arith.constant 0 : index
      %c0_11 = arith.constant 0 : index
      %13 = vector.load %arg7[%c0_10, %c0_11] : memref<256x128xf32, #tpu.memory_space<vmem>>, vector<256x128xf32>
      tpu.vector_store %arg7[%c0_10, %c0_11], %12 {strides = array<i32>} : memref<256x128xf32, #tpu.memory_space<vmem>>, vector<256x128xf32>,
    } else {
    }
    %c0 = arith.constant 0 : index
    %c0_1 = arith.constant 0 : index
    %3 = vector.load %arg7[%c0, %c0_1] : memref<256x128xf32, #tpu.memory_space<vmem>>, vector<256x128xf32>
    %c0_2 = arith.constant 0 : index
    %c0_3 = arith.constant 0 : index
    %4 = vector.load %arg3[%c0_2, %c0_3] : memref<256x128xf32, #tpu.memory_space<vmem>>, vector<256x128xf32>
    %c0_4 = arith.constant 0 : index
    %c0_5 = arith.constant 0 : index
    %5 = vector.load %arg4[%c0_4, %c0_5] : memref<128x128xf32, #tpu.memory_space<vmem>>, vector<128x128xf32>
    %cst = arith.constant dense<0.000000e+00> : vector<256x128xf32>
    %6 = tpu.matmul %4, %5, %cst {dimension_numbers = #tpu.dot_dimension_numbers<[1], [0], [0], [1], [0, 0, 1, 1], [], []>} : vector<256x128xf32>, vector<128x128xf32>, vector<256x128xf32> -> vector<256x128xf32>
    %7 = arith.addf %3, %6 : vector<256x128xf32>
    %c0_6 = arith.constant 0 : index
    %c0_7 = arith.constant 0 : index
    %8 = vector.load %arg7[%c0_6, %c0_7] : memref<256x128xf32, #tpu.memory_space<vmem>>, vector<256x128xf32>
    tpu.vector_store %arg7[%c0_6, %c0_7], %7 {strides = array<i32>} : memref<256x128xf32, #tpu.memory_space<vmem>>, vector<256x128xf32>,
    %c1_i32 = arith.constant 1 : i32
    %9 = arith.cmpi eq, %arg2, %c1_i32 : i32
    %10 = arith.extui %9 : i1 to i32
    %c0_i32_8 = arith.constant 0 : i32
    %11 = arith.cmpi ne, %10, %c0_i32_8 : i32
    scf.if %11 {
      %c0_9 = arith.constant 0 : index
      %c0_10 = arith.constant 0 : index
      %12 = vector.load %arg7[%c0_9, %c0_10] : memref<256x128xf32, #tpu.memory_space<vmem>>, vector<256x128xf32>
      %c0_11 = arith.constant 0 : index
      %c0_12 = arith.constant 0 : index
      %13 = vector.load %arg5[%c0_11, %c0_12] : memref<1x128xf32, #tpu.memory_space<vmem>>, vector<1x128xf32>
      %14 = vector.broadcast %13 : vector<1x128xf32> to vector<256x128xf32>
      %15 = arith.addf %12, %14 : vector<256x128xf32>
      %c0_13 = arith.constant 0 : index
      %c0_14 = arith.constant 0 : index
      %16 = vector.load %arg6[%c0_13, %c0_14] : memref<256x128xf32, #tpu.memory_space<vmem>>, vector<256x128xf32>
      tpu.vector_store %arg6[%c0_13, %c0_14], %15 {strides = array<i32>} : memref<256x128xf32, #tpu.memory_space<vmem>>, vector<256x128xf32>,
    } else {
    }
    return
  }
  func.func @transform_0(%arg0: i32, %arg1: i32, %arg2: i32) -> (i32, i32) {
    %c0_i32 = arith.constant 0 : i32
    return %arg0, %arg2 : i32, i32
  }
  func.func @transform_1(%arg0: i32, %arg1: i32, %arg2: i32) -> (i32, i32) {
    %c0_i32 = arith.constant 0 : i32
    return %arg2, %arg1 : i32, i32
  }
  func.func @transform_2(%arg0: i32, %arg1: i32, %arg2: i32) -> (i32, i32) {
    %c0_i32 = arith.constant 0 : i32
    %c0_i32_0 = arith.constant 0 : i32
    return %c0_i32, %arg1 : i32, i32
  }
  func.func @transform_3(%arg0: i32, %arg1: i32, %arg2: i32) -> (i32, i32) {
    %c0_i32 = arith.constant 0 : i32
    return %arg0, %arg1 : i32, i32
  }
}

</mosaic_0001>

<llo_original>
// kernel: styled_conv_block_forward.7
$region0: #{styled_conv_block_forward.7}
  #allocation0 [shape = 'u32[]', space=smem, size = 0x4, offset = 0x4, fixed_abs, tag = 'smem constant byte address 0x4 - core index']
  #allocation1 [shape = 'u32[144,128]{1,0:T(1,128)}', space=vmem, size = 0x12000, scoped, tag = 'internal scratch']
  #allocation2 [shape = 'f32[8,128]{1,0:T(8,128)}', space=vmem, size = 0x1000, scoped, tag = 'scratch operand']
  %s0 = inlined_call_operand.vmem [shape: f32[8,128], index: 0, kind: input, shape index: {}]
  %s1 = inlined_call_operand.vmem [shape: f32[128,128], index: 1, kind: input, shape index: {}]
  %s2 = inlined_call_operand.vmem [shape: f32[1,128], index: 2, kind: input, shape index: {}]
  %s3 = inlined_call_operand.vmem [shape: f32[8,128], index: 3, kind: output, shape index: {}]
  %s4 = sld [smem:[#allocation0]]
  $region30: #{styled_conv_block_forward.7} parent=0
    _
  %s6 = ssub.s32 1, %s4
  %s7 = scalar_select 0, %s6, %s4
  // Predicated region
  $region2: #{styled_conv_block_forward.7} parent=0 // pred_check
    _
  $region3: #{styled_conv_block_forward.7} parent=0 // pred_check_branch
    %9 = sbr.rel (0) target = $region5
  $region4: #{styled_conv_block_forward.7} parent=0 // pred_region
    _
  $region5: #{styled_conv_block_forward.7} parent=0 // pred_fallthru
    _
  // Predicated region
  $region6: #{styled_conv_block_forward.7} parent=0 // pred_check
    _
  $region7: #{styled_conv_block_forward.7} parent=0 // pred_check_branch
    %11 = sbr.rel (0) target = $region9
  $region8: #{styled_conv_block_forward.7} parent=0 // pred_region
    _
  $region9: #{styled_conv_block_forward.7} parent=0 // pred_fallthru
    _
  // Predicated region
  $region10: #{styled_conv_block_forward.7} parent=0 // pred_check
    _
  $region11: #{styled_conv_block_forward.7} parent=0 // pred_check_branch
    %13 = sbr.rel (0) target = $region13
  $region12: #{styled_conv_block_forward.7} parent=0 // pred_region
    _
  $region13: #{styled_conv_block_forward.7} parent=0 // pred_fallthru
    _
  %p14 = scmp.eq.s32.totalorder 0, 0
  // Predicated region
  $region14: #{styled_conv_block_forward.7} parent=0 // pred_check
    %p15 = pneg %p14
  $region15: #{styled_conv_block_forward.7} parent=0 // pred_check_branch
    %17 = sbr.rel (%p15) target = $region17
  $region16: #{styled_conv_block_forward.7} parent=0 // pred_region
    %18 = vst [vmem:[#allocation2] sm:$0xff] 0.0
  $region17: #{styled_conv_block_forward.7} parent=0 // pred_fallthru
    _
  %v19 = vld [vmem:[#allocation2] sm:$0xff]
  %v20 = vld [vmem:[%s0] sm:$0xff]
  %v21 = vld [vmem:[%s1] sm:$0xff]
  %v22 = vld [vmem:[%s1 + $0x8] sm:$0xff]
  %v23 = vld [vmem:[%s1 + $0x10] sm:$0xff]
  %v24 = vld [vmem:[%s1 + $0x18] sm:$0xff]
  %v25 = vld [vmem:[%s1 + $0x20] sm:$0xff]
  %v26 = vld [vmem:[%s1 + $0x28] sm:$0xff]
  %v27 = vld [vmem:[%s1 + $0x30] sm:$0xff]
  %v28 = vld [vmem:[%s1 + $0x38] sm:$0xff]
  %v29 = vld [vmem:[%s1 + $0x40] sm:$0xff]
  %v30 = vld [vmem:[%s1 + $0x48] sm:$0xff]
  %v31 = vld [vmem:[%s1 + $0x50] sm:$0xff]
  %v32 = vld [vmem:[%s1 + $0x58] sm:$0xff]
  %v33 = vld [vmem:[%s1 + $0x60] sm:$0xff]
  %v34 = vld [vmem:[%s1 + $0x68] sm:$0xff]
  %v35 = vld [vmem:[%s1 + $0x70] sm:$0xff]
  %v36 = vld [vmem:[%s1 + $0x78] sm:$0xff]
  %37 = vmatprep.subr.mxu0 0.0
  %38 = vmatpush1.msra.mxu0 %v21
  %39 = vmatprep.subr.mxu0 0.0
  %40 = vmatpush1.msra.mxu0 %v22
  %41 = vmatprep.subr.mxu0 0.0
  %42 = vmatpush1.msra.mxu0 %v23
  %43 = vmatprep.subr.mxu0 0.0
  %44 = vmatpush1.msra.mxu0 %v24
  %45 = vmatprep.subr.mxu0 0.0
  %46 = vmatpush1.msra.mxu0 %v25
  %47 = vmatprep.subr.mxu0 0.0
  %48 = vmatpush1.msra.mxu0 %v26
  %49 = vmatprep.subr.mxu0 0.0
  %50 = vmatpush1.msra.mxu0 %v27
  %51 = vmatprep.subr.mxu0 0.0
  %52 = vmatpush1.msra.mxu0 %v28
  %53 = vmatprep.subr.mxu0 0.0
  %54 = vmatpush1.msra.mxu0 %v29
  %55 = vmatprep.subr.mxu0 0.0
  %56 = vmatpush1.msra.mxu0 %v30
  %57 = vmatprep.subr.mxu0 0.0
  %58 = vmatpush1.msra.mxu0 %v31
  %59 = vmatprep.subr.mxu0 0.0
  %60 = vmatpush1.msra.mxu0 %v32
  %61 = vmatprep.subr.mxu0 0.0
  %62 = vmatpush1.msra.mxu0 %v33
  %63 = vmatprep.subr.mxu0 0.0
  %64 = vmatpush1.msra.mxu0 %v34
  %65 = vmatprep.subr.mxu0 0.0
  %66 = vmatpush1.msra.mxu0 %v35
  %67 = vmatprep.subr.mxu0 0.0
  %68 = vmatpush1.msra.mxu0 %v36
  %69 = vmatprep.subr.mxu0 0.0
  %70 = vmatpush1.msra.mxu0 0.0
  %71 = vmatprep.subr.mxu0 0.0
  %72 = vmatpush1.msra.mxu0 0.0
  %73 = vmatprep.subr.mxu0 0.0
  %74 = vmatpush1.msra.mxu0 0.0
  %75 = vmatprep.subr.mxu0 0.0
  %76 = vmatpush1.msra.mxu0 0.0
  %77 = vmatprep.subr.mxu0 0.0
  %78 = vmatpush1.msra.mxu0 0.0
  %79 = vmatprep.subr.mxu0 0.0
  %80 = vmatpush1.msra.mxu0 0.0
  %81 = vmatprep.subr.mxu0 0.0
  %82 = vmatpush1.msra.mxu0 0.0
  %83 = vmatprep.subr.mxu0 0.0
  %84 = vmatpush1.msra.mxu0 0.0
  %85 = vmatprep.subr.mxu0 0.0
  %86 = vmatpush1.msra.mxu0 0.0
  %87 = vmatprep.subr.mxu0 0.0
  %88 = vmatpush1.msra.mxu0 0.0
  %89 = vmatprep.subr.mxu0 0.0
  %90 = vmatpush1.msra.mxu0 0.0
  %91 = vmatprep.subr.mxu0 0.0
  %92 = vmatpush1.msra.mxu0 0.0
  %93 = vmatprep.subr.mxu0 0.0
  %94 = vmatpush1.msra.mxu0 0.0
  %95 = vmatprep.subr.mxu0 0.0
  %96 = vmatpush1.msra.mxu0 0.0
  %97 = vmatprep.subr.mxu0 0.0
  %98 = vmatpush1.msra.mxu0 0.0
  %99 = vmatprep.subr.mxu0 0.0
  %100 = vmatpush1.msra.mxu0 0.0
  %101 = vmatprep.mubr.f32.mxu0 0.0
  %102 = vmatmul.mubr.f32.gmra.mrb[0].mxu0 %v20
  %v103 = vpop.f32.mrb[0].mxu0
  %v104 = vadd.f32 0.0, %v103
  %v105 = vpop.f32.mrb[0].mxu0
  %106 = vdwg.mxu0
  %v107 = vadd.f32 %v19, %v104
  %108 = vst [vmem:[#allocation2] sm:$0xff] %v107
  // Predicated region
  $region18: #{styled_conv_block_forward.7} parent=0 // pred_check
    %p109 = pneg %p14
  $region19: #{styled_conv_block_forward.7} parent=0 // pred_check_branch
    %111 = sbr.rel (%p109) target = $region21
  $region20: #{styled_conv_block_forward.7} parent=0 // pred_region
    %v112 = vld [vmem:[#allocation2] sm:$0xff]
    %v113 = vld [vmem:[%s2] sm:$0x1]
    %v115 = vlaneseq
    %v116 = vshrl.u32 %v115, 7
    %v117 = vsub.s32 0, %v116
    %v118 = vrot.slane %v113, %v117
    %v120 = vadd.f32 %v112, %v118
    %121 = vst [vmem:[%s3] sm:$0xff] %v120
  $region21: #{styled_conv_block_forward.7} parent=0 // pred_fallthru
    _
  // Predicated region
  $region22: #{styled_conv_block_forward.7} parent=0 // pred_check
    _
  $region23: #{styled_conv_block_forward.7} parent=0 // pred_check_branch
    %123 = sbr.rel (0) target = $region25
  $region24: #{styled_conv_block_forward.7} parent=0 // pred_region
    _
  $region25: #{styled_conv_block_forward.7} parent=0 // pred_fallthru
    _
  // Predicated region
  $region26: #{styled_conv_block_forward.7} parent=0 // pred_check
    _
  $region27: #{styled_conv_block_forward.7} parent=0 // pred_check_branch
    %125 = sbr.rel (0) target = $region29
  $region28: #{styled_conv_block_forward.7} parent=0 // pred_region
    _
  $region29: #{styled_conv_block_forward.7} parent=0 // pred_fallthru
    _

// kernel: styled_conv_block_forward.6
$region0: #{styled_conv_block_forward.6}
  #allocation0 [shape = 'u32[]', space=smem, size = 0x4, offset = 0x4, fixed_abs, tag = 'smem constant byte address 0x4 - core index']
  #allocation1 [shape = 'u32[144,128]{1,0:T(1,128)}', space=vmem, size = 0x12000, scoped, tag = 'internal scratch']
  #allocation2 [shape = 'f32[256,128]{1,0:T(8,128)}', space=vmem, size = 0x20000, scoped, tag = 'scratch operand']
  %s0 = inlined_call_operand.vmem [shape: f32[1024,128], index: 0, kind: input, shape index: {}]
  %s1 = inlined_call_operand.vmem [shape: f32[128,128], index: 1, kind: input, shape index: {}]
  %s2 = inlined_call_operand.vmem [shape: f32[1,128], index: 2, kind: input, shape index: {}]
  %s3 = inlined_call_operand.vmem [shape: f32[1024,128], index: 3, kind: output, shape index: {}]
  %s4 = sld [smem:[#allocation0]]
  $region53: #{styled_conv_block_forward.6} parent=0
    _
  %s6 = ssub.s32 1, %s4
  %s7 = scalar_select 0, %s6, %s4
  loop: start=0, step=1, limit=6
  $region2: #{styled_conv_block_forward.6} parent=0 // loop_pre_header
    _
  $region3: #{styled_conv_block_forward.6} parent=0 // loop_header
    %s9 = sphi 0, %s13
    %p10 = scmp.ge.s32.totalorder %s9, 6
    %s16 = sphi 0, %s35
    %s17 = sphi 0, %s31
    %s18 = sphi 0, %s27
    %s19 = sphi 0, %s16
    %s20 = sphi 0, %s17
    %s21 = sphi 0, %s18
    %s22 = sphi 0, %s19
    %s23 = sphi 0, %s20
    %s24 = sphi 0, %s21
    %s40 = sphi 0, %s42
    %s43 = sphi 0, %s40
    %s44 = sphi 0, %s43
    %s60 = sphi 0, %s44
    %s68 = sphi 0, %s70
    %s71 = sphi 0, %s68
    %s72 = sphi 0, %s71
    %s88 = sphi 0, %s72
    %s94 = sphi 0, %s96
    %s97 = sphi 0, %s94
    %s98 = sphi 0, %s97
    %s114 = sphi 0, %s98
    %s122 = sphi 0, %s124
    %s125 = sphi 0, %s122
    %s126 = sphi 0, %s125
    %s142 = sphi 0, %s126
  $region4: #{styled_conv_block_forward.6} parent=0 // loop_header_branch
    %12 = sbr.rel (%p10) target = $region8
  $region5: #{styled_conv_block_forward.6} parent=0 // loop_body
    %s14 = ssub.s32 %s9, 1
    %s15 = ssub.s32 %s9, 2
    %s25 = sadd.s32 1, %s18
    %p26 = scmp.ge.s32.totalorder %s25, 1
    %s27 = scalar_select %p26, 0, %s25
    %s28 = sadd.s32 1, %s17
    %s29 = scalar_select %p26, %s28, %s17
    %p30 = scmp.ge.s32.totalorder %s29, 1
    %s31 = scalar_select %p30, 0, %s29
    %s32 = sadd.s32 1, %s16
    %s33 = scalar_select %p30, %s32, %s16
    %p34 = scmp.ge.s32.totalorder %s33, 4
    %s35 = scalar_select %p34, 0, %s33
    %s36 = ssub.s32 %s16, %s35
    %s37 = ssub.s32 %s18, %s27
    %s38 = sor.u32 %s36, %s37
    %p39 = scmp.eq.s32.totalorder %s38, 0
    %s41 = sadd.s32 %s40, 1
    %s42 = scalar_select %p39, %s40, %s41
    %p45 = pneg %p39
    %p46 = scmp.eq.s32.totalorder %s9, 3
    %p47 = por %p45, %p46
    %p48 = scmp.ne.s32.totalorder %s40, %s43
    %p49 = scmp.eq.s32.totalorder %s9, 0
    %p50 = por %p48, %p49
    %p51 = scmp.ne.s32.totalorder %s40, %s43
    %p52 = scmp.eq.s32.totalorder %s14, 3
    %p53 = por %p51, %p52
    %p54 = scmp.ne.s32.totalorder %s43, %s44
    %p55 = scmp.eq.s32.totalorder %s14, 0
    %p56 = por %p54, %p55
    %p57 = scmp.ne.s32.totalorder %s43, %s44
    %p58 = scmp.eq.s32.totalorder %s15, 3
    %p59 = por %p57, %p58
    %p61 = scmp.ne.s32.totalorder %s44, %s60
    %p62 = scmp.eq.s32.totalorder %s15, 0
    %p63 = por %p61, %p62
    %s64 = ssub.s32 %s18, %s27
    %s65 = ssub.s32 %s17, %s31
    %s66 = sor.u32 %s64, %s65
    %p67 = scmp.eq.s32.totalorder %s66, 0
    %s69 = sadd.s32 %s68, 1
    %s70 = scalar_select %p67, %s68, %s69
    %p73 = pneg %p67
    %p74 = scmp.eq.s32.totalorder %s9, 3
    %p75 = por %p73, %p74
    %p76 = scmp.ne.s32.totalorder %s68, %s71
    %p77 = scmp.eq.s32.totalorder %s9, 0
    %p78 = por %p76, %p77
    %p79 = scmp.ne.s32.totalorder %s68, %s71
    %p80 = scmp.eq.s32.totalorder %s14, 3
    %p81 = por %p79, %p80
    %p82 = scmp.ne.s32.totalorder %s71, %s72
    %p83 = scmp.eq.s32.totalorder %s14, 0
    %p84 = por %p82, %p83
    %p85 = scmp.ne.s32.totalorder %s71, %s72
    %p86 = scmp.eq.s32.totalorder %s15, 3
    %p87 = por %p85, %p86
    %p89 = scmp.ne.s32.totalorder %s72, %s88
    %p90 = scmp.eq.s32.totalorder %s15, 0
    %p91 = por %p89, %p90
    %s92 = ssub.s32 %s17, %s31
    %p93 = scmp.eq.s32.totalorder %s92, 0
    %s95 = sadd.s32 %s94, 1
    %s96 = scalar_select %p93, %s94, %s95
    %p99 = pneg %p93
    %p100 = scmp.eq.s32.totalorder %s9, 3
    %p101 = por %p99, %p100
    %p102 = scmp.ne.s32.totalorder %s94, %s97
    %p103 = scmp.eq.s32.totalorder %s9, 0
    %p104 = por %p102, %p103
    %p105 = scmp.ne.s32.totalorder %s94, %s97
    %p106 = scmp.eq.s32.totalorder %s14, 3
    %p107 = por %p105, %p106
    %p108 = scmp.ne.s32.totalorder %s97, %s98
    %p109 = scmp.eq.s32.totalorder %s14, 0
    %p110 = por %p108, %p109
    %p111 = scmp.ne.s32.totalorder %s97, %s98
    %p112 = scmp.eq.s32.totalorder %s15, 3
    %p113 = por %p111, %p112
    %p115 = scmp.ne.s32.totalorder %s98, %s114
    %p116 = scmp.eq.s32.totalorder %s15, 0
    %p117 = por %p115, %p116
    %s118 = ssub.s32 %s16, %s35
    %s119 = ssub.s32 %s17, %s31
    %s120 = sor.u32 %s118, %s119
    %p121 = scmp.eq.s32.totalorder %s120, 0
    %s123 = sadd.s32 %s122, 1
    %s124 = scalar_select %p121, %s122, %s123
    %p127 = pneg %p121
    %p128 = scmp.eq.s32.totalorder %s9, 3
    %p129 = por %p127, %p128
    %p130 = scmp.ne.s32.totalorder %s122, %s125
    %p131 = scmp.eq.s32.totalorder %s9, 0
    %p132 = por %p130, %p131
    %p133 = scmp.ne.s32.totalorder %s122, %s125
    %p134 = scmp.eq.s32.totalorder %s14, 3
    %p135 = por %p133, %p134
    %p136 = scmp.ne.s32.totalorder %s125, %s126
    %p137 = scmp.eq.s32.totalorder %s14, 0
    %p138 = por %p136, %p137
    %p139 = scmp.ne.s32.totalorder %s125, %s126
    %p140 = scmp.eq.s32.totalorder %s15, 3
    %p141 = por %p139, %p140
    %p143 = scmp.ne.s32.totalorder %s126, %s142
    %p144 = scmp.eq.s32.totalorder %s15, 0
    %p145 = por %p143, %p144
    %p146 = scmp.le.s32.totalorder 1, %s9
    %p147 = scmp.lt.s32.totalorder %s9, 5
    %p148 = pnand %p146, %p147
    %p149 = pneg %p148
    // Predicated region
    $region9: #{styled_conv_block_forward.6} parent=5 // pred_check
      _
    $region10: #{styled_conv_block_forward.6} parent=5 // pred_check_branch
      %151 = sbr.rel (%p148) target = $region12
    $region11: #{styled_conv_block_forward.6} parent=5 // pred_region
      %s152 = ssub.s32 %s9, 1
      // Predicated region
      $region13: #{styled_conv_block_forward.6} parent=11 // pred_check
        %p153 = pneg %p84
      $region14: #{styled_conv_block_forward.6} parent=11 // pred_check_branch
        %155 = sbr.rel (%p153) target = $region16
      $region15: #{styled_conv_block_forward.6} parent=11 // pred_region
        %s156 = smul.u32 16, %s21
        %p157 = scmp.lt.s32.totalorder %s156, 15
        %s158 = scalar_select %p157, %s156, 15
        %p159 = scmp.lt.s32.totalorder %s20, 0
        %s160 = scalar_select %p159, %s20, 0
        %s161 = sadd.s32 %s160, %s158
        %s162 = smul.addr %s161, 8
        %s163 = scalar_lea.vmem %s1, %s162
        %s164 = smul.u32 16, %s21
      $region16: #{styled_conv_block_forward.6} parent=11 // pred_fallthru
        _
      // Predicated region
      $region17: #{styled_conv_block_forward.6} parent=11 // pred_check
        %p165 = pneg %p110
      $region18: #{styled_conv_block_forward.6} parent=11 // pred_check_branch
        %167 = sbr.rel (%p165) target = $region20
      $region19: #{styled_conv_block_forward.6} parent=11 // pred_region
        %p168 = scmp.lt.s32.totalorder %s20, 0
        %s169 = scalar_select %p168, %s20, 0
        %s170 = scalar_lea.vmem %s2, %s169
      $region20: #{styled_conv_block_forward.6} parent=11 // pred_fallthru
        _
    $region12: #{styled_conv_block_forward.6} parent=5 // pred_fallthru
      _
    %p171 = scmp.lt.s32.totalorder %s9, 4
    // Predicated region
    $region21: #{styled_conv_block_forward.6} parent=5 // pred_check
      %p172 = pneg %p171
    $region22: #{styled_conv_block_forward.6} parent=5 // pred_check_branch
      %174 = sbr.rel (%p172) target = $region24
    $region23: #{styled_conv_block_forward.6} parent=5 // pred_region
      // Predicated region
      $region25: #{styled_conv_block_forward.6} parent=23 // pred_check
        %p175 = pneg %p50
      $region26: #{styled_conv_block_forward.6} parent=23 // pred_check_branch
        %177 = sbr.rel (%p175) target = $region28
      $region27: #{styled_conv_block_forward.6} parent=23 // pred_region
        %s178 = smul.u32 32, %s16
        %p179 = scmp.lt.s32.totalorder %s178, 127
        %s180 = scalar_select %p179, %s178, 127
        %p181 = scmp.lt.s32.totalorder %s18, 0
        %s182 = scalar_select %p181, %s18, 0
        %s183 = sadd.s32 %s182, %s180
        %s184 = smul.addr %s183, 8
        %s185 = scalar_lea.vmem %s0, %s184
        %s186 = smul.u32 32, %s16
      $region28: #{styled_conv_block_forward.6} parent=23 // pred_fallthru
        _
    $region24: #{styled_conv_block_forward.6} parent=5 // pred_fallthru
      _
    %p187 = scmp.le.s32.totalorder 1, %s9
    %p188 = scmp.lt.s32.totalorder %s9, 5
    %p189 = pnand %p187, %p188
    %p190 = pneg %p189
    // Predicated region
    $region29: #{styled_conv_block_forward.6} parent=5 // pred_check
      _
    $region30: #{styled_conv_block_forward.6} parent=5 // pred_check_branch
      %192 = sbr.rel (%p189) target = $region32
    $region31: #{styled_conv_block_forward.6} parent=5 // pred_region
      %s193 = ssub.s32 %s9, 1
      %s194 = smul.u32 32, %s19
      %p195 = scmp.lt.s32.totalorder %s194, 127
      %s196 = scalar_select %p195, %s194, 127
      %p197 = scmp.lt.s32.totalorder %s21, 0
      %s198 = scalar_select %p197, %s21, 0
      %s199 = sadd.s32 %s198, %s196
      %s200 = smul.addr %s199, 8
      %s201 = scalar_lea.vmem %s0, %s200
      %p202 = pneg %p56
      %p203 = pneg %p53
      %s204 = smul.u32 16, %s21
      %p205 = scmp.lt.s32.totalorder %s204, 15
      %s206 = scalar_select %p205, %s204, 15
      %p207 = scmp.lt.s32.totalorder %s20, 0
      %s208 = scalar_select %p207, %s20, 0
      %s209 = sadd.s32 %s208, %s206
      %s210 = smul.addr %s209, 8
      %s211 = scalar_lea.vmem %s1, %s210
      %p212 = pneg %p84
      %p213 = pneg %p81
      %p214 = scmp.lt.s32.totalorder %s20, 0
      %s215 = scalar_select %p214, %s20, 0
      %s216 = scalar_lea.vmem %s2, %s215
      %p217 = pneg %p110
      %p218 = pneg %p107
      %p219 = pneg %p138
      %p220 = pneg %p135
      %s221 = smul.u32 32, %s19
      %p222 = scmp.lt.s32.totalorder %s221, 127
      %s223 = scalar_select %p222, %s221, 127
      %p224 = scmp.lt.s32.totalorder %s20, 0
      %s225 = scalar_select %p224, %s20, 0
      %s226 = sadd.s32 %s225, %s223
      %s227 = smul.addr %s226, 8
      %s228 = scalar_lea.vmem %s3, %s227
      %s229 = smul.u32 32, %s19
      %p230 = scmp.lt.s32.totalorder %s229, 127
      %s231 = scalar_select %p230, %s229, 127
      %p232 = scmp.lt.s32.totalorder %s21, 0
      %s233 = scalar_select %p232, %s21, 0
      %s234 = sadd.s32 %s233, %s231
      %s235 = smul.addr %s234, 8
      %s236 = scalar_lea.vmem %s0, %s235
      %s237 = smul.u32 32, %s19
      %s238 = smul.u32 16, %s21
      %p239 = scmp.lt.s32.totalorder %s238, 15
      %s240 = scalar_select %p239, %s238, 15
      %p241 = scmp.lt.s32.totalorder %s20, 0
      %s242 = scalar_select %p241, %s20, 0
      %s243 = sadd.s32 %s242, %s240
      %s244 = smul.addr %s243, 8
      %s245 = scalar_lea.vmem %s1, %s244
      %s246 = smul.u32 16, %s21
      %p247 = scmp.lt.s32.totalorder %s20, 0
      %s248 = scalar_select %p247, %s20, 0
      %s249 = scalar_lea.vmem %s2, %s248
      %s250 = smul.u32 32, %s19
      %p251 = scmp.lt.s32.totalorder %s250, 127
      %s252 = scalar_select %p251, %s250, 127
      %p253 = scmp.lt.s32.totalorder %s20, 0
      %s254 = scalar_select %p253, %s20, 0
      %s255 = sadd.s32 %s254, %s252
      %s256 = smul.addr %s255, 8
      %s257 = scalar_lea.vmem %s3, %s256
      %s258 = smul.u32 32, %s19
      %p259 = scmp.eq.s32.totalorder %s21, 0
      // Predicated region
      $region33: #{styled_conv_block_forward.6} parent=31 // pred_check
        %p260 = pneg %p259
      $region34: #{styled_conv_block_forward.6} parent=31 // pred_check_branch
        %262 = sbr.rel (%p260) target = $region36
      $region35: #{styled_conv_block_forward.6} parent=31 // pred_region
        %263 = vst [vmem:[#allocation2] sm:$0xff] 0.0
        %264 = vst [vmem:[#allocation2 + $0x8] sm:$0xff] 0.0
        %265 = vst [vmem:[#allocation2 + $0x10] sm:$0xff] 0.0
        %266 = vst [vmem:[#allocation2 + $0x18] sm:$0xff] 0.0
        %267 = vst [vmem:[#allocation2 + $0x20] sm:$0xff] 0.0
        %268 = vst [vmem:[#allocation2 + $0x28] sm:$0xff] 0.0
        %269 = vst [vmem:[#allocation2 + $0x30] sm:$0xff] 0.0
        %270 = vst [vmem:[#allocation2 + $0x38] sm:$0xff] 0.0
        %271 = vst [vmem:[#allocation2 + $0x40] sm:$0xff] 0.0
        %272 = vst [vmem:[#allocation2 + $0x48] sm:$0xff] 0.0
        %273 = vst [vmem:[#allocation2 + $0x50] sm:$0xff] 0.0
        %274 = vst [vmem:[#allocation2 + $0x58] sm:$0xff] 0.0
        %275 = vst [vmem:[#allocation2 + $0x60] sm:$0xff] 0.0
        %276 = vst [vmem:[#allocation2 + $0x68] sm:$0xff] 0.0
        %277 = vst [vmem:[#allocation2 + $0x70] sm:$0xff] 0.0
        %278 = vst [vmem:[#allocation2 + $0x78] sm:$0xff] 0.0
        %279 = vst [vmem:[#allocation2 + $0x80] sm:$0xff] 0.0
        %280 = vst [vmem:[#allocation2 + $0x88] sm:$0xff] 0.0
        %281 = vst [vmem:[#allocation2 + $0x90] sm:$0xff] 0.0
        %282 = vst [vmem:[#allocation2 + $0x98] sm:$0xff] 0.0
        %283 = vst [vmem:[#allocation2 + $0xa0] sm:$0xff] 0.0
        %284 = vst [vmem:[#allocation2 + $0xa8] sm:$0xff] 0.0
        %285 = vst [vmem:[#allocation2 + $0xb0] sm:$0xff] 0.0
        %286 = vst [vmem:[#allocation2 + $0xb8] sm:$0xff] 0.0
        %287 = vst [vmem:[#allocation2 + $0xc0] sm:$0xff] 0.0
        %288 = vst [vmem:[#allocation2 + $0xc8] sm:$0xff] 0.0
        %289 = vst [vmem:[#allocation2 + $0xd0] sm:$0xff] 0.0
        %290 = vst [vmem:[#allocation2 + $0xd8] sm:$0xff] 0.0
        %291 = vst [vmem:[#allocation2 + $0xe0] sm:$0xff] 0.0
        %292 = vst [vmem:[#allocation2 + $0xe8] sm:$0xff] 0.0
        %293 = vst [vmem:[#allocation2 + $0xf0] sm:$0xff] 0.0
        %294 = vst [vmem:[#allocation2 + $0xf8] sm:$0xff] 0.0
      $region36: #{styled_conv_block_forward.6} parent=31 // pred_fallthru
        _
      %v295 = vld [vmem:[#allocation2] sm:$0xff]
      %v296 = vld [vmem:[#allocation2 + $0x8] sm:$0xff]
      %v297 = vld [vmem:[#allocation2 + $0x10] sm:$0xff]
      %v298 = vld [vmem:[#allocation2 + $0x18] sm:$0xff]
      %v299 = vld [vmem:[#allocation2 + $0x20] sm:$0xff]
      %v300 = vld [vmem:[#allocation2 + $0x28] sm:$0xff]
      %v301 = vld [vmem:[#allocation2 + $0x30] sm:$0xff]
      %v302 = vld [vmem:[#allocation2 + $0x38] sm:$0xff]
      %v303 = vld [vmem:[#allocation2 + $0x40] sm:$0xff]
      %v304 = vld [vmem:[#allocation2 + $0x48] sm:$0xff]
      %v305 = vld [vmem:[#allocation2 + $0x50] sm:$0xff]
      %v306 = vld [vmem:[#allocation2 + $0x58] sm:$0xff]
      %v307 = vld [vmem:[#allocation2 + $0x60] sm:$0xff]
      %v308 = vld [vmem:[#allocation2 + $0x68] sm:$0xff]
      %v309 = vld [vmem:[#allocation2 + $0x70] sm:$0xff]
      %v310 = vld [vmem:[#allocation2 + $0x78] sm:$0xff]
      %v311 = vld [vmem:[#allocation2 + $0x80] sm:$0xff]
      %v312 = vld [vmem:[#allocation2 + $0x88] sm:$0xff]
      %v313 = vld [vmem:[#allocation2 + $0x90] sm:$0xff]
      %v314 = vld [vmem:[#allocation2 + $0x98] sm:$0xff]
      %v315 = vld [vmem:[#allocation2 + $0xa0] sm:$0xff]
      %v316 = vld [vmem:[#allocation2 + $0xa8] sm:$0xff]
      %v317 = vld [vmem:[#allocation2 + $0xb0] sm:$0xff]
      %v318 = vld [vmem:[#allocation2 + $0xb8] sm:$0xff]
      %v319 = vld [vmem:[#allocation2 + $0xc0] sm:$0xff]
      %v320 = vld [vmem:[#allocation2 + $0xc8] sm:$0xff]
      %v321 = vld [vmem:[#allocation2 + $0xd0] sm:$0xff]
      %v322 = vld [vmem:[#allocation2 + $0xd8] sm:$0xff]
      %v323 = vld [vmem:[#allocation2 + $0xe0] sm:$0xff]
      %v324 = vld [vmem:[#allocation2 + $0xe8] sm:$0xff]
      %v325 = vld [vmem:[#allocation2 + $0xf0] sm:$0xff]
      %v326 = vld [vmem:[#allocation2 + $0xf8] sm:$0xff]
      %v327 = vld [vmem:[%s236] sm:$0xff]
      %v328 = vld [vmem:[%s236 + $0x8] sm:$0xff]
      %v329 = vld [vmem:[%s236 + $0x10] sm:$0xff]
      %v330 = vld [vmem:[%s236 + $0x18] sm:$0xff]
      %v331 = vld [vmem:[%s236 + $0x20] sm:$0xff]
      %v332 = vld [vmem:[%s236 + $0x28] sm:$0xff]
      %v333 = vld [vmem:[%s236 + $0x30] sm:$0xff]
      %v334 = vld [vmem:[%s236 + $0x38] sm:$0xff]
      %v335 = vld [vmem:[%s236 + $0x40] sm:$0xff]
      %v336 = vld [vmem:[%s236 + $0x48] sm:$0xff]
      %v337 = vld [vmem:[%s236 + $0x50] sm:$0xff]
      %v338 = vld [vmem:[%s236 + $0x58] sm:$0xff]
      %v339 = vld [vmem:[%s236 + $0x60] sm:$0xff]
      %v340 = vld [vmem:[%s236 + $0x68] sm:$0xff]
      %v341 = vld [vmem:[%s236 + $0x70] sm:$0xff]
      %v342 = vld [vmem:[%s236 + $0x78] sm:$0xff]
      %v343 = vld [vmem:[%s236 + $0x80] sm:$0xff]
      %v344 = vld [vmem:[%s236 + $0x88] sm:$0xff]
      %v345 = vld [vmem:[%s236 + $0x90] sm:$0xff]
      %v346 = vld [vmem:[%s236 + $0x98] sm:$0xff]
      %v347 = vld [vmem:[%s236 + $0xa0] sm:$0xff]
      %v348 = vld [vmem:[%s236 + $0xa8] sm:$0xff]
      %v349 = vld [vmem:[%s236 + $0xb0] sm:$0xff]
      %v350 = vld [vmem:[%s236 + $0xb8] sm:$0xff]
      %v351 = vld [vmem:[%s236 + $0xc0] sm:$0xff]
      %v352 = vld [vmem:[%s236 + $0xc8] sm:$0xff]
      %v353 = vld [vmem:[%s236 + $0xd0] sm:$0xff]
      %v354 = vld [vmem:[%s236 + $0xd8] sm:$0xff]
      %v355 = vld [vmem:[%s236 + $0xe0] sm:$0xff]
      %v356 = vld [vmem:[%s236 + $0xe8] sm:$0xff]
      %v357 = vld [vmem:[%s236 + $0xf0] sm:$0xff]
      %v358 = vld [vmem:[%s236 + $0xf8] sm:$0xff]
      %v359 = vld [vmem:[%s245] sm:$0xff]
      %v360 = vld [vmem:[%s245 + $0x8] sm:$0xff]
      %v361 = vld [vmem:[%s245 + $0x10] sm:$0xff]
      %v362 = vld [vmem:[%s245 + $0x18] sm:$0xff]
      %v363 = vld [vmem:[%s245 + $0x20] sm:$0xff]
      %v364 = vld [vmem:[%s245 + $0x28] sm:$0xff]
      %v365 = vld [vmem:[%s245 + $0x30] sm:$0xff]
      %v366 = vld [vmem:[%s245 + $0x38] sm:$0xff]
      %v367 = vld [vmem:[%s245 + $0x40] sm:$0xff]
      %v368 = vld [vmem:[%s245 + $0x48] sm:$0xff]
      %v369 = vld [vmem:[%s245 + $0x50] sm:$0xff]
      %v370 = vld [vmem:[%s245 + $0x58] sm:$0xff]
      %v371 = vld [vmem:[%s245 + $0x60] sm:$0xff]
      %v372 = vld [vmem:[%s245 + $0x68] sm:$0xff]
      %v373 = vld [vmem:[%s245 + $0x70] sm:$0xff]
      %v374 = vld [vmem:[%s245 + $0x78] sm:$0xff]
      %375 = vmatprep.subr.mxu0 0.0
      %376 = vmatpush1.msra.mxu0 %v359
      %377 = vmatprep.subr.mxu0 0.0
      %378 = vmatpush1.msra.mxu0 %v360
      %379 = vmatprep.subr.mxu0 0.0
      %380 = vmatpush1.msra.mxu0 %v361
      %381 = vmatprep.subr.mxu0 0.0
      %382 = vmatpush1.msra.mxu0 %v362
      %383 = vmatprep.subr.mxu0 0.0
      %384 = vmatpush1.msra.mxu0 %v363
      %385 = vmatprep.subr.mxu0 0.0
      %386 = vmatpush1.msra.mxu0 %v364
      %387 = vmatprep.subr.mxu0 0.0
      %388 = vmatpush1.msra.mxu0 %v365
      %389 = vmatprep.subr.mxu0 0.0
      %390 = vmatpush1.msra.mxu0 %v366
      %391 = vmatprep.subr.mxu0 0.0
      %392 = vmatpush1.msra.mxu0 %v367
      %393 = vmatprep.subr.mxu0 0.0
      %394 = vmatpush1.msra.mxu0 %v368
      %395 = vmatprep.subr.mxu0 0.0
      %396 = vmatpush1.msra.mxu0 %v369
      %397 = vmatprep.subr.mxu0 0.0
      %398 = vmatpush1.msra.mxu0 %v370
      %399 = vmatprep.subr.mxu0 0.0
      %400 = vmatpush1.msra.mxu0 %v371
      %401 = vmatprep.subr.mxu0 0.0
      %402 = vmatpush1.msra.mxu0 %v372
      %403 = vmatprep.subr.mxu0 0.0
      %404 = vmatpush1.msra.mxu0 %v373
      %405 = vmatprep.subr.mxu0 0.0
      %406 = vmatpush1.msra.mxu0 %v374
      %407 = vmatprep.subr.mxu0 0.0
      %408 = vmatpush1.msra.mxu0 0.0
      %409 = vmatprep.subr.mxu0 0.0
      %410 = vmatpush1.msra.mxu0 0.0
      %411 = vmatprep.subr.mxu0 0.0
      %412 = vmatpush1.msra.mxu0 0.0
      %413 = vmatprep.subr.mxu0 0.0
      %414 = vmatpush1.msra.mxu0 0.0
      %415 = vmatprep.subr.mxu0 0.0
      %416 = vmatpush1.msra.mxu0 0.0
      %417 = vmatprep.subr.mxu0 0.0
      %418 = vmatpush1.msra.mxu0 0.0
      %419 = vmatprep.subr.mxu0 0.0
      %420 = vmatpush1.msra.mxu0 0.0
      %421 = vmatprep.subr.mxu0 0.0
      %422 = vmatpush1.msra.mxu0 0.0
      %423 = vmatprep.subr.mxu0 0.0
      %424 = vmatpush1.msra.mxu0 0.0
      %425 = vmatprep.subr.mxu0 0.0
      %426 = vmatpush1.msra.mxu0 0.0
      %427 = vmatprep.subr.mxu0 0.0
      %428 = vmatpush1.msra.mxu0 0.0
      %429 = vmatprep.subr.mxu0 0.0
      %430 = vmatpush1.msra.mxu0 0.0
      %431 = vmatprep.subr.mxu0 0.0
      %432 = vmatpush1.msra.mxu0 0.0
      %433 = vmatprep.subr.mxu0 0.0
      %434 = vmatpush1.msra.mxu0 0.0
      %435 = vmatprep.subr.mxu0 0.0
      %436 = vmatpush1.msra.mxu0 0.0
      %437 = vmatprep.subr.mxu0 0.0
      %438 = vmatpush1.msra.mxu0 0.0
      %439 = vmatprep.mubr.f32.mxu0 0.0
      %440 = vmatmul.mubr.f32.gmra.mrb[0].mxu0 %v327
      %v441 = vpop.f32.mrb[0].mxu0
      %v442 = vadd.f32 0.0, %v441
      %v443 = vpop.f32.mrb[0].mxu0
      %444 = vmatprep.mubr.f32.mxu0 0.0
      %445 = vmatmul.mubr.f32.gmra.mrb[0].mxu0 %v328
      %v446 = vpop.f32.mrb[0].mxu0
      %v447 = vadd.f32 0.0, %v446
      %v448 = vpop.f32.mrb[0].mxu0
      %449 = vmatprep.mubr.f32.mxu0 0.0
      %450 = vmatmul.mubr.f32.gmra.mrb[0].mxu0 %v329
      %v451 = vpop.f32.mrb[0].mxu0
      %v452 = vadd.f32 0.0, %v451
      %v453 = vpop.f32.mrb[0].mxu0
      %454 = vmatprep.mubr.f32.mxu0 0.0
      %455 = vmatmul.mubr.f32.gmra.mrb[0].mxu0 %v330
      %v456 = vpop.f32.mrb[0].mxu0
      %v457 = vadd.f32 0.0, %v456
      %v458 = vpop.f32.mrb[0].mxu0
      %459 = vmatprep.mubr.f32.mxu0 0.0
      %460 = vmatmul.mubr.f32.gmra.mrb[0].mxu0 %v331
      %v461 = vpop.f32.mrb[0].mxu0
      %v462 = vadd.f32 0.0, %v461
      %v463 = vpop.f32.mrb[0].mxu0
      %464 = vmatprep.mubr.f32.mxu0 0.0
      %465 = vmatmul.mubr.f32.gmra.mrb[0].mxu0 %v332
      %v466 = vpop.f32.mrb[0].mxu0
      %v467 = vadd.f32 0.0, %v466
      %v468 = vpop.f32.mrb[0].mxu0
      %469 = vmatprep.mubr.f32.mxu0 0.0
      %470 = vmatmul.mubr.f32.gmra.mrb[0].mxu0 %v333
      %v471 = vpop.f32.mrb[0].mxu0
      %v472 = vadd.f32 0.0, %v471
      %v473 = vpop.f32.mrb[0].mxu0
      %474 = vmatprep.mubr.f32.mxu0 0.0
      %475 = vmatmul.mubr.f32.gmra.mrb[0].mxu0 %v334
      %v476 = vpop.f32.mrb[0].mxu0
      %v477 = vadd.f32 0.0, %v476
      %v478 = vpop.f32.mrb[0].mxu0
      %479 = vmatprep.mubr.f32.mxu0 0.0
      %480 = vmatmul.mubr.f32.gmra.mrb[0].mxu0 %v335
      %v481 = vpop.f32.mrb[0].mxu0
      %v482 = vadd.f32 0.0, %v481
      %v483 = vpop.f32.mrb[0].mxu0
      %484 = vmatprep.mubr.f32.mxu0 0.0
      %485 = vmatmul.mubr.f32.gmra.mrb[0].mxu0 %v336
      %v486 = vpop.f32.mrb[0].mxu0
      %v487 = vadd.f32 0.0, %v486
      %v488 = vpop.f32.mrb[0].mxu0
      %489 = vmatprep.mubr.f32.mxu0 0.0
      %490 = vmatmul.mubr.f32.gmra.mrb[0].mxu0 %v337
      %v491 = vpop.f32.mrb[0].mxu0
      %v492 = vadd.f32 0.0, %v491
      %v493 = vpop.f32.mrb[0].mxu0
      %494 = vmatprep.mubr.f32.mxu0 0.0
      %495 = vmatmul.mubr.f32.gmra.mrb[0].mxu0 %v338
      %v496 = vpop.f32.mrb[0].mxu0
      %v497 = vadd.f32 0.0, %v496
      %v498 = vpop.f32.mrb[0].mxu0
      %499 = vmatprep.mubr.f32.mxu0 0.0
      %500 = vmatmul.mubr.f32.gmra.mrb[0].mxu0 %v339
      %v501 = vpop.f32.mrb[0].mxu0
      %v502 = vadd.f32 0.0, %v501
      %v503 = vpop.f32.mrb[0].mxu0
      %504 = vmatprep.mubr.f32.mxu0 0.0
      %505 = vmatmul.mubr.f32.gmra.mrb[0].mxu0 %v340
      %v506 = vpop.f32.mrb[0].mxu0
      %v507 = vadd.f32 0.0, %v506
      %v508 = vpop.f32.mrb[0].mxu0
      %509 = vmatprep.mubr.f32.mxu0 0.0
      %510 = vmatmul.mubr.f32.gmra.mrb[0].mxu0 %v341
      %v511 = vpop.f32.mrb[0].mxu0
      %v512 = vadd.f32 0.0, %v511
      %v513 = vpop.f32.mrb[0].mxu0
      %514 = vmatprep.mubr.f32.mxu0 0.0
      %515 = vmatmul.mubr.f32.gmra.mrb[0].mxu0 %v342
      %v516 = vpop.f32.mrb[0].mxu0
      %v517 = vadd.f32 0.0, %v516
      %v518 = vpop.f32.mrb[0].mxu0
      %519 = vmatprep.mubr.f32.mxu0 0.0
      %520 = vmatmul.mubr.f32.gmra.mrb[0].mxu0 %v343
      %v521 = vpop.f32.mrb[0].mxu0
      %v522 = vadd.f32 0.0, %v521
      %v523 = vpop.f32.mrb[0].mxu0
      %524 = vmatprep.mubr.f32.mxu0 0.0
      %525 = vmatmul.mubr.f32.gmra.mrb[0].mxu0 %v344
      %v526 = vpop.f32.mrb[0].mxu0
      %v527 = vadd.f32 0.0, %v526
      %v528 = vpop.f32.mrb[0].mxu0
      %529 = vmatprep.mubr.f32.mxu0 0.0
      %530 = vmatmul.mubr.f32.gmra.mrb[0].mxu0 %v345
      %v531 = vpop.f32.mrb[0].mxu0
      %v532 = vadd.f32 0.0, %v531
      %v533 = vpop.f32.mrb[0].mxu0
      %534 = vmatprep.mubr.f32.mxu0 0.0
      %535 = vmatmul.mubr.f32.gmra.mrb[0].mxu0 %v346
      %v536 = vpop.f32.mrb[0].mxu0
      %v537 = vadd.f32 0.0, %v536
      %v538 = vpop.f32.mrb[0].mxu0
      %539 = vmatprep.mubr.f32.mxu0 0.0
      %540 = vmatmul.mubr.f32.gmra.mrb[0].mxu0 %v347
      %v541 = vpop.f32.mrb[0].mxu0
      %v542 = vadd.f32 0.0, %v541
      %v543 = vpop.f32.mrb[0].mxu0
      %544 = vmatprep.mubr.f32.mxu0 0.0
      %545 = vmatmul.mubr.f32.gmra.mrb[0].mxu0 %v348
      %v546 = vpop.f32.mrb[0].mxu0
      %v547 = vadd.f32 0.0, %v546
      %v548 = vpop.f32.mrb[0].mxu0
      %549 = vmatprep.mubr.f32.mxu0 0.0
      %550 = vmatmul.mubr.f32.gmra.mrb[0].mxu0 %v349
      %v551 = vpop.f32.mrb[0].mxu0
      %v552 = vadd.f32 0.0, %v551
      %v553 = vpop.f32.mrb[0].mxu0
      %554 = vmatprep.mubr.f32.mxu0 0.0
      %555 = vmatmul.mubr.f32.gmra.mrb[0].mxu0 %v350
      %v556 = vpop.f32.mrb[0].mxu0
      %v557 = vadd.f32 0.0, %v556
      %v558 = vpop.f32.mrb[0].mxu0
      %559 = vmatprep.mubr.f32.mxu0 0.0
      %560 = vmatmul.mubr.f32.gmra.mrb[0].mxu0 %v351
      %v561 = vpop.f32.mrb[0].mxu0
      %v562 = vadd.f32 0.0, %v561
      %v563 = vpop.f32.mrb[0].mxu0
      %564 = vmatprep.mubr.f32.mxu0 0.0
      %565 = vmatmul.mubr.f32.gmra.mrb[0].mxu0 %v352
      %v566 = vpop.f32.mrb[0].mxu0
      %v567 = vadd.f32 0.0, %v566
      %v568 = vpop.f32.mrb[0].mxu0
      %569 = vmatprep.mubr.f32.mxu0 0.0
      %570 = vmatmul.mubr.f32.gmra.mrb[0].mxu0 %v353
      %v571 = vpop.f32.mrb[0].mxu0
      %v572 = vadd.f32 0.0, %v571
      %v573 = vpop.f32.mrb[0].mxu0
      %574 = vmatprep.mubr.f32.mxu0 0.0
      %575 = vmatmul.mubr.f32.gmra.mrb[0].mxu0 %v354
      %v576 = vpop.f32.mrb[0].mxu0
      %v577 = vadd.f32 0.0, %v576
      %v578 = vpop.f32.mrb[0].mxu0
      %579 = vmatprep.mubr.f32.mxu0 0.0
      %580 = vmatmul.mubr.f32.gmra.mrb[0].mxu0 %v355
      %v581 = vpop.f32.mrb[0].mxu0
      %v582 = vadd.f32 0.0, %v581
      %v583 = vpop.f32.mrb[0].mxu0
      %584 = vmatprep.mubr.f32.mxu0 0.0
      %585 = vmatmul.mubr.f32.gmra.mrb[0].mxu0 %v356
      %v586 = vpop.f32.mrb[0].mxu0
      %v587 = vadd.f32 0.0, %v586
      %v588 = vpop.f32.mrb[0].mxu0
      %589 = vmatprep.mubr.f32.mxu0 0.0
      %590 = vmatmul.mubr.f32.gmra.mrb[0].mxu0 %v357
      %v591 = vpop.f32.mrb[0].mxu0
      %v592 = vadd.f32 0.0, %v591
      %v593 = vpop.f32.mrb[0].mxu0
      %594 = vmatprep.mubr.f32.mxu0 0.0
      %595 = vmatmul.mubr.f32.gmra.mrb[0].mxu0 %v358
      %v596 = vpop.f32.mrb[0].mxu0
      %v597 = vadd.f32 0.0, %v596
      %v598 = vpop.f32.mrb[0].mxu0
      %599 = vdwg.mxu0
      %v600 = vadd.f32 %v295, %v442
      %v601 = vadd.f32 %v296, %v447
      %v602 = vadd.f32 %v297, %v452
      %v603 = vadd.f32 %v298, %v457
      %v604 = vadd.f32 %v299, %v462
      %v605 = vadd.f32 %v300, %v467
      %v606 = vadd.f32 %v301, %v472
      %v607 = vadd.f32 %v302, %v477
      %v608 = vadd.f32 %v303, %v482
      %v609 = vadd.f32 %v304, %v487
      %v610 = vadd.f32 %v305, %v492
      %v611 = vadd.f32 %v306, %v497
      %v612 = vadd.f32 %v307, %v502
      %v613 = vadd.f32 %v308, %v507
      %v614 = vadd.f32 %v309, %v512
      %v615 = vadd.f32 %v310, %v517
      %v616 = vadd.f32 %v311, %v522
      %v617 = vadd.f32 %v312, %v527
      %v618 = vadd.f32 %v313, %v532
      %v619 = vadd.f32 %v314, %v537
      %v620 = vadd.f32 %v315, %v542
      %v621 = vadd.f32 %v316, %v547
      %v622 = vadd.f32 %v317, %v552
      %v623 = vadd.f32 %v318, %v557
      %v624 = vadd.f32 %v319, %v562
      %v625 = vadd.f32 %v320, %v567
      %v626 = vadd.f32 %v321, %v572
      %v627 = vadd.f32 %v322, %v577
      %v628 = vadd.f32 %v323, %v582
      %v629 = vadd.f32 %v324, %v587
      %v630 = vadd.f32 %v325, %v592
      %v631 = vadd.f32 %v326, %v597
      %632 = vst [vmem:[#allocation2] sm:$0xff] %v600
      %633 = vst [vmem:[#allocation2 + $0x8] sm:$0xff] %v601
      %634 = vst [vmem:[#allocation2 + $0x10] sm:$0xff] %v602
      %635 = vst [vmem:[#allocation2 + $0x18] sm:$0xff] %v603
      %636 = vst [vmem:[#allocation2 + $0x20] sm:$0xff] %v604
      %637 = vst [vmem:[#allocation2 + $0x28] sm:$0xff] %v605
      %638 = vst [vmem:[#allocation2 + $0x30] sm:$0xff] %v606
      %639 = vst [vmem:[#allocation2 + $0x38] sm:$0xff] %v607
      %640 = vst [vmem:[#allocation2 + $0x40] sm:$0xff] %v608
      %641 = vst [vmem:[#allocation2 + $0x48] sm:$0xff] %v609
      %642 = vst [vmem:[#allocation2 + $0x50] sm:$0xff] %v610
      %643 = vst [vmem:[#allocation2 + $0x58] sm:$0xff] %v611
      %644 = vst [vmem:[#allocation2 + $0x60] sm:$0xff] %v612
      %645 = vst [vmem:[#allocation2 + $0x68] sm:$0xff] %v613
      %646 = vst [vmem:[#allocation2 + $0x70] sm:$0xff] %v614
      %647 = vst [vmem:[#allocation2 + $0x78] sm:$0xff] %v615
      %648 = vst [vmem:[#allocation2 + $0x80] sm:$0xff] %v616
      %649 = vst [vmem:[#allocation2 + $0x88] sm:$0xff] %v617
      %650 = vst [vmem:[#allocation2 + $0x90] sm:$0xff] %v618
      %651 = vst [vmem:[#allocation2 + $0x98] sm:$0xff] %v619
      %652 = vst [vmem:[#allocation2 + $0xa0] sm:$0xff] %v620
      %653 = vst [vmem:[#allocation2 + $0xa8] sm:$0xff] %v621
      %654 = vst [vmem:[#allocation2 + $0xb0] sm:$0xff] %v622
      %655 = vst [vmem:[#allocation2 + $0xb8] sm:$0xff] %v623
      %656 = vst [vmem:[#allocation2 + $0xc0] sm:$0xff] %v624
      %657 = vst [vmem:[#allocation2 + $0xc8] sm:$0xff] %v625
      %658 = vst [vmem:[#allocation2 + $0xd0] sm:$0xff] %v626
      %659 = vst [vmem:[#allocation2 + $0xd8] sm:$0xff] %v627
      %660 = vst [vmem:[#allocation2 + $0xe0] sm:$0xff] %v628
      %661 = vst [vmem:[#allocation2 + $0xe8] sm:$0xff] %v629
      %662 = vst [vmem:[#allocation2 + $0xf0] sm:$0xff] %v630
      %663 = vst [vmem:[#allocation2 + $0xf8] sm:$0xff] %v631
      // Predicated region
      $region37: #{styled_conv_block_forward.6} parent=31 // pred_check
        %p664 = pneg %p259
      $region38: #{styled_conv_block_forward.6} parent=31 // pred_check_branch
        %666 = sbr.rel (%p664) target = $region40
      $region39: #{styled_conv_block_forward.6} parent=31 // pred_region
        %v667 = vld [vmem:[#allocation2] sm:$0xff]
        %v668 = vld [vmem:[#allocation2 + $0x8] sm:$0xff]
        %v669 = vld [vmem:[#allocation2 + $0x10] sm:$0xff]
        %v670 = vld [vmem:[#allocation2 + $0x18] sm:$0xff]
        %v671 = vld [vmem:[#allocation2 + $0x20] sm:$0xff]
        %v672 = vld [vmem:[#allocation2 + $0x28] sm:$0xff]
        %v673 = vld [vmem:[#allocation2 + $0x30] sm:$0xff]
        %v674 = vld [vmem:[#allocation2 + $0x38] sm:$0xff]
        %v675 = vld [vmem:[#allocation2 + $0x40] sm:$0xff]
        %v676 = vld [vmem:[#allocation2 + $0x48] sm:$0xff]
        %v677 = vld [vmem:[#allocation2 + $0x50] sm:$0xff]
        %v678 = vld [vmem:[#allocation2 + $0x58] sm:$0xff]
        %v679 = vld [vmem:[#allocation2 + $0x60] sm:$0xff]
        %v680 = vld [vmem:[#allocation2 + $0x68] sm:$0xff]
        %v681 = vld [vmem:[#allocation2 + $0x70] sm:$0xff]
        %v682 = vld [vmem:[#allocation2 + $0x78] sm:$0xff]
        %v683 = vld [vmem:[#allocation2 + $0x80] sm:$0xff]
        %v684 = vld [vmem:[#allocation2 + $0x88] sm:$0xff]
        %v685 = vld [vmem:[#allocation2 + $0x90] sm:$0xff]
        %v686 = vld [vmem:[#allocation2 + $0x98] sm:$0xff]
        %v687 = vld [vmem:[#allocation2 + $0xa0] sm:$0xff]
        %v688 = vld [vmem:[#allocation2 + $0xa8] sm:$0xff]
        %v689 = vld [vmem:[#allocation2 + $0xb0] sm:$0xff]
        %v690 = vld [vmem:[#allocation2 + $0xb8] sm:$0xff]
        %v691 = vld [vmem:[#allocation2 + $0xc0] sm:$0xff]
        %v692 = vld [vmem:[#allocation2 + $0xc8] sm:$0xff]
        %v693 = vld [vmem:[#allocation2 + $0xd0] sm:$0xff]
        %v694 = vld [vmem:[#allocation2 + $0xd8] sm:$0xff]
        %v695 = vld [vmem:[#allocation2 + $0xe0] sm:$0xff]
        %v696 = vld [vmem:[#allocation2 + $0xe8] sm:$0xff]
        %v697 = vld [vmem:[#allocation2 + $0xf0] sm:$0xff]
        %v698 = vld [vmem:[#allocation2 + $0xf8] sm:$0xff]
        %v699 = vld [vmem:[%s249] sm:$0x1]
        %v701 = vlaneseq
        %v702 = vshrl.u32 %v701, 7
        %v703 = vsub.s32 0, %v702
        %v704 = vrot.slane %v699, %v703
        %v706 = vadd.f32 %v667, %v704
        %v707 = vadd.f32 %v668, %v704
        %v708 = vadd.f32 %v669, %v704
        %v709 = vadd.f32 %v670, %v704
        %v710 = vadd.f32 %v671, %v704
        %v711 = vadd.f32 %v672, %v704
        %v712 = vadd.f32 %v673, %v704
        %v713 = vadd.f32 %v674, %v704
        %v714 = vadd.f32 %v675, %v704
        %v715 = vadd.f32 %v676, %v704
        %v716 = vadd.f32 %v677, %v704
        %v717 = vadd.f32 %v678, %v704
        %v718 = vadd.f32 %v679, %v704
        %v719 = vadd.f32 %v680, %v704
        %v720 = vadd.f32 %v681, %v704
        %v721 = vadd.f32 %v682, %v704
        %v722 = vadd.f32 %v683, %v704
        %v723 = vadd.f32 %v684, %v704
        %v724 = vadd.f32 %v685, %v704
        %v725 = vadd.f32 %v686, %v704
        %v726 = vadd.f32 %v687, %v704
        %v727 = vadd.f32 %v688, %v704
        %v728 = vadd.f32 %v689, %v704
        %v729 = vadd.f32 %v690, %v704
        %v730 = vadd.f32 %v691, %v704
        %v731 = vadd.f32 %v692, %v704
        %v732 = vadd.f32 %v693, %v704
        %v733 = vadd.f32 %v694, %v704
        %v734 = vadd.f32 %v695, %v704
        %v735 = vadd.f32 %v696, %v704
        %v736 = vadd.f32 %v697, %v704
        %v737 = vadd.f32 %v698, %v704
        %738 = vst [vmem:[%s257] sm:$0xff] %v706
        %739 = vst [vmem:[%s257 + $0x8] sm:$0xff] %v707
        %740 = vst [vmem:[%s257 + $0x10] sm:$0xff] %v708
        %741 = vst [vmem:[%s257 + $0x18] sm:$0xff] %v709
        %742 = vst [vmem:[%s257 + $0x20] sm:$0xff] %v710
        %743 = vst [vmem:[%s257 + $0x28] sm:$0xff] %v711
        %744 = vst [vmem:[%s257 + $0x30] sm:$0xff] %v712
        %745 = vst [vmem:[%s257 + $0x38] sm:$0xff] %v713
        %746 = vst [vmem:[%s257 + $0x40] sm:$0xff] %v714
        %747 = vst [vmem:[%s257 + $0x48] sm:$0xff] %v715
        %748 = vst [vmem:[%s257 + $0x50] sm:$0xff] %v716
        %749 = vst [vmem:[%s257 + $0x58] sm:$0xff] %v717
        %750 = vst [vmem:[%s257 + $0x60] sm:$0xff] %v718
        %751 = vst [vmem:[%s257 + $0x68] sm:$0xff] %v719
        %752 = vst [vmem:[%s257 + $0x70] sm:$0xff] %v720
        %753 = vst [vmem:[%s257 + $0x78] sm:$0xff] %v721
        %754 = vst [vmem:[%s257 + $0x80] sm:$0xff] %v722
        %755 = vst [vmem:[%s257 + $0x88] sm:$0xff] %v723
        %756 = vst [vmem:[%s257 + $0x90] sm:$0xff] %v724
        %757 = vst [vmem:[%s257 + $0x98] sm:$0xff] %v725
        %758 = vst [vmem:[%s257 + $0xa0] sm:$0xff] %v726
        %759 = vst [vmem:[%s257 + $0xa8] sm:$0xff] %v727
        %760 = vst [vmem:[%s257 + $0xb0] sm:$0xff] %v728
        %761 = vst [vmem:[%s257 + $0xb8] sm:$0xff] %v729
        %762 = vst [vmem:[%s257 + $0xc0] sm:$0xff] %v730
        %763 = vst [vmem:[%s257 + $0xc8] sm:$0xff] %v731
        %764 = vst [vmem:[%s257 + $0xd0] sm:$0xff] %v732
        %765 = vst [vmem:[%s257 + $0xd8] sm:$0xff] %v733
        %766 = vst [vmem:[%s257 + $0xe0] sm:$0xff] %v734
        %767 = vst [vmem:[%s257 + $0xe8] sm:$0xff] %v735
        %768 = vst [vmem:[%s257 + $0xf0] sm:$0xff] %v736
        %769 = vst [vmem:[%s257 + $0xf8] sm:$0xff] %v737
      $region40: #{styled_conv_block_forward.6} parent=31 // pred_fallthru
        _
      %s770 = smul.u32 32, %s19
      %p771 = scmp.lt.s32.totalorder %s770, 127
      %s772 = scalar_select %p771, %s770, 127
      %p773 = scmp.lt.s32.totalorder %s20, 0
      %s774 = scalar_select %p773, %s20, 0
      %s775 = sadd.s32 %s774, %s772
      %s776 = smul.addr %s775, 8
      %s777 = scalar_lea.vmem %s3, %s776
      // Predicated region
      $region41: #{styled_conv_block_forward.6} parent=31 // pred_check
        %p778 = pneg %p135
      $region42: #{styled_conv_block_forward.6} parent=31 // pred_check_branch
        %780 = sbr.rel (%p778) target = $region44
      $region43: #{styled_conv_block_forward.6} parent=31 // pred_region
        %s781 = smul.u32 32, %s19
      $region44: #{styled_conv_block_forward.6} parent=31 // pred_fallthru
        _
    $region32: #{styled_conv_block_forward.6} parent=5 // pred_fallthru
      _
    %p782 = scmp.le.s32.totalorder 2, %s9
    // Predicated region
    $region45: #{styled_conv_block_forward.6} parent=5 // pred_check
      %p783 = pneg %p782
    $region46: #{styled_conv_block_forward.6} parent=5 // pred_check_branch
      %785 = sbr.rel (%p783) target = $region48
    $region47: #{styled_conv_block_forward.6} parent=5 // pred_region
      %s786 = ssub.s32 %s9, 2
      // Predicated region
      $region49: #{styled_conv_block_forward.6} parent=47 // pred_check
        %p787 = pneg %p141
      $region50: #{styled_conv_block_forward.6} parent=47 // pred_check_branch
        %789 = sbr.rel (%p787) target = $region52
      $region51: #{styled_conv_block_forward.6} parent=47 // pred_region
        %s790 = smul.u32 32, %s22
        %p791 = scmp.lt.s32.totalorder %s790, 127
        %s792 = scalar_select %p791, %s790, 127
        %p793 = scmp.lt.s32.totalorder %s23, 0
        %s794 = scalar_select %p793, %s23, 0
        %s795 = sadd.s32 %s794, %s792
        %s796 = smul.addr %s795, 8
        %s797 = scalar_lea.vmem %s3, %s796
      $region52: #{styled_conv_block_forward.6} parent=47 // pred_fallthru
        _
    $region48: #{styled_conv_block_forward.6} parent=5 // pred_fallthru
      _
  $region6: #{styled_conv_block_forward.6} parent=0 // loop_footer
    %s13 = sadd.s32 1, %s9
  $region7: #{styled_conv_block_forward.6} parent=0 // loop_footer_branch
    %8 = sbr.rel target = $region3
  $region8: #{styled_conv_block_forward.6} parent=0 // loop_exit
    _

// kernel: styled_conv_block_forward.8
$region0: #{styled_conv_block_forward.8}
  #allocation0 [shape = 'u32[]', space=smem, size = 0x4, offset = 0x4, fixed_abs, tag = 'smem constant byte address 0x4 - core index']
  #allocation1 [shape = 'u32[144,128]{1,0:T(1,128)}', space=vmem, size = 0x12000, scoped, tag = 'internal scratch']
  %s0 = inlined_call_operand.vmem [shape: f32[2,512,8], index: 0, kind: input, shape index: {}]
  %s1 = inlined_call_operand.vmem [shape: f32[2,512,1], index: 1, kind: input, shape index: {}]
  %s2 = inlined_call_operand.vmem [shape: f32[1,1,8], index: 2, kind: input, shape index: {}]
  %s3 = inlined_call_operand.vmem [shape: f32[2,1,8], index: 3, kind: input, shape index: {}]
  %s4 = inlined_call_operand.vmem [shape: f32[2,1,8], index: 4, kind: input, shape index: {}]
  %s5 = inlined_call_operand.vmem [shape: f32[2,512,8], index: 5, kind: output, shape index: {}]
  %s6 = sld [smem:[#allocation0]]
  $region53: #{styled_conv_block_forward.8} parent=0
    _
  %s8 = ssub.s32 1, %s6
  %s9 = scalar_select 0, %s8, %s6
  loop: start=0, step=1, limit=4
  $region2: #{styled_conv_block_forward.8} parent=0 // loop_pre_header
    _
  $region3: #{styled_conv_block_forward.8} parent=0 // loop_header
    %s11 = sphi 0, %s15
    %p12 = scmp.ge.s32.totalorder %s11, 4
    %s21 = sphi 0, %s23
    %s24 = sphi 0, %s21
    %s25 = sphi 0, %s24
    %s41 = sphi 0, %s25
    %s47 = sphi 0, %s49
    %s50 = sphi 0, %s47
    %s51 = sphi 0, %s50
    %s67 = sphi 0, %s51
    %s71 = sphi 0, %s71
    %s73 = sphi 0, %s71
    %s74 = sphi 0, %s73
    %s88 = sphi 0, %s74
    %s94 = sphi 0, %s96
    %s97 = sphi 0, %s94
    %s98 = sphi 0, %s97
    %s114 = sphi 0, %s98
    %s120 = sphi 0, %s122
    %s123 = sphi 0, %s120
    %s124 = sphi 0, %s123
    %s140 = sphi 0, %s124
    %s146 = sphi 0, %s148
    %s149 = sphi 0, %s146
    %s150 = sphi 0, %s149
    %s166 = sphi 0, %s150
  $region4: #{styled_conv_block_forward.8} parent=0 // loop_header_branch
    %14 = sbr.rel (%p12) target = $region8
  $region5: #{styled_conv_block_forward.8} parent=0 // loop_body
    %s16 = ssub.s32 %s11, 1
    %s17 = ssub.s32 %s11, 2
    %s18 = sadd.s32 %s11, 1
    %s19 = ssub.s32 %s11, %s18
    %p20 = scmp.eq.s32.totalorder %s19, 0
    %s22 = sadd.s32 %s21, 1
    %s23 = scalar_select %p20, %s21, %s22
    %p26 = pneg %p20
    %p27 = scmp.eq.s32.totalorder %s11, 1
    %p28 = por %p26, %p27
    %p29 = scmp.ne.s32.totalorder %s21, %s24
    %p30 = scmp.eq.s32.totalorder %s11, 0
    %p31 = por %p29, %p30
    %p32 = scmp.ne.s32.totalorder %s21, %s24
    %p33 = scmp.eq.s32.totalorder %s16, 1
    %p34 = por %p32, %p33
    %p35 = scmp.ne.s32.totalorder %s24, %s25
    %p36 = scmp.eq.s32.totalorder %s16, 0
    %p37 = por %p35, %p36
    %p38 = scmp.ne.s32.totalorder %s24, %s25
    %p39 = scmp.eq.s32.totalorder %s17, 1
    %p40 = por %p38, %p39
    %p42 = scmp.ne.s32.totalorder %s25, %s41
    %p43 = scmp.eq.s32.totalorder %s17, 0
    %p44 = por %p42, %p43
    %s45 = ssub.s32 %s11, %s18
    %p46 = scmp.eq.s32.totalorder %s45, 0
    %s48 = sadd.s32 %s47, 1
    %s49 = scalar_select %p46, %s47, %s48
    %p52 = pneg %p46
    %p53 = scmp.eq.s32.totalorder %s11, 1
    %p54 = por %p52, %p53
    %p55 = scmp.ne.s32.totalorder %s47, %s50
    %p56 = scmp.eq.s32.totalorder %s11, 0
    %p57 = por %p55, %p56
    %p58 = scmp.ne.s32.totalorder %s47, %s50
    %p59 = scmp.eq.s32.totalorder %s16, 1
    %p60 = por %p58, %p59
    %p61 = scmp.ne.s32.totalorder %s50, %s51
    %p62 = scmp.eq.s32.totalorder %s16, 0
    %p63 = por %p61, %p62
    %p64 = scmp.ne.s32.totalorder %s50, %s51
    %p65 = scmp.eq.s32.totalorder %s17, 1
    %p66 = por %p64, %p65
    %p68 = scmp.ne.s32.totalorder %s51, %s67
    %p69 = scmp.eq.s32.totalorder %s17, 0
    %p70 = por %p68, %p69
    %s72 = sadd.s32 %s71, 1
    %p75 = scmp.eq.s32.totalorder %s11, 1
    %p76 = scmp.ne.s32.totalorder %s71, %s73
    %p77 = scmp.eq.s32.totalorder %s11, 0
    %p78 = por %p76, %p77
    %p79 = scmp.ne.s32.totalorder %s71, %s73
    %p80 = scmp.eq.s32.totalorder %s16, 1
    %p81 = por %p79, %p80
    %p82 = scmp.ne.s32.totalorder %s73, %s74
    %p83 = scmp.eq.s32.totalorder %s16, 0
    %p84 = por %p82, %p83
    %p85 = scmp.ne.s32.totalorder %s73, %s74
    %p86 = scmp.eq.s32.totalorder %s17, 1
    %p87 = por %p85, %p86
    %p89 = scmp.ne.s32.totalorder %s74, %s88
    %p90 = scmp.eq.s32.totalorder %s17, 0
    %p91 = por %p89, %p90
    %s92 = ssub.s32 %s11, %s18
    %p93 = scmp.eq.s32.totalorder %s92, 0
    %s95 = sadd.s32 %s94, 1
    %s96 = scalar_select %p93, %s94, %s95
    %p99 = pneg %p93
    %p100 = scmp.eq.s32.totalorder %s11, 1
    %p101 = por %p99, %p100
    %p102 = scmp.ne.s32.totalorder %s94, %s97
    %p103 = scmp.eq.s32.totalorder %s11, 0
    %p104 = por %p102, %p103
    %p105 = scmp.ne.s32.totalorder %s94, %s97
    %p106 = scmp.eq.s32.totalorder %s16, 1
    %p107 = por %p105, %p106
    %p108 = scmp.ne.s32.totalorder %s97, %s98
    %p109 = scmp.eq.s32.totalorder %s16, 0
    %p110 = por %p108, %p109
    %p111 = scmp.ne.s32.totalorder %s97, %s98
    %p112 = scmp.eq.s32.totalorder %s17, 1
    %p113 = por %p111, %p112
    %p115 = scmp.ne.s32.totalorder %s98, %s114
    %p116 = scmp.eq.s32.totalorder %s17, 0
    %p117 = por %p115, %p116
    %s118 = ssub.s32 %s11, %s18
    %p119 = scmp.eq.s32.totalorder %s118, 0
    %s121 = sadd.s32 %s120, 1
    %s122 = scalar_select %p119, %s120, %s121
    %p125 = pneg %p119
    %p126 = scmp.eq.s32.totalorder %s11, 1
    %p127 = por %p125, %p126
    %p128 = scmp.ne.s32.totalorder %s120, %s123
    %p129 = scmp.eq.s32.totalorder %s11, 0
    %p130 = por %p128, %p129
    %p131 = scmp.ne.s32.totalorder %s120, %s123
    %p132 = scmp.eq.s32.totalorder %s16, 1
    %p133 = por %p131, %p132
    %p134 = scmp.ne.s32.totalorder %s123, %s124
    %p135 = scmp.eq.s32.totalorder %s16, 0
    %p136 = por %p134, %p135
    %p137 = scmp.ne.s32.totalorder %s123, %s124
    %p138 = scmp.eq.s32.totalorder %s17, 1
    %p139 = por %p137, %p138
    %p141 = scmp.ne.s32.totalorder %s124, %s140
    %p142 = scmp.eq.s32.totalorder %s17, 0
    %p143 = por %p141, %p142
    %s144 = ssub.s32 %s11, %s18
    %p145 = scmp.eq.s32.totalorder %s144, 0
    %s147 = sadd.s32 %s146, 1
    %s148 = scalar_select %p145, %s146, %s147
    %p151 = pneg %p145
    %p152 = scmp.eq.s32.totalorder %s11, 1
    %p153 = por %p151, %p152
    %p154 = scmp.ne.s32.totalorder %s146, %s149
    %p155 = scmp.eq.s32.totalorder %s11, 0
    %p156 = por %p154, %p155
    %p157 = scmp.ne.s32.totalorder %s146, %s149
    %p158 = scmp.eq.s32.totalorder %s16, 1
    %p159 = por %p157, %p158
    %p160 = scmp.ne.s32.totalorder %s149, %s150
    %p161 = scmp.eq.s32.totalorder %s16, 0
    %p162 = por %p160, %p161
    %p163 = scmp.ne.s32.totalorder %s149, %s150
    %p164 = scmp.eq.s32.totalorder %s17, 1
    %p165 = por %p163, %p164
    %p167 = scmp.ne.s32.totalorder %s150, %s166
    %p168 = scmp.eq.s32.totalorder %s17, 0
    %p169 = por %p167, %p168
    %p170 = scmp.le.s32.totalorder 1, %s11
    %p171 = scmp.lt.s32.totalorder %s11, 3
    %p172 = pnand %p170, %p171
    %p173 = pneg %p172
    // Predicated region
    $region9: #{styled_conv_block_forward.8} parent=5 // pred_check
      _
    $region10: #{styled_conv_block_forward.8} parent=5 // pred_check_branch
      %175 = sbr.rel (%p172) target = $region12
    $region11: #{styled_conv_block_forward.8} parent=5 // pred_region
      %s176 = ssub.s32 %s11, 1
      // Predicated region
      $region13: #{styled_conv_block_forward.8} parent=11 // pred_check
        %p177 = pneg %p84
      $region14: #{styled_conv_block_forward.8} parent=11 // pred_check_branch
        %179 = sbr.rel (%p177) target = $region16
      $region15: #{styled_conv_block_forward.8} parent=11 // pred_region
        _
      $region16: #{styled_conv_block_forward.8} parent=11 // pred_fallthru
        _
    $region12: #{styled_conv_block_forward.8} parent=5 // pred_fallthru
      _
    %p180 = scmp.lt.s32.totalorder %s11, 2
    // Predicated region
    $region17: #{styled_conv_block_forward.8} parent=5 // pred_check
      %p181 = pneg %p180
    $region18: #{styled_conv_block_forward.8} parent=5 // pred_check_branch
      %183 = sbr.rel (%p181) target = $region20
    $region19: #{styled_conv_block_forward.8} parent=5 // pred_region
      // Predicated region
      $region21: #{styled_conv_block_forward.8} parent=19 // pred_check
        %p184 = pneg %p31
      $region22: #{styled_conv_block_forward.8} parent=19 // pred_check_branch
        %186 = sbr.rel (%p184) target = $region24
      $region23: #{styled_conv_block_forward.8} parent=19 // pred_region
        %p187 = scmp.lt.s32.totalorder %s11, 1
        %s188 = scalar_select %p187, %s11, 1
        %s189 = smul.addr %s188, 64
        %s190 = smul.addr %s189, 8
        %s191 = scalar_lea.vmem %s0, %s190
      $region24: #{styled_conv_block_forward.8} parent=19 // pred_fallthru
        _
      // Predicated region
      $region25: #{styled_conv_block_forward.8} parent=19 // pred_check
        %p192 = pneg %p57
      $region26: #{styled_conv_block_forward.8} parent=19 // pred_check_branch
        %194 = sbr.rel (%p192) target = $region28
      $region27: #{styled_conv_block_forward.8} parent=19 // pred_region
        %p195 = scmp.lt.s32.totalorder %s11, 1
        %s196 = scalar_select %p195, %s11, 1
        %s197 = smul.addr %s196, 64
        %s198 = smul.addr %s197, 8
        %s199 = scalar_lea.vmem %s1, %s198
      $region28: #{styled_conv_block_forward.8} parent=19 // pred_fallthru
        _
      // Predicated region
      $region29: #{styled_conv_block_forward.8} parent=19 // pred_check
        %p200 = pneg %p104
      $region30: #{styled_conv_block_forward.8} parent=19 // pred_check_branch
        %202 = sbr.rel (%p200) target = $region32
      $region31: #{styled_conv_block_forward.8} parent=19 // pred_region
        %p203 = scmp.lt.s32.totalorder %s11, 1
        %s204 = scalar_select %p203, %s11, 1
        %s205 = scalar_lea.vmem %s3, %s204
      $region32: #{styled_conv_block_forward.8} parent=19 // pred_fallthru
        _
      // Predicated region
      $region33: #{styled_conv_block_forward.8} parent=19 // pred_check
        %p206 = pneg %p130
      $region34: #{styled_conv_block_forward.8} parent=19 // pred_check_branch
        %208 = sbr.rel (%p206) target = $region36
      $region35: #{styled_conv_block_forward.8} parent=19 // pred_region
        %p209 = scmp.lt.s32.totalorder %s11, 1
        %s210 = scalar_select %p209, %s11, 1
        %s211 = scalar_lea.vmem %s4, %s210
      $region36: #{styled_conv_block_forward.8} parent=19 // pred_fallthru
        _
    $region20: #{styled_conv_block_forward.8} parent=5 // pred_fallthru
      _
    %p212 = scmp.le.s32.totalorder 1, %s11
    %p213 = scmp.lt.s32.totalorder %s11, 3
    %p214 = pnand %p212, %p213
    %p215 = pneg %p214
    // Predicated region
    $region37: #{styled_conv_block_forward.8} parent=5 // pred_check
      _
    $region38: #{styled_conv_block_forward.8} parent=5 // pred_check_branch
      %217 = sbr.rel (%p214) target = $region40
    $region39: #{styled_conv_block_forward.8} parent=5 // pred_region
      %s218 = ssub.s32 %s11, 1
      %p219 = scmp.lt.s32.totalorder %s16, 1
      %s220 = scalar_select %p219, %s16, 1
      %s221 = smul.addr %s220, 64
      %s222 = smul.addr %s221, 8
      %s223 = scalar_lea.vmem %s0, %s222
      %p224 = pneg %p37
      %p225 = pneg %p34
      %p226 = scmp.lt.s32.totalorder %s16, 1
      %s227 = scalar_select %p226, %s16, 1
      %s228 = smul.addr %s227, 64
      %s229 = smul.addr %s228, 8
      %s230 = scalar_lea.vmem %s1, %s229
      %p231 = pneg %p63
      %p232 = pneg %p60
      %p233 = pneg %p84
      %p234 = pneg %p81
      %p235 = scmp.lt.s32.totalorder %s16, 1
      %s236 = scalar_select %p235, %s16, 1
      %s237 = scalar_lea.vmem %s3, %s236
      %p238 = pneg %p110
      %p239 = pneg %p107
      %p240 = scmp.lt.s32.totalorder %s16, 1
      %s241 = scalar_select %p240, %s16, 1
      %s242 = scalar_lea.vmem %s4, %s241
      %p243 = pneg %p136
      %p244 = pneg %p133
      %p245 = pneg %p162
      %p246 = pneg %p159
      %p247 = scmp.lt.s32.totalorder %s16, 1
      %s248 = scalar_select %p247, %s16, 1
      %s249 = smul.addr %s248, 64
      %s250 = smul.addr %s249, 8
      %s251 = scalar_lea.vmem %s5, %s250
      %p252 = scmp.lt.s32.totalorder %s16, 1
      %s253 = scalar_select %p252, %s16, 1
      %s254 = smul.addr %s253, 64
      %s255 = smul.addr %s254, 8
      %s256 = scalar_lea.vmem %s0, %s255
      %p257 = scmp.lt.s32.totalorder %s16, 1
      %s258 = scalar_select %p257, %s16, 1
      %s259 = smul.addr %s258, 64
      %s260 = smul.addr %s259, 8
      %s261 = scalar_lea.vmem %s1, %s260
      %p262 = scmp.lt.s32.totalorder %s16, 1
      %s263 = scalar_select %p262, %s16, 1
      %s264 = scalar_lea.vmem %s3, %s263
      %p265 = scmp.lt.s32.totalorder %s16, 1
      %s266 = scalar_select %p265, %s16, 1
      %s267 = scalar_lea.vmem %s4, %s266
      %p268 = scmp.lt.s32.totalorder %s16, 1
      %s269 = scalar_select %p268, %s16, 1
      %s270 = smul.addr %s269, 64
      %s271 = smul.addr %s270, 8
      %s272 = scalar_lea.vmem %s5, %s271
      %v273 = vld [vmem:[%s256] sm:$0xff]
      %v274 = vld [vmem:[%s256 + $0x8] sm:$0xff]
      %v275 = vld [vmem:[%s256 + $0x10] sm:$0xff]
      %v276 = vld [vmem:[%s256 + $0x18] sm:$0xff]
      %v277 = vld [vmem:[%s256 + $0x20] sm:$0xff]
      %v278 = vld [vmem:[%s256 + $0x28] sm:$0xff]
      %v279 = vld [vmem:[%s256 + $0x30] sm:$0xff]
      %v280 = vld [vmem:[%s256 + $0x38] sm:$0xff]
      %v281 = vld [vmem:[%s256 + $0x40] sm:$0xff]
      %v282 = vld [vmem:[%s256 + $0x48] sm:$0xff]
      %v283 = vld [vmem:[%s256 + $0x50] sm:$0xff]
      %v284 = vld [vmem:[%s256 + $0x58] sm:$0xff]
      %v285 = vld [vmem:[%s256 + $0x60] sm:$0xff]
      %v286 = vld [vmem:[%s256 + $0x68] sm:$0xff]
      %v287 = vld [vmem:[%s256 + $0x70] sm:$0xff]
      %v288 = vld [vmem:[%s256 + $0x78] sm:$0xff]
      %v289 = vld [vmem:[%s256 + $0x80] sm:$0xff]
      %v290 = vld [vmem:[%s256 + $0x88] sm:$0xff]
      %v291 = vld [vmem:[%s256 + $0x90] sm:$0xff]
      %v292 = vld [vmem:[%s256 + $0x98] sm:$0xff]
      %v293 = vld [vmem:[%s256 + $0xa0] sm:$0xff]
      %v294 = vld [vmem:[%s256 + $0xa8] sm:$0xff]
      %v295 = vld [vmem:[%s256 + $0xb0] sm:$0xff]
      %v296 = vld [vmem:[%s256 + $0xb8] sm:$0xff]
      %v297 = vld [vmem:[%s256 + $0xc0] sm:$0xff]
      %v298 = vld [vmem:[%s256 + $0xc8] sm:$0xff]
      %v299 = vld [vmem:[%s256 + $0xd0] sm:$0xff]
      %v300 = vld [vmem:[%s256 + $0xd8] sm:$0xff]
      %v301 = vld [vmem:[%s256 + $0xe0] sm:$0xff]
      %v302 = vld [vmem:[%s256 + $0xe8] sm:$0xff]
      %v303 = vld [vmem:[%s256 + $0xf0] sm:$0xff]
      %v304 = vld [vmem:[%s256 + $0xf8] sm:$0xff]
      %v305 = vld [vmem:[%s256 + $0x100] sm:$0xff]
      %v306 = vld [vmem:[%s256 + $0x108] sm:$0xff]
      %v307 = vld [vmem:[%s256 + $0x110] sm:$0xff]
      %v308 = vld [vmem:[%s256 + $0x118] sm:$0xff]
      %v309 = vld [vmem:[%s256 + $0x120] sm:$0xff]
      %v310 = vld [vmem:[%s256 + $0x128] sm:$0xff]
      %v311 = vld [vmem:[%s256 + $0x130] sm:$0xff]
      %v312 = vld [vmem:[%s256 + $0x138] sm:$0xff]
      %v313 = vld [vmem:[%s256 + $0x140] sm:$0xff]
      %v314 = vld [vmem:[%s256 + $0x148] sm:$0xff]
      %v315 = vld [vmem:[%s256 + $0x150] sm:$0xff]
      %v316 = vld [vmem:[%s256 + $0x158] sm:$0xff]
      %v317 = vld [vmem:[%s256 + $0x160] sm:$0xff]
      %v318 = vld [vmem:[%s256 + $0x168] sm:$0xff]
      %v319 = vld [vmem:[%s256 + $0x170] sm:$0xff]
      %v320 = vld [vmem:[%s256 + $0x178] sm:$0xff]
      %v321 = vld [vmem:[%s256 + $0x180] sm:$0xff]
      %v322 = vld [vmem:[%s256 + $0x188] sm:$0xff]
      %v323 = vld [vmem:[%s256 + $0x190] sm:$0xff]
      %v324 = vld [vmem:[%s256 + $0x198] sm:$0xff]
      %v325 = vld [vmem:[%s256 + $0x1a0] sm:$0xff]
      %v326 = vld [vmem:[%s256 + $0x1a8] sm:$0xff]
      %v327 = vld [vmem:[%s256 + $0x1b0] sm:$0xff]
      %v328 = vld [vmem:[%s256 + $0x1b8] sm:$0xff]
      %v329 = vld [vmem:[%s256 + $0x1c0] sm:$0xff]
      %v330 = vld [vmem:[%s256 + $0x1c8] sm:$0xff]
      %v331 = vld [vmem:[%s256 + $0x1d0] sm:$0xff]
      %v332 = vld [vmem:[%s256 + $0x1d8] sm:$0xff]
      %v333 = vld [vmem:[%s256 + $0x1e0] sm:$0xff]
      %v334 = vld [vmem:[%s256 + $0x1e8] sm:$0xff]
      %v335 = vld [vmem:[%s256 + $0x1f0] sm:$0xff]
      %v336 = vld [vmem:[%s256 + $0x1f8] sm:$0xff]
      %v337 = vld [vmem:[%s261] sm:$0xff]
      %v338 = vld [vmem:[%s261 + $0x8] sm:$0xff]
      %v339 = vld [vmem:[%s261 + $0x10] sm:$0xff]
      %v340 = vld [vmem:[%s261 + $0x18] sm:$0xff]
      %v341 = vld [vmem:[%s261 + $0x20] sm:$0xff]
      %v342 = vld [vmem:[%s261 + $0x28] sm:$0xff]
      %v343 = vld [vmem:[%s261 + $0x30] sm:$0xff]
      %v344 = vld [vmem:[%s261 + $0x38] sm:$0xff]
      %v345 = vld [vmem:[%s261 + $0x40] sm:$0xff]
      %v346 = vld [vmem:[%s261 + $0x48] sm:$0xff]
      %v347 = vld [vmem:[%s261 + $0x50] sm:$0xff]
      %v348 = vld [vmem:[%s261 + $0x58] sm:$0xff]
      %v349 = vld [vmem:[%s261 + $0x60] sm:$0xff]
      %v350 = vld [vmem:[%s261 + $0x68] sm:$0xff]
      %v351 = vld [vmem:[%s261 + $0x70] sm:$0xff]
      %v352 = vld [vmem:[%s261 + $0x78] sm:$0xff]
      %v353 = vld [vmem:[%s261 + $0x80] sm:$0xff]
      %v354 = vld [vmem:[%s261 + $0x88] sm:$0xff]
      %v355 = vld [vmem:[%s261 + $0x90] sm:$0xff]
      %v356 = vld [vmem:[%s261 + $0x98] sm:$0xff]
      %v357 = vld [vmem:[%s261 + $0xa0] sm:$0xff]
      %v358 = vld [vmem:[%s261 + $0xa8] sm:$0xff]
      %v359 = vld [vmem:[%s261 + $0xb0] sm:$0xff]
      %v360 = vld [vmem:[%s261 + $0xb8] sm:$0xff]
      %v361 = vld [vmem:[%s261 + $0xc0] sm:$0xff]
      %v362 = vld [vmem:[%s261 + $0xc8] sm:$0xff]
      %v363 = vld [vmem:[%s261 + $0xd0] sm:$0xff]
      %v364 = vld [vmem:[%s261 + $0xd8] sm:$0xff]
      %v365 = vld [vmem:[%s261 + $0xe0] sm:$0xff]
      %v366 = vld [vmem:[%s261 + $0xe8] sm:$0xff]
      %v367 = vld [vmem:[%s261 + $0xf0] sm:$0xff]
      %v368 = vld [vmem:[%s261 + $0xf8] sm:$0xff]
      %v369 = vld [vmem:[%s261 + $0x100] sm:$0xff]
      %v370 = vld [vmem:[%s261 + $0x108] sm:$0xff]
      %v371 = vld [vmem:[%s261 + $0x110] sm:$0xff]
      %v372 = vld [vmem:[%s261 + $0x118] sm:$0xff]
      %v373 = vld [vmem:[%s261 + $0x120] sm:$0xff]
      %v374 = vld [vmem:[%s261 + $0x128] sm:$0xff]
      %v375 = vld [vmem:[%s261 + $0x130] sm:$0xff]
      %v376 = vld [vmem:[%s261 + $0x138] sm:$0xff]
      %v377 = vld [vmem:[%s261 + $0x140] sm:$0xff]
      %v378 = vld [vmem:[%s261 + $0x148] sm:$0xff]
      %v379 = vld [vmem:[%s261 + $0x150] sm:$0xff]
      %v380 = vld [vmem:[%s261 + $0x158] sm:$0xff]
      %v381 = vld [vmem:[%s261 + $0x160] sm:$0xff]
      %v382 = vld [vmem:[%s261 + $0x168] sm:$0xff]
      %v383 = vld [vmem:[%s261 + $0x170] sm:$0xff]
      %v384 = vld [vmem:[%s261 + $0x178] sm:$0xff]
      %v385 = vld [vmem:[%s261 + $0x180] sm:$0xff]
      %v386 = vld [vmem:[%s261 + $0x188] sm:$0xff]
      %v387 = vld [vmem:[%s261 + $0x190] sm:$0xff]
      %v388 = vld [vmem:[%s261 + $0x198] sm:$0xff]
      %v389 = vld [vmem:[%s261 + $0x1a0] sm:$0xff]
      %v390 = vld [vmem:[%s261 + $0x1a8] sm:$0xff]
      %v391 = vld [vmem:[%s261 + $0x1b0] sm:$0xff]
      %v392 = vld [vmem:[%s261 + $0x1b8] sm:$0xff]
      %v393 = vld [vmem:[%s261 + $0x1c0] sm:$0xff]
      %v394 = vld [vmem:[%s261 + $0x1c8] sm:$0xff]
      %v395 = vld [vmem:[%s261 + $0x1d0] sm:$0xff]
      %v396 = vld [vmem:[%s261 + $0x1d8] sm:$0xff]
      %v397 = vld [vmem:[%s261 + $0x1e0] sm:$0xff]
      %v398 = vld [vmem:[%s261 + $0x1e8] sm:$0xff]
      %v399 = vld [vmem:[%s261 + $0x1f0] sm:$0xff]
      %v400 = vld [vmem:[%s261 + $0x1f8] sm:$0xff]
      %v401 = vld [vmem:[%s2] sm:$0x1]
      %403 = vset.pattern.permute.xlu0 0
      %404 = vperm.xlu0 %403, %v337
      %v405 = vpop.permute.xlu0 %404
      %408 = vset.pattern.permute.xlu0 0
      %409 = vperm.xlu0 %408, %v338
      %v410 = vpop.permute.xlu0 %409
      %413 = vset.pattern.permute.xlu0 0
      %414 = vperm.xlu0 %413, %v339
      %v415 = vpop.permute.xlu0 %414
      %418 = vset.pattern.permute.xlu0 0
      %419 = vperm.xlu0 %418, %v340
      %v420 = vpop.permute.xlu0 %419
      %423 = vset.pattern.permute.xlu0 0
      %424 = vperm.xlu0 %423, %v341
      %v425 = vpop.permute.xlu0 %424
      %428 = vset.pattern.permute.xlu0 0
      %429 = vperm.xlu0 %428, %v342
      %v430 = vpop.permute.xlu0 %429
      %433 = vset.pattern.permute.xlu0 0
      %434 = vperm.xlu0 %433, %v343
      %v435 = vpop.permute.xlu0 %434
      %438 = vset.pattern.permute.xlu0 0
      %439 = vperm.xlu0 %438, %v344
      %v440 = vpop.permute.xlu0 %439
      %443 = vset.pattern.permute.xlu0 0
      %444 = vperm.xlu0 %443, %v345
      %v445 = vpop.permute.xlu0 %444
      %448 = vset.pattern.permute.xlu0 0
      %449 = vperm.xlu0 %448, %v346
      %v450 = vpop.permute.xlu0 %449
      %453 = vset.pattern.permute.xlu0 0
      %454 = vperm.xlu0 %453, %v347
      %v455 = vpop.permute.xlu0 %454
      %458 = vset.pattern.permute.xlu0 0
      %459 = vperm.xlu0 %458, %v348
      %v460 = vpop.permute.xlu0 %459
      %463 = vset.pattern.permute.xlu0 0
      %464 = vperm.xlu0 %463, %v349
      %v465 = vpop.permute.xlu0 %464
      %468 = vset.pattern.permute.xlu0 0
      %469 = vperm.xlu0 %468, %v350
      %v470 = vpop.permute.xlu0 %469
      %473 = vset.pattern.permute.xlu0 0
      %474 = vperm.xlu0 %473, %v351
      %v475 = vpop.permute.xlu0 %474
      %478 = vset.pattern.permute.xlu0 0
      %479 = vperm.xlu0 %478, %v352
      %v480 = vpop.permute.xlu0 %479
      %483 = vset.pattern.permute.xlu0 0
      %484 = vperm.xlu0 %483, %v353
      %v485 = vpop.permute.xlu0 %484
      %488 = vset.pattern.permute.xlu0 0
      %489 = vperm.xlu0 %488, %v354
      %v490 = vpop.permute.xlu0 %489
      %493 = vset.pattern.permute.xlu0 0
      %494 = vperm.xlu0 %493, %v355
      %v495 = vpop.permute.xlu0 %494
      %498 = vset.pattern.permute.xlu0 0
      %499 = vperm.xlu0 %498, %v356
      %v500 = vpop.permute.xlu0 %499
      %503 = vset.pattern.permute.xlu0 0
      %504 = vperm.xlu0 %503, %v357
      %v505 = vpop.permute.xlu0 %504
      %508 = vset.pattern.permute.xlu0 0
      %509 = vperm.xlu0 %508, %v358
      %v510 = vpop.permute.xlu0 %509
      %513 = vset.pattern.permute.xlu0 0
      %514 = vperm.xlu0 %513, %v359
      %v515 = vpop.permute.xlu0 %514
      %518 = vset.pattern.permute.xlu0 0
      %519 = vperm.xlu0 %518, %v360
      %v520 = vpop.permute.xlu0 %519
      %523 = vset.pattern.permute.xlu0 0
      %524 = vperm.xlu0 %523, %v361
      %v525 = vpop.permute.xlu0 %524
      %528 = vset.pattern.permute.xlu0 0
      %529 = vperm.xlu0 %528, %v362
      %v530 = vpop.permute.xlu0 %529
      %533 = vset.pattern.permute.xlu0 0
      %534 = vperm.xlu0 %533, %v363
      %v535 = vpop.permute.xlu0 %534
      %538 = vset.pattern.permute.xlu0 0
      %539 = vperm.xlu0 %538, %v364
      %v540 = vpop.permute.xlu0 %539
      %543 = vset.pattern.permute.xlu0 0
      %544 = vperm.xlu0 %543, %v365
      %v545 = vpop.permute.xlu0 %544
      %548 = vset.pattern.permute.xlu0 0
      %549 = vperm.xlu0 %548, %v366
      %v550 = vpop.permute.xlu0 %549
      %553 = vset.pattern.permute.xlu0 0
      %554 = vperm.xlu0 %553, %v367
      %v555 = vpop.permute.xlu0 %554
      %558 = vset.pattern.permute.xlu0 0
      %559 = vperm.xlu0 %558, %v368
      %v560 = vpop.permute.xlu0 %559
      %563 = vset.pattern.permute.xlu0 0
      %564 = vperm.xlu0 %563, %v369
      %v565 = vpop.permute.xlu0 %564
      %568 = vset.pattern.permute.xlu0 0
      %569 = vperm.xlu0 %568, %v370
      %v570 = vpop.permute.xlu0 %569
      %573 = vset.pattern.permute.xlu0 0
      %574 = vperm.xlu0 %573, %v371
      %v575 = vpop.permute.xlu0 %574
      %578 = vset.pattern.permute.xlu0 0
      %579 = vperm.xlu0 %578, %v372
      %v580 = vpop.permute.xlu0 %579
      %583 = vset.pattern.permute.xlu0 0
      %584 = vperm.xlu0 %583, %v373
      %v585 = vpop.permute.xlu0 %584
      %588 = vset.pattern.permute.xlu0 0
      %589 = vperm.xlu0 %588, %v374
      %v590 = vpop.permute.xlu0 %589
      %593 = vset.pattern.permute.xlu0 0
      %594 = vperm.xlu0 %593, %v375
      %v595 = vpop.permute.xlu0 %594
      %598 = vset.pattern.permute.xlu0 0
      %599 = vperm.xlu0 %598, %v376
      %v600 = vpop.permute.xlu0 %599
      %603 = vset.pattern.permute.xlu0 0
      %604 = vperm.xlu0 %603, %v377
      %v605 = vpop.permute.xlu0 %604
      %608 = vset.pattern.permute.xlu0 0
      %609 = vperm.xlu0 %608, %v378
      %v610 = vpop.permute.xlu0 %609
      %613 = vset.pattern.permute.xlu0 0
      %614 = vperm.xlu0 %613, %v379
      %v615 = vpop.permute.xlu0 %614
      %618 = vset.pattern.permute.xlu0 0
      %619 = vperm.xlu0 %618, %v380
      %v620 = vpop.permute.xlu0 %619
      %623 = vset.pattern.permute.xlu0 0
      %624 = vperm.xlu0 %623, %v381
      %v625 = vpop.permute.xlu0 %624
      %628 = vset.pattern.permute.xlu0 0
      %629 = vperm.xlu0 %628, %v382
      %v630 = vpop.permute.xlu0 %629
      %633 = vset.pattern.permute.xlu0 0
      %634 = vperm.xlu0 %633, %v383
      %v635 = vpop.permute.xlu0 %634
      %638 = vset.pattern.permute.xlu0 0
      %639 = vperm.xlu0 %638, %v384
      %v640 = vpop.permute.xlu0 %639
      %643 = vset.pattern.permute.xlu0 0
      %644 = vperm.xlu0 %643, %v385
      %v645 = vpop.permute.xlu0 %644
      %648 = vset.pattern.permute.xlu0 0
      %649 = vperm.xlu0 %648, %v386
      %v650 = vpop.permute.xlu0 %649
      %653 = vset.pattern.permute.xlu0 0
      %654 = vperm.xlu0 %653, %v387
      %v655 = vpop.permute.xlu0 %654
      %658 = vset.pattern.permute.xlu0 0
      %659 = vperm.xlu0 %658, %v388
      %v660 = vpop.permute.xlu0 %659
      %663 = vset.pattern.permute.xlu0 0
      %664 = vperm.xlu0 %663, %v389
      %v665 = vpop.permute.xlu0 %664
      %668 = vset.pattern.permute.xlu0 0
      %669 = vperm.xlu0 %668, %v390
      %v670 = vpop.permute.xlu0 %669
      %673 = vset.pattern.permute.xlu0 0
      %674 = vperm.xlu0 %673, %v391
      %v675 = vpop.permute.xlu0 %674
      %678 = vset.pattern.permute.xlu0 0
      %679 = vperm.xlu0 %678, %v392
      %v680 = vpop.permute.xlu0 %679
      %683 = vset.pattern.permute.xlu0 0
      %684 = vperm.xlu0 %683, %v393
      %v685 = vpop.permute.xlu0 %684
      %688 = vset.pattern.permute.xlu0 0
      %689 = vperm.xlu0 %688, %v394
      %v690 = vpop.permute.xlu0 %689
      %693 = vset.pattern.permute.xlu0 0
      %694 = vperm.xlu0 %693, %v395
      %v695 = vpop.permute.xlu0 %694
      %698 = vset.pattern.permute.xlu0 0
      %699 = vperm.xlu0 %698, %v396
      %v700 = vpop.permute.xlu0 %699
      %703 = vset.pattern.permute.xlu0 0
      %704 = vperm.xlu0 %703, %v397
      %v705 = vpop.permute.xlu0 %704
      %708 = vset.pattern.permute.xlu0 0
      %709 = vperm.xlu0 %708, %v398
      %v710 = vpop.permute.xlu0 %709
      %713 = vset.pattern.permute.xlu0 0
      %714 = vperm.xlu0 %713, %v399
      %v715 = vpop.permute.xlu0 %714
      %718 = vset.pattern.permute.xlu0 0
      %719 = vperm.xlu0 %718, %v400
      %v720 = vpop.permute.xlu0 %719
      %v723 = vlaneseq
      %v724 = vshrl.u32 %v723, 7
      %v725 = vsub.s32 0, %v724
      %v726 = vrot.slane %v401, %v725
      %v728 = vmul.f32 %v405, %v726
      %v729 = vmul.f32 %v410, %v726
      %v730 = vmul.f32 %v415, %v726
      %v731 = vmul.f32 %v420, %v726
      %v732 = vmul.f32 %v425, %v726
      %v733 = vmul.f32 %v430, %v726
      %v734 = vmul.f32 %v435, %v726
      %v735 = vmul.f32 %v440, %v726
      %v736 = vmul.f32 %v445, %v726
      %v737 = vmul.f32 %v450, %v726
      %v738 = vmul.f32 %v455, %v726
      %v739 = vmul.f32 %v460, %v726
      %v740 = vmul.f32 %v465, %v726
      %v741 = vmul.f32 %v470, %v726
      %v742 = vmul.f32 %v475, %v726
      %v743 = vmul.f32 %v480, %v726
      %v744 = vmul.f32 %v485, %v726
      %v745 = vmul.f32 %v490, %v726
      %v746 = vmul.f32 %v495, %v726
      %v747 = vmul.f32 %v500, %v726
      %v748 = vmul.f32 %v505, %v726
      %v749 = vmul.f32 %v510, %v726
      %v750 = vmul.f32 %v515, %v726
      %v751 = vmul.f32 %v520, %v726
      %v752 = vmul.f32 %v525, %v726
      %v753 = vmul.f32 %v530, %v726
      %v754 = vmul.f32 %v535, %v726
      %v755 = vmul.f32 %v540, %v726
      %v756 = vmul.f32 %v545, %v726
      %v757 = vmul.f32 %v550, %v726
      %v758 = vmul.f32 %v555, %v726
      %v759 = vmul.f32 %v560, %v726
      %v760 = vmul.f32 %v565, %v726
      %v761 = vmul.f32 %v570, %v726
      %v762 = vmul.f32 %v575, %v726
      %v763 = vmul.f32 %v580, %v726
      %v764 = vmul.f32 %v585, %v726
      %v765 = vmul.f32 %v590, %v726
      %v766 = vmul.f32 %v595, %v726
      %v767 = vmul.f32 %v600, %v726
      %v768 = vmul.f32 %v605, %v726
      %v769 = vmul.f32 %v610, %v726
      %v770 = vmul.f32 %v615, %v726
      %v771 = vmul.f32 %v620, %v726
      %v772 = vmul.f32 %v625, %v726
      %v773 = vmul.f32 %v630, %v726
      %v774 = vmul.f32 %v635, %v726
      %v775 = vmul.f32 %v640, %v726
      %v776 = vmul.f32 %v645, %v726
      %v777 = vmul.f32 %v650, %v726
      %v778 = vmul.f32 %v655, %v726
      %v779 = vmul.f32 %v660, %v726
      %v780 = vmul.f32 %v665, %v726
      %v781 = vmul.f32 %v670, %v726
      %v782 = vmul.f32 %v675, %v726
      %v783 = vmul.f32 %v680, %v726
      %v784 = vmul.f32 %v685, %v726
      %v785 = vmul.f32 %v690, %v726
      %v786 = vmul.f32 %v695, %v726
      %v787 = vmul.f32 %v700, %v726
      %v788 = vmul.f32 %v705, %v726
      %v789 = vmul.f32 %v710, %v726
      %v790 = vmul.f32 %v715, %v726
      %v791 = vmul.f32 %v720, %v726
      %v792 = vadd.f32 %v273, %v728
      %v793 = vadd.f32 %v274, %v729
      %v794 = vadd.f32 %v275, %v730
      %v795 = vadd.f32 %v276, %v731
      %v796 = vadd.f32 %v277, %v732
      %v797 = vadd.f32 %v278, %v733
      %v798 = vadd.f32 %v279, %v734
      %v799 = vadd.f32 %v280, %v735
      %v800 = vadd.f32 %v281, %v736
      %v801 = vadd.f32 %v282, %v737
      %v802 = vadd.f32 %v283, %v738
      %v803 = vadd.f32 %v284, %v739
      %v804 = vadd.f32 %v285, %v740
      %v805 = vadd.f32 %v286, %v741
      %v806 = vadd.f32 %v287, %v742
      %v807 = vadd.f32 %v288, %v743
      %v808 = vadd.f32 %v289, %v744
      %v809 = vadd.f32 %v290, %v745
      %v810 = vadd.f32 %v291, %v746
      %v811 = vadd.f32 %v292, %v747
      %v812 = vadd.f32 %v293, %v748
      %v813 = vadd.f32 %v294, %v749
      %v814 = vadd.f32 %v295, %v750
      %v815 = vadd.f32 %v296, %v751
      %v816 = vadd.f32 %v297, %v752
      %v817 = vadd.f32 %v298, %v753
      %v818 = vadd.f32 %v299, %v754
      %v819 = vadd.f32 %v300, %v755
      %v820 = vadd.f32 %v301, %v756
      %v821 = vadd.f32 %v302, %v757
      %v822 = vadd.f32 %v303, %v758
      %v823 = vadd.f32 %v304, %v759
      %v824 = vadd.f32 %v305, %v760
      %v825 = vadd.f32 %v306, %v761
      %v826 = vadd.f32 %v307, %v762
      %v827 = vadd.f32 %v308, %v763
      %v828 = vadd.f32 %v309, %v764
      %v829 = vadd.f32 %v310, %v765
      %v830 = vadd.f32 %v311, %v766
      %v831 = vadd.f32 %v312, %v767
      %v832 = vadd.f32 %v313, %v768
      %v833 = vadd.f32 %v314, %v769
      %v834 = vadd.f32 %v315, %v770
      %v835 = vadd.f32 %v316, %v771
      %v836 = vadd.f32 %v317, %v772
      %v837 = vadd.f32 %v318, %v773
      %v838 = vadd.f32 %v319, %v774
      %v839 = vadd.f32 %v320, %v775
      %v840 = vadd.f32 %v321, %v776
      %v841 = vadd.f32 %v322, %v777
      %v842 = vadd.f32 %v323, %v778
      %v843 = vadd.f32 %v324, %v779
      %v844 = vadd.f32 %v325, %v780
      %v845 = vadd.f32 %v326, %v781
      %v846 = vadd.f32 %v327, %v782
      %v847 = vadd.f32 %v328, %v783
      %v848 = vadd.f32 %v329, %v784
      %v849 = vadd.f32 %v330, %v785
      %v850 = vadd.f32 %v331, %v786
      %v851 = vadd.f32 %v332, %v787
      %v852 = vadd.f32 %v333, %v788
      %v853 = vadd.f32 %v334, %v789
      %v854 = vadd.f32 %v335, %v790
      %v855 = vadd.f32 %v336, %v791
      %vm856 = vcmp.ge.f32.partialorder %v792, 0.0
      %vm857 = vcmp.ge.f32.partialorder %v793, 0.0
      %vm858 = vcmp.ge.f32.partialorder %v794, 0.0
      %vm859 = vcmp.ge.f32.partialorder %v795, 0.0
      %vm860 = vcmp.ge.f32.partialorder %v796, 0.0
      %vm861 = vcmp.ge.f32.partialorder %v797, 0.0
      %vm862 = vcmp.ge.f32.partialorder %v798, 0.0
      %vm863 = vcmp.ge.f32.partialorder %v799, 0.0
      %vm864 = vcmp.ge.f32.partialorder %v800, 0.0
      %vm865 = vcmp.ge.f32.partialorder %v801, 0.0
      %vm866 = vcmp.ge.f32.partialorder %v802, 0.0
      %vm867 = vcmp.ge.f32.partialorder %v803, 0.0
      %vm868 = vcmp.ge.f32.partialorder %v804, 0.0
      %vm869 = vcmp.ge.f32.partialorder %v805, 0.0
      %vm870 = vcmp.ge.f32.partialorder %v806, 0.0
      %vm871 = vcmp.ge.f32.partialorder %v807, 0.0
      %vm872 = vcmp.ge.f32.partialorder %v808, 0.0
      %vm873 = vcmp.ge.f32.partialorder %v809, 0.0
      %vm874 = vcmp.ge.f32.partialorder %v810, 0.0
      %vm875 = vcmp.ge.f32.partialorder %v811, 0.0
      %vm876 = vcmp.ge.f32.partialorder %v812, 0.0
      %vm877 = vcmp.ge.f32.partialorder %v813, 0.0
      %vm878 = vcmp.ge.f32.partialorder %v814, 0.0
      %vm879 = vcmp.ge.f32.partialorder %v815, 0.0
      %vm880 = vcmp.ge.f32.partialorder %v816, 0.0
      %vm881 = vcmp.ge.f32.partialorder %v817, 0.0
      %vm882 = vcmp.ge.f32.partialorder %v818, 0.0
      %vm883 = vcmp.ge.f32.partialorder %v819, 0.0
      %vm884 = vcmp.ge.f32.partialorder %v820, 0.0
      %vm885 = vcmp.ge.f32.partialorder %v821, 0.0
      %vm886 = vcmp.ge.f32.partialorder %v822, 0.0
      %vm887 = vcmp.ge.f32.partialorder %v823, 0.0
      %vm888 = vcmp.ge.f32.partialorder %v824, 0.0
      %vm889 = vcmp.ge.f32.partialorder %v825, 0.0
      %vm890 = vcmp.ge.f32.partialorder %v826, 0.0
      %vm891 = vcmp.ge.f32.partialorder %v827, 0.0
      %vm892 = vcmp.ge.f32.partialorder %v828, 0.0
      %vm893 = vcmp.ge.f32.partialorder %v829, 0.0
      %vm894 = vcmp.ge.f32.partialorder %v830, 0.0
      %vm895 = vcmp.ge.f32.partialorder %v831, 0.0
      %vm896 = vcmp.ge.f32.partialorder %v832, 0.0
      %vm897 = vcmp.ge.f32.partialorder %v833, 0.0
      %vm898 = vcmp.ge.f32.partialorder %v834, 0.0
      %vm899 = vcmp.ge.f32.partialorder %v835, 0.0
      %vm900 = vcmp.ge.f32.partialorder %v836, 0.0
      %vm901 = vcmp.ge.f32.partialorder %v837, 0.0
      %vm902 = vcmp.ge.f32.partialorder %v838, 0.0
      %vm903 = vcmp.ge.f32.partialorder %v839, 0.0
      %vm904 = vcmp.ge.f32.partialorder %v840, 0.0
      %vm905 = vcmp.ge.f32.partialorder %v841, 0.0
      %vm906 = vcmp.ge.f32.partialorder %v842, 0.0
      %vm907 = vcmp.ge.f32.partialorder %v843, 0.0
      %vm908 = vcmp.ge.f32.partialorder %v844, 0.0
      %vm909 = vcmp.ge.f32.partialorder %v845, 0.0
      %vm910 = vcmp.ge.f32.partialorder %v846, 0.0
      %vm911 = vcmp.ge.f32.partialorder %v847, 0.0
      %vm912 = vcmp.ge.f32.partialorder %v848, 0.0
      %vm913 = vcmp.ge.f32.partialorder %v849, 0.0
      %vm914 = vcmp.ge.f32.partialorder %v850, 0.0
      %vm915 = vcmp.ge.f32.partialorder %v851, 0.0
      %vm916 = vcmp.ge.f32.partialorder %v852, 0.0
      %vm917 = vcmp.ge.f32.partialorder %v853, 0.0
      %vm918 = vcmp.ge.f32.partialorder %v854, 0.0
      %vm919 = vcmp.ge.f32.partialorder %v855, 0.0
      %v920 = vmul.f32 %v792, 0.2
      %v921 = vmul.f32 %v793, 0.2
      %v922 = vmul.f32 %v794, 0.2
      %v923 = vmul.f32 %v795, 0.2
      %v924 = vmul.f32 %v796, 0.2
      %v925 = vmul.f32 %v797, 0.2
      %v926 = vmul.f32 %v798, 0.2
      %v927 = vmul.f32 %v799, 0.2
      %v928 = vmul.f32 %v800, 0.2
      %v929 = vmul.f32 %v801, 0.2
      %v930 = vmul.f32 %v802, 0.2
      %v931 = vmul.f32 %v803, 0.2
      %v932 = vmul.f32 %v804, 0.2
      %v933 = vmul.f32 %v805, 0.2
      %v934 = vmul.f32 %v806, 0.2
      %v935 = vmul.f32 %v807, 0.2
      %v936 = vmul.f32 %v808, 0.2
      %v937 = vmul.f32 %v809, 0.2
      %v938 = vmul.f32 %v810, 0.2
      %v939 = vmul.f32 %v811, 0.2
      %v940 = vmul.f32 %v812, 0.2
      %v941 = vmul.f32 %v813, 0.2
      %v942 = vmul.f32 %v814, 0.2
      %v943 = vmul.f32 %v815, 0.2
      %v944 = vmul.f32 %v816, 0.2
      %v945 = vmul.f32 %v817, 0.2
      %v946 = vmul.f32 %v818, 0.2
      %v947 = vmul.f32 %v819, 0.2
      %v948 = vmul.f32 %v820, 0.2
      %v949 = vmul.f32 %v821, 0.2
      %v950 = vmul.f32 %v822, 0.2
      %v951 = vmul.f32 %v823, 0.2
      %v952 = vmul.f32 %v824, 0.2
      %v953 = vmul.f32 %v825, 0.2
      %v954 = vmul.f32 %v826, 0.2
      %v955 = vmul.f32 %v827, 0.2
      %v956 = vmul.f32 %v828, 0.2
      %v957 = vmul.f32 %v829, 0.2
      %v958 = vmul.f32 %v830, 0.2
      %v959 = vmul.f32 %v831, 0.2
      %v960 = vmul.f32 %v832, 0.2
      %v961 = vmul.f32 %v833, 0.2
      %v962 = vmul.f32 %v834, 0.2
      %v963 = vmul.f32 %v835, 0.2
      %v964 = vmul.f32 %v836, 0.2
      %v965 = vmul.f32 %v837, 0.2
      %v966 = vmul.f32 %v838, 0.2
      %v967 = vmul.f32 %v839, 0.2
      %v968 = vmul.f32 %v840, 0.2
      %v969 = vmul.f32 %v841, 0.2
      %v970 = vmul.f32 %v842, 0.2
      %v971 = vmul.f32 %v843, 0.2
      %v972 = vmul.f32 %v844, 0.2
      %v973 = vmul.f32 %v845, 0.2
      %v974 = vmul.f32 %v846, 0.2
      %v975 = vmul.f32 %v847, 0.2
      %v976 = vmul.f32 %v848, 0.2
      %v977 = vmul.f32 %v849, 0.2
      %v978 = vmul.f32 %v850, 0.2
      %v979 = vmul.f32 %v851, 0.2
      %v980 = vmul.f32 %v852, 0.2
      %v981 = vmul.f32 %v853, 0.2
      %v982 = vmul.f32 %v854, 0.2
      %v983 = vmul.f32 %v855, 0.2
      %v984 = vsel %vm856, %v792, %v920
      %v985 = vsel %vm857, %v793, %v921
      %v986 = vsel %vm858, %v794, %v922
      %v987 = vsel %vm859, %v795, %v923
      %v988 = vsel %vm860, %v796, %v924
      %v989 = vsel %vm861, %v797, %v925
      %v990 = vsel %vm862, %v798, %v926
      %v991 = vsel %vm863, %v799, %v927
      %v992 = vsel %vm864, %v800, %v928
      %v993 = vsel %vm865, %v801, %v929
      %v994 = vsel %vm866, %v802, %v930
      %v995 = vsel %vm867, %v803, %v931
      %v996 = vsel %vm868, %v804, %v932
      %v997 = vsel %vm869, %v805, %v933
      %v998 = vsel %vm870, %v806, %v934
      %v999 = vsel %vm871, %v807, %v935
      %v1000 = vsel %vm872, %v808, %v936
      %v1001 = vsel %vm873, %v809, %v937
      %v1002 = vsel %vm874, %v810, %v938
      %v1003 = vsel %vm875, %v811, %v939
      %v1004 = vsel %vm876, %v812, %v940
      %v1005 = vsel %vm877, %v813, %v941
      %v1006 = vsel %vm878, %v814, %v942
      %v1007 = vsel %vm879, %v815, %v943
      %v1008 = vsel %vm880, %v816, %v944
      %v1009 = vsel %vm881, %v817, %v945
      %v1010 = vsel %vm882, %v818, %v946
      %v1011 = vsel %vm883, %v819, %v947
      %v1012 = vsel %vm884, %v820, %v948
      %v1013 = vsel %vm885, %v821, %v949
      %v1014 = vsel %vm886, %v822, %v950
      %v1015 = vsel %vm887, %v823, %v951
      %v1016 = vsel %vm888, %v824, %v952
      %v1017 = vsel %vm889, %v825, %v953
      %v1018 = vsel %vm890, %v826, %v954
      %v1019 = vsel %vm891, %v827, %v955
      %v1020 = vsel %vm892, %v828, %v956
      %v1021 = vsel %vm893, %v829, %v957
      %v1022 = vsel %vm894, %v830, %v958
      %v1023 = vsel %vm895, %v831, %v959
      %v1024 = vsel %vm896, %v832, %v960
      %v1025 = vsel %vm897, %v833, %v961
      %v1026 = vsel %vm898, %v834, %v962
      %v1027 = vsel %vm899, %v835, %v963
      %v1028 = vsel %vm900, %v836, %v964
      %v1029 = vsel %vm901, %v837, %v965
      %v1030 = vsel %vm902, %v838, %v966
      %v1031 = vsel %vm903, %v839, %v967
      %v1032 = vsel %vm904, %v840, %v968
      %v1033 = vsel %vm905, %v841, %v969
      %v1034 = vsel %vm906, %v842, %v970
      %v1035 = vsel %vm907, %v843, %v971
      %v1036 = vsel %vm908, %v844, %v972
      %v1037 = vsel %vm909, %v845, %v973
      %v1038 = vsel %vm910, %v846, %v974
      %v1039 = vsel %vm911, %v847, %v975
      %v1040 = vsel %vm912, %v848, %v976
      %v1041 = vsel %vm913, %v849, %v977
      %v1042 = vsel %vm914, %v850, %v978
      %v1043 = vsel %vm915, %v851, %v979
      %v1044 = vsel %vm916, %v852, %v980
      %v1045 = vsel %vm917, %v853, %v981
      %v1046 = vsel %vm918, %v854, %v982
      %v1047 = vsel %vm919, %v855, %v983
      %vm1048 = vcmask 64512
      %v1049 = vsel %vm1048, %v984, 0.0
      %v1050 = vsel %vm1048, %v985, 0.0
      %v1051 = vadd.f32 %v1049, %v1050
      %v1052 = vsel %vm1048, %v986, 0.0
      %v1053 = vadd.f32 %v1051, %v1052
      %v1054 = vsel %vm1048, %v987, 0.0
      %v1055 = vadd.f32 %v1053, %v1054
      %v1056 = vsel %vm1048, %v988, 0.0
      %v1057 = vadd.f32 %v1055, %v1056
      %v1058 = vsel %vm1048, %v989, 0.0
      %v1059 = vadd.f32 %v1057, %v1058
      %v1060 = vsel %vm1048, %v990, 0.0
      %v1061 = vadd.f32 %v1059, %v1060
      %v1062 = vsel %vm1048, %v991, 0.0
      %v1063 = vadd.f32 %v1061, %v1062
      %v1064 = vsel %vm1048, %v992, 0.0
      %v1065 = vadd.f32 %v1063, %v1064
      %v1066 = vsel %vm1048, %v993, 0.0
      %v1067 = vadd.f32 %v1065, %v1066
      %v1068 = vsel %vm1048, %v994, 0.0
      %v1069 = vadd.f32 %v1067, %v1068
      %v1070 = vsel %vm1048, %v995, 0.0
      %v1071 = vadd.f32 %v1069, %v1070
      %v1072 = vsel %vm1048, %v996, 0.0
      %v1073 = vadd.f32 %v1071, %v1072
      %v1074 = vsel %vm1048, %v997, 0.0
      %v1075 = vadd.f32 %v1073, %v1074
      %v1076 = vsel %vm1048, %v998, 0.0
      %v1077 = vadd.f32 %v1075, %v1076
      %v1078 = vsel %vm1048, %v999, 0.0
      %v1079 = vadd.f32 %v1077, %v1078
      %v1080 = vsel %vm1048, %v1000, 0.0
      %v1081 = vadd.f32 %v1079, %v1080
      %v1082 = vsel %vm1048, %v1001, 0.0
      %v1083 = vadd.f32 %v1081, %v1082
      %v1084 = vsel %vm1048, %v1002, 0.0
      %v1085 = vadd.f32 %v1083, %v1084
      %v1086 = vsel %vm1048, %v1003, 0.0
      %v1087 = vadd.f32 %v1085, %v1086
      %v1088 = vsel %vm1048, %v1004, 0.0
      %v1089 = vadd.f32 %v1087, %v1088
      %v1090 = vsel %vm1048, %v1005, 0.0
      %v1091 = vadd.f32 %v1089, %v1090
      %v1092 = vsel %vm1048, %v1006, 0.0
      %v1093 = vadd.f32 %v1091, %v1092
      %v1094 = vsel %vm1048, %v1007, 0.0
      %v1095 = vadd.f32 %v1093, %v1094
      %v1096 = vsel %vm1048, %v1008, 0.0
      %v1097 = vadd.f32 %v1095, %v1096
      %v1098 = vsel %vm1048, %v1009, 0.0
      %v1099 = vadd.f32 %v1097, %v1098
      %v1100 = vsel %vm1048, %v1010, 0.0
      %v1101 = vadd.f32 %v1099, %v1100
      %v1102 = vsel %vm1048, %v1011, 0.0
      %v1103 = vadd.f32 %v1101, %v1102
      %v1104 = vsel %vm1048, %v1012, 0.0
      %v1105 = vadd.f32 %v1103, %v1104
      %v1106 = vsel %vm1048, %v1013, 0.0
      %v1107 = vadd.f32 %v1105, %v1106
      %v1108 = vsel %vm1048, %v1014, 0.0
      %v1109 = vadd.f32 %v1107, %v1108
      %v1110 = vsel %vm1048, %v1015, 0.0
      %v1111 = vadd.f32 %v1109, %v1110
      %v1112 = vsel %vm1048, %v1016, 0.0
      %v1113 = vadd.f32 %v1111, %v1112
      %v1114 = vsel %vm1048, %v1017, 0.0
      %v1115 = vadd.f32 %v1113, %v1114
      %v1116 = vsel %vm1048, %v1018, 0.0
      %v1117 = vadd.f32 %v1115, %v1116
      %v1118 = vsel %vm1048, %v1019, 0.0
      %v1119 = vadd.f32 %v1117, %v1118
      %v1120 = vsel %vm1048, %v1020, 0.0
      %v1121 = vadd.f32 %v1119, %v1120
      %v1122 = vsel %vm1048, %v1021, 0.0
      %v1123 = vadd.f32 %v1121, %v1122
      %v1124 = vsel %vm1048, %v1022, 0.0
      %v1125 = vadd.f32 %v1123, %v1124
      %v1126 = vsel %vm1048, %v1023, 0.0
      %v1127 = vadd.f32 %v1125, %v1126
      %v1128 = vsel %vm1048, %v1024, 0.0
      %v1129 = vadd.f32 %v1127, %v1128
      %v1130 = vsel %vm1048, %v1025, 0.0
      %v1131 = vadd.f32 %v1129, %v1130
      %v1132 = vsel %vm1048, %v1026, 0.0
      %v1133 = vadd.f32 %v1131, %v1132
      %v1134 = vsel %vm1048, %v1027, 0.0
      %v1135 = vadd.f32 %v1133, %v1134
      %v1136 = vsel %vm1048, %v1028, 0.0
      %v1137 = vadd.f32 %v1135, %v1136
      %v1138 = vsel %vm1048, %v1029, 0.0
      %v1139 = vadd.f32 %v1137, %v1138
      %v1140 = vsel %vm1048, %v1030, 0.0
      %v1141 = vadd.f32 %v1139, %v1140
      %v1142 = vsel %vm1048, %v1031, 0.0
      %v1143 = vadd.f32 %v1141, %v1142
      %v1144 = vsel %vm1048, %v1032, 0.0
      %v1145 = vadd.f32 %v1143, %v1144
      %v1146 = vsel %vm1048, %v1033, 0.0
      %v1147 = vadd.f32 %v1145, %v1146
      %v1148 = vsel %vm1048, %v1034, 0.0
      %v1149 = vadd.f32 %v1147, %v1148
      %v1150 = vsel %vm1048, %v1035, 0.0
      %v1151 = vadd.f32 %v1149, %v1150
      %v1152 = vsel %vm1048, %v1036, 0.0
      %v1153 = vadd.f32 %v1151, %v1152
      %v1154 = vsel %vm1048, %v1037, 0.0
      %v1155 = vadd.f32 %v1153, %v1154
      %v1156 = vsel %vm1048, %v1038, 0.0
      %v1157 = vadd.f32 %v1155, %v1156
      %v1158 = vsel %vm1048, %v1039, 0.0
      %v1159 = vadd.f32 %v1157, %v1158
      %v1160 = vsel %vm1048, %v1040, 0.0
      %v1161 = vadd.f32 %v1159, %v1160
      %v1162 = vsel %vm1048, %v1041, 0.0
      %v1163 = vadd.f32 %v1161, %v1162
      %v1164 = vsel %vm1048, %v1042, 0.0
      %v1165 = vadd.f32 %v1163, %v1164
      %v1166 = vsel %vm1048, %v1043, 0.0
      %v1167 = vadd.f32 %v1165, %v1166
      %v1168 = vsel %vm1048, %v1044, 0.0
      %v1169 = vadd.f32 %v1167, %v1168
      %v1170 = vsel %vm1048, %v1045, 0.0
      %v1171 = vadd.f32 %v1169, %v1170
      %v1172 = vsel %vm1048, %v1046, 0.0
      %v1173 = vadd.f32 %v1171, %v1172
      %v1174 = vsel %vm1048, %v1047, 0.0
      %v1175 = vadd.f32 %v1173, %v1174
      %v1176 = vrot.slane %v1175, 4
      %v1177 = vadd.f32 %v1175, %v1176
      %v1178 = vrot.slane %v1177, 2
      %v1179 = vadd.f32 %v1177, %v1178
      %v1180 = vrot.slane %v1179, 1
      %v1181 = vadd.f32 %v1179, %v1180
      %v1182 = vrcp.pop 512.0
      %v1183 = vmul.f32 %v1181, %v1182
      %v1184 = vsub.f32 %v984, %v1183
      %v1185 = vsub.f32 %v985, %v1183
      %v1186 = vsub.f32 %v986, %v1183
      %v1187 = vsub.f32 %v987, %v1183
      %v1188 = vsub.f32 %v988, %v1183
      %v1189 = vsub.f32 %v989, %v1183
      %v1190 = vsub.f32 %v990, %v1183
      %v1191 = vsub.f32 %v991, %v1183
      %v1192 = vsub.f32 %v992, %v1183
      %v1193 = vsub.f32 %v993, %v1183
      %v1194 = vsub.f32 %v994, %v1183
      %v1195 = vsub.f32 %v995, %v1183
      %v1196 = vsub.f32 %v996, %v1183
      %v1197 = vsub.f32 %v997, %v1183
      %v1198 = vsub.f32 %v998, %v1183
      %v1199 = vsub.f32 %v999, %v1183
      %v1200 = vsub.f32 %v1000, %v1183
      %v1201 = vsub.f32 %v1001, %v1183
      %v1202 = vsub.f32 %v1002, %v1183
      %v1203 = vsub.f32 %v1003, %v1183
      %v1204 = vsub.f32 %v1004, %v1183
      %v1205 = vsub.f32 %v1005, %v1183
      %v1206 = vsub.f32 %v1006, %v1183
      %v1207 = vsub.f32 %v1007, %v1183
      %v1208 = vsub.f32 %v1008, %v1183
      %v1209 = vsub.f32 %v1009, %v1183
      %v1210 = vsub.f32 %v1010, %v1183
      %v1211 = vsub.f32 %v1011, %v1183
      %v1212 = vsub.f32 %v1012, %v1183
      %v1213 = vsub.f32 %v1013, %v1183
      %v1214 = vsub.f32 %v1014, %v1183
      %v1215 = vsub.f32 %v1015, %v1183
      %v1216 = vsub.f32 %v1016, %v1183
      %v1217 = vsub.f32 %v1017, %v1183
      %v1218 = vsub.f32 %v1018, %v1183
      %v1219 = vsub.f32 %v1019, %v1183
      %v1220 = vsub.f32 %v1020, %v1183
      %v1221 = vsub.f32 %v1021, %v1183
      %v1222 = vsub.f32 %v1022, %v1183
      %v1223 = vsub.f32 %v1023, %v1183
      %v1224 = vsub.f32 %v1024, %v1183
      %v1225 = vsub.f32 %v1025, %v1183
      %v1226 = vsub.f32 %v1026, %v1183
      %v1227 = vsub.f32 %v1027, %v1183
      %v1228 = vsub.f32 %v1028, %v1183
      %v1229 = vsub.f32 %v1029, %v1183
      %v1230 = vsub.f32 %v1030, %v1183
      %v1231 = vsub.f32 %v1031, %v1183
      %v1232 = vsub.f32 %v1032, %v1183
      %v1233 = vsub.f32 %v1033, %v1183
      %v1234 = vsub.f32 %v1034, %v1183
      %v1235 = vsub.f32 %v1035, %v1183
      %v1236 = vsub.f32 %v1036, %v1183
      %v1237 = vsub.f32 %v1037, %v1183
      %v1238 = vsub.f32 %v1038, %v1183
      %v1239 = vsub.f32 %v1039, %v1183
      %v1240 = vsub.f32 %v1040, %v1183
      %v1241 = vsub.f32 %v1041, %v1183
      %v1242 = vsub.f32 %v1042, %v1183
      %v1243 = vsub.f32 %v1043, %v1183
      %v1244 = vsub.f32 %v1044, %v1183
      %v1245 = vsub.f32 %v1045, %v1183
      %v1246 = vsub.f32 %v1046, %v1183
      %v1247 = vsub.f32 %v1047, %v1183
      %v1248 = vmul.f32 %v1184, %v1184
      %v1249 = vmul.f32 %v1185, %v1185
      %v1250 = vmul.f32 %v1186, %v1186
      %v1251 = vmul.f32 %v1187, %v1187
      %v1252 = vmul.f32 %v1188, %v1188
      %v1253 = vmul.f32 %v1189, %v1189
      %v1254 = vmul.f32 %v1190, %v1190
      %v1255 = vmul.f32 %v1191, %v1191
      %v1256 = vmul.f32 %v1192, %v1192
      %v1257 = vmul.f32 %v1193, %v1193
      %v1258 = vmul.f32 %v1194, %v1194
      %v1259 = vmul.f32 %v1195, %v1195
      %v1260 = vmul.f32 %v1196, %v1196
      %v1261 = vmul.f32 %v1197, %v1197
      %v1262 = vmul.f32 %v1198, %v1198
      %v1263 = vmul.f32 %v1199, %v1199
      %v1264 = vmul.f32 %v1200, %v1200
      %v1265 = vmul.f32 %v1201, %v1201
      %v1266 = vmul.f32 %v1202, %v1202
      %v1267 = vmul.f32 %v1203, %v1203
      %v1268 = vmul.f32 %v1204, %v1204
      %v1269 = vmul.f32 %v1205, %v1205
      %v1270 = vmul.f32 %v1206, %v1206
      %v1271 = vmul.f32 %v1207, %v1207
      %v1272 = vmul.f32 %v1208, %v1208
      %v1273 = vmul.f32 %v1209, %v1209
      %v1274 = vmul.f32 %v1210, %v1210
      %v1275 = vmul.f32 %v1211, %v1211
      %v1276 = vmul.f32 %v1212, %v1212
      %v1277 = vmul.f32 %v1213, %v1213
      %v1278 = vmul.f32 %v1214, %v1214
      %v1279 = vmul.f32 %v1215, %v1215
      %v1280 = vmul.f32 %v1216, %v1216
      %v1281 = vmul.f32 %v1217, %v1217
      %v1282 = vmul.f32 %v1218, %v1218
      %v1283 = vmul.f32 %v1219, %v1219
      %v1284 = vmul.f32 %v1220, %v1220
      %v1285 = vmul.f32 %v1221, %v1221
      %v1286 = vmul.f32 %v1222, %v1222
      %v1287 = vmul.f32 %v1223, %v1223
      %v1288 = vmul.f32 %v1224, %v1224
      %v1289 = vmul.f32 %v1225, %v1225
      %v1290 = vmul.f32 %v1226, %v1226
      %v1291 = vmul.f32 %v1227, %v1227
      %v1292 = vmul.f32 %v1228, %v1228
      %v1293 = vmul.f32 %v1229, %v1229
      %v1294 = vmul.f32 %v1230, %v1230
      %v1295 = vmul.f32 %v1231, %v1231
      %v1296 = vmul.f32 %v1232, %v1232
      %v1297 = vmul.f32 %v1233, %v1233
      %v1298 = vmul.f32 %v1234, %v1234
      %v1299 = vmul.f32 %v1235, %v1235
      %v1300 = vmul.f32 %v1236, %v1236
      %v1301 = vmul.f32 %v1237, %v1237
      %v1302 = vmul.f32 %v1238, %v1238
      %v1303 = vmul.f32 %v1239, %v1239
      %v1304 = vmul.f32 %v1240, %v1240
      %v1305 = vmul.f32 %v1241, %v1241
      %v1306 = vmul.f32 %v1242, %v1242
      %v1307 = vmul.f32 %v1243, %v1243
      %v1308 = vmul.f32 %v1244, %v1244
      %v1309 = vmul.f32 %v1245, %v1245
      %v1310 = vmul.f32 %v1246, %v1246
      %v1311 = vmul.f32 %v1247, %v1247
      %v1312 = vsel %vm1048, %v1248, 0.0
      %v1313 = vsel %vm1048, %v1249, 0.0
      %v1314 = vadd.f32 %v1312, %v1313
      %v1315 = vsel %vm1048, %v1250, 0.0
      %v1316 = vadd.f32 %v1314, %v1315
      %v1317 = vsel %vm1048, %v1251, 0.0
      %v1318 = vadd.f32 %v1316, %v1317
      %v1319 = vsel %vm1048, %v1252, 0.0
      %v1320 = vadd.f32 %v1318, %v1319
      %v1321 = vsel %vm1048, %v1253, 0.0
      %v1322 = vadd.f32 %v1320, %v1321
      %v1323 = vsel %vm1048, %v1254, 0.0
      %v1324 = vadd.f32 %v1322, %v1323
      %v1325 = vsel %vm1048, %v1255, 0.0
      %v1326 = vadd.f32 %v1324, %v1325
      %v1327 = vsel %vm1048, %v1256, 0.0
      %v1328 = vadd.f32 %v1326, %v1327
      %v1329 = vsel %vm1048, %v1257, 0.0
      %v1330 = vadd.f32 %v1328, %v1329
      %v1331 = vsel %vm1048, %v1258, 0.0
      %v1332 = vadd.f32 %v1330, %v1331
      %v1333 = vsel %vm1048, %v1259, 0.0
      %v1334 = vadd.f32 %v1332, %v1333
      %v1335 = vsel %vm1048, %v1260, 0.0
      %v1336 = vadd.f32 %v1334, %v1335
      %v1337 = vsel %vm1048, %v1261, 0.0
      %v1338 = vadd.f32 %v1336, %v1337
      %v1339 = vsel %vm1048, %v1262, 0.0
      %v1340 = vadd.f32 %v1338, %v1339
      %v1341 = vsel %vm1048, %v1263, 0.0
      %v1342 = vadd.f32 %v1340, %v1341
      %v1343 = vsel %vm1048, %v1264, 0.0
      %v1344 = vadd.f32 %v1342, %v1343
      %v1345 = vsel %vm1048, %v1265, 0.0
      %v1346 = vadd.f32 %v1344, %v1345
      %v1347 = vsel %vm1048, %v1266, 0.0
      %v1348 = vadd.f32 %v1346, %v1347
      %v1349 = vsel %vm1048, %v1267, 0.0
      %v1350 = vadd.f32 %v1348, %v1349
      %v1351 = vsel %vm1048, %v1268, 0.0
      %v1352 = vadd.f32 %v1350, %v1351
      %v1353 = vsel %vm1048, %v1269, 0.0
      %v1354 = vadd.f32 %v1352, %v1353
      %v1355 = vsel %vm1048, %v1270, 0.0
      %v1356 = vadd.f32 %v1354, %v1355
      %v1357 = vsel %vm1048, %v1271, 0.0
      %v1358 = vadd.f32 %v1356, %v1357
      %v1359 = vsel %vm1048, %v1272, 0.0
      %v1360 = vadd.f32 %v1358, %v1359
      %v1361 = vsel %vm1048, %v1273, 0.0
      %v1362 = vadd.f32 %v1360, %v1361
      %v1363 = vsel %vm1048, %v1274, 0.0
      %v1364 = vadd.f32 %v1362, %v1363
      %v1365 = vsel %vm1048, %v1275, 0.0
      %v1366 = vadd.f32 %v1364, %v1365
      %v1367 = vsel %vm1048, %v1276, 0.0
      %v1368 = vadd.f32 %v1366, %v1367
      %v1369 = vsel %vm1048, %v1277, 0.0
      %v1370 = vadd.f32 %v1368, %v1369
      %v1371 = vsel %vm1048, %v1278, 0.0
      %v1372 = vadd.f32 %v1370, %v1371
      %v1373 = vsel %vm1048, %v1279, 0.0
      %v1374 = vadd.f32 %v1372, %v1373
      %v1375 = vsel %vm1048, %v1280, 0.0
      %v1376 = vadd.f32 %v1374, %v1375
      %v1377 = vsel %vm1048, %v1281, 0.0
      %v1378 = vadd.f32 %v1376, %v1377
      %v1379 = vsel %vm1048, %v1282, 0.0
      %v1380 = vadd.f32 %v1378, %v1379
      %v1381 = vsel %vm1048, %v1283, 0.0
      %v1382 = vadd.f32 %v1380, %v1381
      %v1383 = vsel %vm1048, %v1284, 0.0
      %v1384 = vadd.f32 %v1382, %v1383
      %v1385 = vsel %vm1048, %v1285, 0.0
      %v1386 = vadd.f32 %v1384, %v1385
      %v1387 = vsel %vm1048, %v1286, 0.0
      %v1388 = vadd.f32 %v1386, %v1387
      %v1389 = vsel %vm1048, %v1287, 0.0
      %v1390 = vadd.f32 %v1388, %v1389
      %v1391 = vsel %vm1048, %v1288, 0.0
      %v1392 = vadd.f32 %v1390, %v1391
      %v1393 = vsel %vm1048, %v1289, 0.0
      %v1394 = vadd.f32 %v1392, %v1393
      %v1395 = vsel %vm1048, %v1290, 0.0
      %v1396 = vadd.f32 %v1394, %v1395
      %v1397 = vsel %vm1048, %v1291, 0.0
      %v1398 = vadd.f32 %v1396, %v1397
      %v1399 = vsel %vm1048, %v1292, 0.0
      %v1400 = vadd.f32 %v1398, %v1399
      %v1401 = vsel %vm1048, %v1293, 0.0
      %v1402 = vadd.f32 %v1400, %v1401
      %v1403 = vsel %vm1048, %v1294, 0.0
      %v1404 = vadd.f32 %v1402, %v1403
      %v1405 = vsel %vm1048, %v1295, 0.0
      %v1406 = vadd.f32 %v1404, %v1405
      %v1407 = vsel %vm1048, %v1296, 0.0
      %v1408 = vadd.f32 %v1406, %v1407
      %v1409 = vsel %vm1048, %v1297, 0.0
      %v1410 = vadd.f32 %v1408, %v1409
      %v1411 = vsel %vm1048, %v1298, 0.0
      %v1412 = vadd.f32 %v1410, %v1411
      %v1413 = vsel %vm1048, %v1299, 0.0
      %v1414 = vadd.f32 %v1412, %v1413
      %v1415 = vsel %vm1048, %v1300, 0.0
      %v1416 = vadd.f32 %v1414, %v1415
      %v1417 = vsel %vm1048, %v1301, 0.0
      %v1418 = vadd.f32 %v1416, %v1417
      %v1419 = vsel %vm1048, %v1302, 0.0
      %v1420 = vadd.f32 %v1418, %v1419
      %v1421 = vsel %vm1048, %v1303, 0.0
      %v1422 = vadd.f32 %v1420, %v1421
      %v1423 = vsel %vm1048, %v1304, 0.0
      %v1424 = vadd.f32 %v1422, %v1423
      %v1425 = vsel %vm1048, %v1305, 0.0
      %v1426 = vadd.f32 %v1424, %v1425
      %v1427 = vsel %vm1048, %v1306, 0.0
      %v1428 = vadd.f32 %v1426, %v1427
      %v1429 = vsel %vm1048, %v1307, 0.0
      %v1430 = vadd.f32 %v1428, %v1429
      %v1431 = vsel %vm1048, %v1308, 0.0
      %v1432 = vadd.f32 %v1430, %v1431
      %v1433 = vsel %vm1048, %v1309, 0.0
      %v1434 = vadd.f32 %v1432, %v1433
      %v1435 = vsel %vm1048, %v1310, 0.0
      %v1436 = vadd.f32 %v1434, %v1435
      %v1437 = vsel %vm1048, %v1311, 0.0
      %v1438 = vadd.f32 %v1436, %v1437
      %v1439 = vrot.slane %v1438, 4
      %v1440 = vadd.f32 %v1438, %v1439
      %v1441 = vrot.slane %v1440, 2
      %v1442 = vadd.f32 %v1440, %v1441
      %v1443 = vrot.slane %v1442, 1
      %v1444 = vadd.f32 %v1442, %v1443
      %v1445 = vmul.f32 %v1444, %v1182
      %v1446 = vadd.f32 %v1445, 1e-05
      %v1447 = vrsqrt.pop %v1446
      %v1448 = vmul.f32 %v1184, %v1447
      %v1449 = vmul.f32 %v1185, %v1447
      %v1450 = vmul.f32 %v1186, %v1447
      %v1451 = vmul.f32 %v1187, %v1447
      %v1452 = vmul.f32 %v1188, %v1447
      %v1453 = vmul.f32 %v1189, %v1447
      %v1454 = vmul.f32 %v1190, %v1447
      %v1455 = vmul.f32 %v1191, %v1447
      %v1456 = vmul.f32 %v1192, %v1447
      %v1457 = vmul.f32 %v1193, %v1447
      %v1458 = vmul.f32 %v1194, %v1447
      %v1459 = vmul.f32 %v1195, %v1447
      %v1460 = vmul.f32 %v1196, %v1447
      %v1461 = vmul.f32 %v1197, %v1447
      %v1462 = vmul.f32 %v1198, %v1447
      %v1463 = vmul.f32 %v1199, %v1447
      %v1464 = vmul.f32 %v1200, %v1447
      %v1465 = vmul.f32 %v1201, %v1447
      %v1466 = vmul.f32 %v1202, %v1447
      %v1467 = vmul.f32 %v1203, %v1447
      %v1468 = vmul.f32 %v1204, %v1447
      %v1469 = vmul.f32 %v1205, %v1447
      %v1470 = vmul.f32 %v1206, %v1447
      %v1471 = vmul.f32 %v1207, %v1447
      %v1472 = vmul.f32 %v1208, %v1447
      %v1473 = vmul.f32 %v1209, %v1447
      %v1474 = vmul.f32 %v1210, %v1447
      %v1475 = vmul.f32 %v1211, %v1447
      %v1476 = vmul.f32 %v1212, %v1447
      %v1477 = vmul.f32 %v1213, %v1447
      %v1478 = vmul.f32 %v1214, %v1447
      %v1479 = vmul.f32 %v1215, %v1447
      %v1480 = vmul.f32 %v1216, %v1447
      %v1481 = vmul.f32 %v1217, %v1447
      %v1482 = vmul.f32 %v1218, %v1447
      %v1483 = vmul.f32 %v1219, %v1447
      %v1484 = vmul.f32 %v1220, %v1447
      %v1485 = vmul.f32 %v1221, %v1447
      %v1486 = vmul.f32 %v1222, %v1447
      %v1487 = vmul.f32 %v1223, %v1447
      %v1488 = vmul.f32 %v1224, %v1447
      %v1489 = vmul.f32 %v1225, %v1447
      %v1490 = vmul.f32 %v1226, %v1447
      %v1491 = vmul.f32 %v1227, %v1447
      %v1492 = vmul.f32 %v1228, %v1447
      %v1493 = vmul.f32 %v1229, %v1447
      %v1494 = vmul.f32 %v1230, %v1447
      %v1495 = vmul.f32 %v1231, %v1447
      %v1496 = vmul.f32 %v1232, %v1447
      %v1497 = vmul.f32 %v1233, %v1447
      %v1498 = vmul.f32 %v1234, %v1447
      %v1499 = vmul.f32 %v1235, %v1447
      %v1500 = vmul.f32 %v1236, %v1447
      %v1501 = vmul.f32 %v1237, %v1447
      %v1502 = vmul.f32 %v1238, %v1447
      %v1503 = vmul.f32 %v1239, %v1447
      %v1504 = vmul.f32 %v1240, %v1447
      %v1505 = vmul.f32 %v1241, %v1447
      %v1506 = vmul.f32 %v1242, %v1447
      %v1507 = vmul.f32 %v1243, %v1447
      %v1508 = vmul.f32 %v1244, %v1447
      %v1509 = vmul.f32 %v1245, %v1447
      %v1510 = vmul.f32 %v1246, %v1447
      %v1511 = vmul.f32 %v1247, %v1447
      %v1512 = vld [vmem:[%s264] sm:$0x1]
      %v1514 = vlaneseq
      %v1515 = vshrl.u32 %v1514, 7
      %v1516 = vsub.s32 0, %v1515
      %v1517 = vrot.slane %v1512, %v1516
      %v1519 = vmul.f32 %v1517, %v1448
      %v1520 = vmul.f32 %v1517, %v1449
      %v1521 = vmul.f32 %v1517, %v1450
      %v1522 = vmul.f32 %v1517, %v1451
      %v1523 = vmul.f32 %v1517, %v1452
      %v1524 = vmul.f32 %v1517, %v1453
      %v1525 = vmul.f32 %v1517, %v1454
      %v1526 = vmul.f32 %v1517, %v1455
      %v1527 = vmul.f32 %v1517, %v1456
      %v1528 = vmul.f32 %v1517, %v1457
      %v1529 = vmul.f32 %v1517, %v1458
      %v1530 = vmul.f32 %v1517, %v1459
      %v1531 = vmul.f32 %v1517, %v1460
      %v1532 = vmul.f32 %v1517, %v1461
      %v1533 = vmul.f32 %v1517, %v1462
      %v1534 = vmul.f32 %v1517, %v1463
      %v1535 = vmul.f32 %v1517, %v1464
      %v1536 = vmul.f32 %v1517, %v1465
      %v1537 = vmul.f32 %v1517, %v1466
      %v1538 = vmul.f32 %v1517, %v1467
      %v1539 = vmul.f32 %v1517, %v1468
      %v1540 = vmul.f32 %v1517, %v1469
      %v1541 = vmul.f32 %v1517, %v1470
      %v1542 = vmul.f32 %v1517, %v1471
      %v1543 = vmul.f32 %v1517, %v1472
      %v1544 = vmul.f32 %v1517, %v1473
      %v1545 = vmul.f32 %v1517, %v1474
      %v1546 = vmul.f32 %v1517, %v1475
      %v1547 = vmul.f32 %v1517, %v1476
      %v1548 = vmul.f32 %v1517, %v1477
      %v1549 = vmul.f32 %v1517, %v1478
      %v1550 = vmul.f32 %v1517, %v1479
      %v1551 = vmul.f32 %v1517, %v1480
      %v1552 = vmul.f32 %v1517, %v1481
      %v1553 = vmul.f32 %v1517, %v1482
      %v1554 = vmul.f32 %v1517, %v1483
      %v1555 = vmul.f32 %v1517, %v1484
      %v1556 = vmul.f32 %v1517, %v1485
      %v1557 = vmul.f32 %v1517, %v1486
      %v1558 = vmul.f32 %v1517, %v1487
      %v1559 = vmul.f32 %v1517, %v1488
      %v1560 = vmul.f32 %v1517, %v1489
      %v1561 = vmul.f32 %v1517, %v1490
      %v1562 = vmul.f32 %v1517, %v1491
      %v1563 = vmul.f32 %v1517, %v1492
      %v1564 = vmul.f32 %v1517, %v1493
      %v1565 = vmul.f32 %v1517, %v1494
      %v1566 = vmul.f32 %v1517, %v1495
      %v1567 = vmul.f32 %v1517, %v1496
      %v1568 = vmul.f32 %v1517, %v1497
      %v1569 = vmul.f32 %v1517, %v1498
      %v1570 = vmul.f32 %v1517, %v1499
      %v1571 = vmul.f32 %v1517, %v1500
      %v1572 = vmul.f32 %v1517, %v1501
      %v1573 = vmul.f32 %v1517, %v1502
      %v1574 = vmul.f32 %v1517, %v1503
      %v1575 = vmul.f32 %v1517, %v1504
      %v1576 = vmul.f32 %v1517, %v1505
      %v1577 = vmul.f32 %v1517, %v1506
      %v1578 = vmul.f32 %v1517, %v1507
      %v1579 = vmul.f32 %v1517, %v1508
      %v1580 = vmul.f32 %v1517, %v1509
      %v1581 = vmul.f32 %v1517, %v1510
      %v1582 = vmul.f32 %v1517, %v1511
      %v1583 = vld [vmem:[%s267] sm:$0x1]
      %v1585 = vlaneseq
      %v1586 = vshrl.u32 %v1585, 7
      %v1587 = vsub.s32 0, %v1586
      %v1588 = vrot.slane %v1583, %v1587
      %v1590 = vadd.f32 %v1519, %v1588
      %v1591 = vadd.f32 %v1520, %v1588
      %v1592 = vadd.f32 %v1521, %v1588
      %v1593 = vadd.f32 %v1522, %v1588
      %v1594 = vadd.f32 %v1523, %v1588
      %v1595 = vadd.f32 %v1524, %v1588
      %v1596 = vadd.f32 %v1525, %v1588
      %v1597 = vadd.f32 %v1526, %v1588
      %v1598 = vadd.f32 %v1527, %v1588
      %v1599 = vadd.f32 %v1528, %v1588
      %v1600 = vadd.f32 %v1529, %v1588
      %v1601 = vadd.f32 %v1530, %v1588
      %v1602 = vadd.f32 %v1531, %v1588
      %v1603 = vadd.f32 %v1532, %v1588
      %v1604 = vadd.f32 %v1533, %v1588
      %v1605 = vadd.f32 %v1534, %v1588
      %v1606 = vadd.f32 %v1535, %v1588
      %v1607 = vadd.f32 %v1536, %v1588
      %v1608 = vadd.f32 %v1537, %v1588
      %v1609 = vadd.f32 %v1538, %v1588
      %v1610 = vadd.f32 %v1539, %v1588
      %v1611 = vadd.f32 %v1540, %v1588
      %v1612 = vadd.f32 %v1541, %v1588
      %v1613 = vadd.f32 %v1542, %v1588
      %v1614 = vadd.f32 %v1543, %v1588
      %v1615 = vadd.f32 %v1544, %v1588
      %v1616 = vadd.f32 %v1545, %v1588
      %v1617 = vadd.f32 %v1546, %v1588
      %v1618 = vadd.f32 %v1547, %v1588
      %v1619 = vadd.f32 %v1548, %v1588
      %v1620 = vadd.f32 %v1549, %v1588
      %v1621 = vadd.f32 %v1550, %v1588
      %v1622 = vadd.f32 %v1551, %v1588
      %v1623 = vadd.f32 %v1552, %v1588
      %v1624 = vadd.f32 %v1553, %v1588
      %v1625 = vadd.f32 %v1554, %v1588
      %v1626 = vadd.f32 %v1555, %v1588
      %v1627 = vadd.f32 %v1556, %v1588
      %v1628 = vadd.f32 %v1557, %v1588
      %v1629 = vadd.f32 %v1558, %v1588
      %v1630 = vadd.f32 %v1559, %v1588
      %v1631 = vadd.f32 %v1560, %v1588
      %v1632 = vadd.f32 %v1561, %v1588
      %v1633 = vadd.f32 %v1562, %v1588
      %v1634 = vadd.f32 %v1563, %v1588
      %v1635 = vadd.f32 %v1564, %v1588
      %v1636 = vadd.f32 %v1565, %v1588
      %v1637 = vadd.f32 %v1566, %v1588
      %v1638 = vadd.f32 %v1567, %v1588
      %v1639 = vadd.f32 %v1568, %v1588
      %v1640 = vadd.f32 %v1569, %v1588
      %v1641 = vadd.f32 %v1570, %v1588
      %v1642 = vadd.f32 %v1571, %v1588
      %v1643 = vadd.f32 %v1572, %v1588
      %v1644 = vadd.f32 %v1573, %v1588
      %v1645 = vadd.f32 %v1574, %v1588
      %v1646 = vadd.f32 %v1575, %v1588
      %v1647 = vadd.f32 %v1576, %v1588
      %v1648 = vadd.f32 %v1577, %v1588
      %v1649 = vadd.f32 %v1578, %v1588
      %v1650 = vadd.f32 %v1579, %v1588
      %v1651 = vadd.f32 %v1580, %v1588
      %v1652 = vadd.f32 %v1581, %v1588
      %v1653 = vadd.f32 %v1582, %v1588
      %1654 = vst.msk [vmem:[%s272] sm:$0xff] %vm1048, %v1590
      %1655 = vst.msk [vmem:[%s272 + $0x8] sm:$0xff] %vm1048, %v1591
      %1656 = vst.msk [vmem:[%s272 + $0x10] sm:$0xff] %vm1048, %v1592
      %1657 = vst.msk [vmem:[%s272 + $0x18] sm:$0xff] %vm1048, %v1593
      %1658 = vst.msk [vmem:[%s272 + $0x20] sm:$0xff] %vm1048, %v1594
      %1659 = vst.msk [vmem:[%s272 + $0x28] sm:$0xff] %vm1048, %v1595
      %1660 = vst.msk [vmem:[%s272 + $0x30] sm:$0xff] %vm1048, %v1596
      %1661 = vst.msk [vmem:[%s272 + $0x38] sm:$0xff] %vm1048, %v1597
      %1662 = vst.msk [vmem:[%s272 + $0x40] sm:$0xff] %vm1048, %v1598
      %1663 = vst.msk [vmem:[%s272 + $0x48] sm:$0xff] %vm1048, %v1599
      %1664 = vst.msk [vmem:[%s272 + $0x50] sm:$0xff] %vm1048, %v1600
      %1665 = vst.msk [vmem:[%s272 + $0x58] sm:$0xff] %vm1048, %v1601
      %1666 = vst.msk [vmem:[%s272 + $0x60] sm:$0xff] %vm1048, %v1602
      %1667 = vst.msk [vmem:[%s272 + $0x68] sm:$0xff] %vm1048, %v1603
      %1668 = vst.msk [vmem:[%s272 + $0x70] sm:$0xff] %vm1048, %v1604
      %1669 = vst.msk [vmem:[%s272 + $0x78] sm:$0xff] %vm1048, %v1605
      %1670 = vst.msk [vmem:[%s272 + $0x80] sm:$0xff] %vm1048, %v1606
      %1671 = vst.msk [vmem:[%s272 + $0x88] sm:$0xff] %vm1048, %v1607
      %1672 = vst.msk [vmem:[%s272 + $0x90] sm:$0xff] %vm1048, %v1608
      %1673 = vst.msk [vmem:[%s272 + $0x98] sm:$0xff] %vm1048, %v1609
      %1674 = vst.msk [vmem:[%s272 + $0xa0] sm:$0xff] %vm1048, %v1610
      %1675 = vst.msk [vmem:[%s272 + $0xa8] sm:$0xff] %vm1048, %v1611
      %1676 = vst.msk [vmem:[%s272 + $0xb0] sm:$0xff] %vm1048, %v1612
      %1677 = vst.msk [vmem:[%s272 + $0xb8] sm:$0xff] %vm1048, %v1613
      %1678 = vst.msk [vmem:[%s272 + $0xc0] sm:$0xff] %vm1048, %v1614
      %1679 = vst.msk [vmem:[%s272 + $0xc8] sm:$0xff] %vm1048, %v1615
      %1680 = vst.msk [vmem:[%s272 + $0xd0] sm:$0xff] %vm1048, %v1616
      %1681 = vst.msk [vmem:[%s272 + $0xd8] sm:$0xff] %vm1048, %v1617
      %1682 = vst.msk [vmem:[%s272 + $0xe0] sm:$0xff] %vm1048, %v1618
      %1683 = vst.msk [vmem:[%s272 + $0xe8] sm:$0xff] %vm1048, %v1619
      %1684 = vst.msk [vmem:[%s272 + $0xf0] sm:$0xff] %vm1048, %v1620
      %1685 = vst.msk [vmem:[%s272 + $0xf8] sm:$0xff] %vm1048, %v1621
      %1686 = vst.msk [vmem:[%s272 + $0x100] sm:$0xff] %vm1048, %v1622
      %1687 = vst.msk [vmem:[%s272 + $0x108] sm:$0xff] %vm1048, %v1623
      %1688 = vst.msk [vmem:[%s272 + $0x110] sm:$0xff] %vm1048, %v1624
      %1689 = vst.msk [vmem:[%s272 + $0x118] sm:$0xff] %vm1048, %v1625
      %1690 = vst.msk [vmem:[%s272 + $0x120] sm:$0xff] %vm1048, %v1626
      %1691 = vst.msk [vmem:[%s272 + $0x128] sm:$0xff] %vm1048, %v1627
      %1692 = vst.msk [vmem:[%s272 + $0x130] sm:$0xff] %vm1048, %v1628
      %1693 = vst.msk [vmem:[%s272 + $0x138] sm:$0xff] %vm1048, %v1629
      %1694 = vst.msk [vmem:[%s272 + $0x140] sm:$0xff] %vm1048, %v1630
      %1695 = vst.msk [vmem:[%s272 + $0x148] sm:$0xff] %vm1048, %v1631
      %1696 = vst.msk [vmem:[%s272 + $0x150] sm:$0xff] %vm1048, %v1632
      %1697 = vst.msk [vmem:[%s272 + $0x158] sm:$0xff] %vm1048, %v1633
      %1698 = vst.msk [vmem:[%s272 + $0x160] sm:$0xff] %vm1048, %v1634
      %1699 = vst.msk [vmem:[%s272 + $0x168] sm:$0xff] %vm1048, %v1635
      %1700 = vst.msk [vmem:[%s272 + $0x170] sm:$0xff] %vm1048, %v1636
      %1701 = vst.msk [vmem:[%s272 + $0x178] sm:$0xff] %vm1048, %v1637
      %1702 = vst.msk [vmem:[%s272 + $0x180] sm:$0xff] %vm1048, %v1638
      %1703 = vst.msk [vmem:[%s272 + $0x188] sm:$0xff] %vm1048, %v1639
      %1704 = vst.msk [vmem:[%s272 + $0x190] sm:$0xff] %vm1048, %v1640
      %1705 = vst.msk [vmem:[%s272 + $0x198] sm:$0xff] %vm1048, %v1641
      %1706 = vst.msk [vmem:[%s272 + $0x1a0] sm:$0xff] %vm1048, %v1642
      %1707 = vst.msk [vmem:[%s272 + $0x1a8] sm:$0xff] %vm1048, %v1643
      %1708 = vst.msk [vmem:[%s272 + $0x1b0] sm:$0xff] %vm1048, %v1644
      %1709 = vst.msk [vmem:[%s272 + $0x1b8] sm:$0xff] %vm1048, %v1645
      %1710 = vst.msk [vmem:[%s272 + $0x1c0] sm:$0xff] %vm1048, %v1646
      %1711 = vst.msk [vmem:[%s272 + $0x1c8] sm:$0xff] %vm1048, %v1647
      %1712 = vst.msk [vmem:[%s272 + $0x1d0] sm:$0xff] %vm1048, %v1648
      %1713 = vst.msk [vmem:[%s272 + $0x1d8] sm:$0xff] %vm1048, %v1649
      %1714 = vst.msk [vmem:[%s272 + $0x1e0] sm:$0xff] %vm1048, %v1650
      %1715 = vst.msk [vmem:[%s272 + $0x1e8] sm:$0xff] %vm1048, %v1651
      %1716 = vst.msk [vmem:[%s272 + $0x1f0] sm:$0xff] %vm1048, %v1652
      %1717 = vst.msk [vmem:[%s272 + $0x1f8] sm:$0xff] %vm1048, %v1653
      %p1718 = scmp.lt.s32.totalorder %s16, 1
      %s1719 = scalar_select %p1718, %s16, 1
      %s1720 = smul.addr %s1719, 64
      %s1721 = smul.addr %s1720, 8
      %s1722 = scalar_lea.vmem %s5, %s1721
      // Predicated region
      $region41: #{styled_conv_block_forward.8} parent=39 // pred_check
        %p1723 = pneg %p159
      $region42: #{styled_conv_block_forward.8} parent=39 // pred_check_branch
        %1725 = sbr.rel (%p1723) target = $region44
      $region43: #{styled_conv_block_forward.8} parent=39 // pred_region
        _
      $region44: #{styled_conv_block_forward.8} parent=39 // pred_fallthru
        _
    $region40: #{styled_conv_block_forward.8} parent=5 // pred_fallthru
      _
    %p1726 = scmp.le.s32.totalorder 2, %s11
    // Predicated region
    $region45: #{styled_conv_block_forward.8} parent=5 // pred_check
      %p1727 = pneg %p1726
    $region46: #{styled_conv_block_forward.8} parent=5 // pred_check_branch
      %1729 = sbr.rel (%p1727) target = $region48
    $region47: #{styled_conv_block_forward.8} parent=5 // pred_region
      %s1730 = ssub.s32 %s11, 2
      // Predicated region
      $region49: #{styled_conv_block_forward.8} parent=47 // pred_check
        %p1731 = pneg %p165
      $region50: #{styled_conv_block_forward.8} parent=47 // pred_check_branch
        %1733 = sbr.rel (%p1731) target = $region52
      $region51: #{styled_conv_block_forward.8} parent=47 // pred_region
        %p1734 = scmp.lt.s32.totalorder %s17, 1
        %s1735 = scalar_select %p1734, %s17, 1
        %s1736 = smul.addr %s1735, 64
        %s1737 = smul.addr %s1736, 8
        %s1738 = scalar_lea.vmem %s5, %s1737
      $region52: #{styled_conv_block_forward.8} parent=47 // pred_fallthru
        _
    $region48: #{styled_conv_block_forward.8} parent=5 // pred_fallthru
      _
  $region6: #{styled_conv_block_forward.8} parent=0 // loop_footer
    %s15 = sadd.s32 1, %s11
  $region7: #{styled_conv_block_forward.8} parent=0 // loop_footer_branch
    %10 = sbr.rel target = $region3
  $region8: #{styled_conv_block_forward.8} parent=0 // loop_exit
    _

// kernel: styled_conv_block_forward.9
$region0: #{styled_conv_block_forward.9}
  #allocation0 [shape = 'u32[]', space=smem, size = 0x4, offset = 0x4, fixed_abs, tag = 'smem constant byte address 0x4 - core index']
  #allocation1 [shape = 'u32[144,128]{1,0:T(1,128)}', space=vmem, size = 0x12000, scoped, tag = 'internal scratch']
  #allocation2 [shape = 'f32[256,128]{1,0:T(8,128)}', space=vmem, size = 0x20000, scoped, tag = 'scratch operand']
  %s0 = inlined_call_operand.vmem [shape: f32[1024,256], index: 0, kind: input, shape index: {}]
  %s1 = inlined_call_operand.vmem [shape: f32[256,128], index: 1, kind: input, shape index: {}]
  %s2 = inlined_call_operand.vmem [shape: f32[1,128], index: 2, kind: input, shape index: {}]
  %s3 = inlined_call_operand.vmem [shape: f32[1024,128], index: 3, kind: output, shape index: {}]
  %s4 = sld [smem:[#allocation0]]
  $region91: #{styled_conv_block_forward.9} parent=0
    _
  %s6 = ssub.s32 1, %s4
  %s7 = scalar_select 0, %s6, %s4
  $region1: #{styled_conv_block_forward.9} parent=0
    #allocation3 [shape = 'u8[262144]{0}', space=vmem, size = 0x40000, scoped, tag = 'input window, operand 0']
    loop: start=0, step=1, limit=10
    $region2: #{styled_conv_block_forward.9} parent=1 // loop_pre_header
      _
    $region3: #{styled_conv_block_forward.9} parent=1 // loop_header
      %s9 = sphi 0, %s13
      %p10 = scmp.ge.s32.totalorder %s9, 10
      %s16 = sphi 0, %s35
      %s17 = sphi 0, %s31
      %s18 = sphi 0, %s27
      %s19 = sphi 0, %s16
      %s20 = sphi 0, %s17
      %s21 = sphi 0, %s18
      %s22 = sphi 0, %s19
      %s23 = sphi 0, %s20
      %s24 = sphi 0, %s21
      %s40 = sphi 0, %s42
      %s43 = sphi 0, %s40
      %s44 = sphi 0, %s43
      %s60 = sphi 0, %s44
      %s68 = sphi 0, %s70
      %s71 = sphi 0, %s68
      %s72 = sphi 0, %s71
      %s88 = sphi 0, %s72
      %s94 = sphi 0, %s96
      %s97 = sphi 0, %s94
      %s98 = sphi 0, %s97
      %s114 = sphi 0, %s98
      %s122 = sphi 0, %s124
      %s125 = sphi 0, %s122
      %s126 = sphi 0, %s125
      %s142 = sphi 0, %s126
    $region4: #{styled_conv_block_forward.9} parent=1 // loop_header_branch
      %12 = sbr.rel (%p10) target = $region8
    $region5: #{styled_conv_block_forward.9} parent=1 // loop_body
      %s14 = ssub.s32 %s9, 1
      %s15 = ssub.s32 %s9, 2
      %s25 = sadd.s32 1, %s18
      %p26 = scmp.ge.s32.totalorder %s25, 2
      %s27 = scalar_select %p26, 0, %s25
      %s28 = sadd.s32 1, %s17
      %s29 = scalar_select %p26, %s28, %s17
      %p30 = scmp.ge.s32.totalorder %s29, 1
      %s31 = scalar_select %p30, 0, %s29
      %s32 = sadd.s32 1, %s16
      %s33 = scalar_select %p30, %s32, %s16
      %p34 = scmp.ge.s32.totalorder %s33, 4
      %s35 = scalar_select %p34, 0, %s33
      %s36 = ssub.s32 %s16, %s35
      %s37 = ssub.s32 %s18, %s27
      %s38 = sor.u32 %s36, %s37
      %p39 = scmp.eq.s32.totalorder %s38, 0
      %s41 = sadd.s32 %s40, 1
      %s42 = scalar_select %p39, %s40, %s41
      %p45 = pneg %p39
      %p46 = scmp.eq.s32.totalorder %s9, 7
      %p47 = por %p45, %p46
      %p48 = scmp.ne.s32.totalorder %s40, %s43
      %p49 = scmp.eq.s32.totalorder %s9, 0
      %p50 = por %p48, %p49
      %p51 = scmp.ne.s32.totalorder %s40, %s43
      %p52 = scmp.eq.s32.totalorder %s14, 7
      %p53 = por %p51, %p52
      %p54 = scmp.ne.s32.totalorder %s43, %s44
      %p55 = scmp.eq.s32.totalorder %s14, 0
      %p56 = por %p54, %p55
      %p57 = scmp.ne.s32.totalorder %s43, %s44
      %p58 = scmp.eq.s32.totalorder %s15, 7
      %p59 = por %p57, %p58
      %p61 = scmp.ne.s32.totalorder %s44, %s60
      %p62 = scmp.eq.s32.totalorder %s15, 0
      %p63 = por %p61, %p62
      %s64 = ssub.s32 %s18, %s27
      %s65 = ssub.s32 %s17, %s31
      %s66 = sor.u32 %s64, %s65
      %p67 = scmp.eq.s32.totalorder %s66, 0
      %s69 = sadd.s32 %s68, 1
      %s70 = scalar_select %p67, %s68, %s69
      %p73 = pneg %p67
      %p74 = scmp.eq.s32.totalorder %s9, 7
      %p75 = por %p73, %p74
      %p76 = scmp.ne.s32.totalorder %s68, %s71
      %p77 = scmp.eq.s32.totalorder %s9, 0
      %p78 = por %p76, %p77
      %p79 = scmp.ne.s32.totalorder %s68, %s71
      %p80 = scmp.eq.s32.totalorder %s14, 7
      %p81 = por %p79, %p80
      %p82 = scmp.ne.s32.totalorder %s71, %s72
      %p83 = scmp.eq.s32.totalorder %s14, 0
      %p84 = por %p82, %p83
      %p85 = scmp.ne.s32.totalorder %s71, %s72
      %p86 = scmp.eq.s32.totalorder %s15, 7
      %p87 = por %p85, %p86
      %p89 = scmp.ne.s32.totalorder %s72, %s88
      %p90 = scmp.eq.s32.totalorder %s15, 0
      %p91 = por %p89, %p90
      %s92 = ssub.s32 %s17, %s31
      %p93 = scmp.eq.s32.totalorder %s92, 0
      %s95 = sadd.s32 %s94, 1
      %s96 = scalar_select %p93, %s94, %s95
      %p99 = pneg %p93
      %p100 = scmp.eq.s32.totalorder %s9, 7
      %p101 = por %p99, %p100
      %p102 = scmp.ne.s32.totalorder %s94, %s97
      %p103 = scmp.eq.s32.totalorder %s9, 0
      %p104 = por %p102, %p103
      %p105 = scmp.ne.s32.totalorder %s94, %s97
      %p106 = scmp.eq.s32.totalorder %s14, 7
      %p107 = por %p105, %p106
      %p108 = scmp.ne.s32.totalorder %s97, %s98
      %p109 = scmp.eq.s32.totalorder %s14, 0
      %p110 = por %p108, %p109
      %p111 = scmp.ne.s32.totalorder %s97, %s98
      %p112 = scmp.eq.s32.totalorder %s15, 7
      %p113 = por %p111, %p112
      %p115 = scmp.ne.s32.totalorder %s98, %s114
      %p116 = scmp.eq.s32.totalorder %s15, 0
      %p117 = por %p115, %p116
      %s118 = ssub.s32 %s16, %s35
      %s119 = ssub.s32 %s17, %s31
      %s120 = sor.u32 %s118, %s119
      %p121 = scmp.eq.s32.totalorder %s120, 0
      %s123 = sadd.s32 %s122, 1
      %s124 = scalar_select %p121, %s122, %s123
      %p127 = pneg %p121
      %p128 = scmp.eq.s32.totalorder %s9, 7
      %p129 = por %p127, %p128
      %p130 = scmp.ne.s32.totalorder %s122, %s125
      %p131 = scmp.eq.s32.totalorder %s9, 0
      %p132 = por %p130, %p131
      %p133 = scmp.ne.s32.totalorder %s122, %s125
      %p134 = scmp.eq.s32.totalorder %s14, 7
      %p135 = por %p133, %p134
      %p136 = scmp.ne.s32.totalorder %s125, %s126
      %p137 = scmp.eq.s32.totalorder %s14, 0
      %p138 = por %p136, %p137
      %p139 = scmp.ne.s32.totalorder %s125, %s126
      %p140 = scmp.eq.s32.totalorder %s15, 7
      %p141 = por %p139, %p140
      %p143 = scmp.ne.s32.totalorder %s126, %s142
      %p144 = scmp.eq.s32.totalorder %s15, 0
      %p145 = por %p143, %p144
      %p146 = scmp.le.s32.totalorder 1, %s9
      %p147 = scmp.lt.s32.totalorder %s9, 9
      %p148 = pnand %p146, %p147
      %p149 = pneg %p148
      // Predicated region
      $region9: #{styled_conv_block_forward.9} parent=5 // pred_check
        _
      $region10: #{styled_conv_block_forward.9} parent=5 // pred_check_branch
        %151 = sbr.rel (%p148) target = $region12
      $region11: #{styled_conv_block_forward.9} parent=5 // pred_region
        %s152 = ssub.s32 %s9, 1
        // Predicated region
        $region13: #{styled_conv_block_forward.9} parent=11 // pred_check
          %p153 = pneg %p110
        $region14: #{styled_conv_block_forward.9} parent=11 // pred_check_branch
          %155 = sbr.rel (%p153) target = $region16
        $region15: #{styled_conv_block_forward.9} parent=11 // pred_region
          %p156 = scmp.lt.s32.totalorder %s20, 0
          %s157 = scalar_select %p156, %s20, 0
          %s158 = scalar_lea.vmem %s2, %s157
        $region16: #{styled_conv_block_forward.9} parent=11 // pred_fallthru
          _
      $region12: #{styled_conv_block_forward.9} parent=5 // pred_fallthru
        _
      %p159 = scmp.lt.s32.totalorder %s9, 8
      // Predicated region
      $region17: #{styled_conv_block_forward.9} parent=5 // pred_check
        %p160 = pneg %p159
      $region18: #{styled_conv_block_forward.9} parent=5 // pred_check_branch
        %162 = sbr.rel (%p160) target = $region20
      $region19: #{styled_conv_block_forward.9} parent=5 // pred_region
        // Predicated region
        $region21: #{styled_conv_block_forward.9} parent=19 // pred_check
          %p163 = pneg %p50
        $region22: #{styled_conv_block_forward.9} parent=19 // pred_check_branch
          %165 = sbr.rel (%p163) target = $region24
        $region23: #{styled_conv_block_forward.9} parent=19 // pred_region
          %s166 = sand.u32 %s40, 1
          %s167 = sand.u32 %s40, 1
          %s168 = smul.addr %s167, 256
          %s169 = scalar_lea.vmem [#allocation3], %s168
          %s170 = smul.u32 32, %s16
          %s171 = smul.addr %s170, 2
          %s172 = sadd.s32 %s18, %s171
          %s173 = smul.addr %s172, 8
          %s174 = scalar_lea.vmem %s0, %s173
          // Predicated region
          $region25: #{styled_conv_block_forward.9} parent=23 // pred_check
            _
          $region26: #{styled_conv_block_forward.9} parent=23 // pred_check_branch
            %176 = sbr.rel (0) target = $region28
          $region27: #{styled_conv_block_forward.9} parent=23 // pred_region
            // Predicated region
            $region29: #{styled_conv_block_forward.9} parent=27 // pred_check
              _
            $region30: #{styled_conv_block_forward.9} parent=27 // pred_check_branch
              %178 = sbr.rel (0) target = $region32
            $region31: #{styled_conv_block_forward.9} parent=27 // pred_region
              // Predicated region
              $region44: #{styled_conv_block_forward.9} parent=31 // pred_check
                _
              $region45: #{styled_conv_block_forward.9} parent=31 // pred_check_branch
                %255 = sbr.rel (0) target = $region47
              $region46: #{styled_conv_block_forward.9} parent=31 // pred_region
                loop: start=0, step=1, limit=1
                $region48: #{styled_conv_block_forward.9} parent=46 // loop_pre_header
                  _
                $region49: #{styled_conv_block_forward.9} parent=46 // loop_header
                  %s257 = sphi 0, %s261
                  %p258 = scmp.ge.s32.totalorder %s257, 1
                  %s262 = sphi %s174, %s174
                  %s263 = sphi %s169, %s169
                $region50: #{styled_conv_block_forward.9} parent=46 // loop_header_branch
                  %260 = sbr.rel (%p258) target = $region54
                $region51: #{styled_conv_block_forward.9} parent=46 // loop_body
                  %v264 = vld [vmem:[%s262] sm:$0xff]
                  %265 = vst [vmem:[%s263] sm:$0xff] %v264
                  %v266 = vld [vmem:[%s262 + $0x10] sm:$0xff]
                  %267 = vst [vmem:[%s263 + $0x8] sm:$0xff] %v266
                  %v268 = vld [vmem:[%s262 + $0x20] sm:$0xff]
                  %269 = vst [vmem:[%s263 + $0x10] sm:$0xff] %v268
                  %v270 = vld [vmem:[%s262 + $0x30] sm:$0xff]
                  %271 = vst [vmem:[%s263 + $0x18] sm:$0xff] %v270
                  %v272 = vld [vmem:[%s262 + $0x40] sm:$0xff]
                  %273 = vst [vmem:[%s263 + $0x20] sm:$0xff] %v272
                  %v274 = vld [vmem:[%s262 + $0x50] sm:$0xff]
                  %275 = vst [vmem:[%s263 + $0x28] sm:$0xff] %v274
                  %v276 = vld [vmem:[%s262 + $0x60] sm:$0xff]
                  %277 = vst [vmem:[%s263 + $0x30] sm:$0xff] %v276
                  %v278 = vld [vmem:[%s262 + $0x70] sm:$0xff]
                  %279 = vst [vmem:[%s263 + $0x38] sm:$0xff] %v278
                  %v280 = vld [vmem:[%s262 + $0x80] sm:$0xff]
                  %281 = vst [vmem:[%s263 + $0x40] sm:$0xff] %v280
                  %v282 = vld [vmem:[%s262 + $0x90] sm:$0xff]
                  %283 = vst [vmem:[%s263 + $0x48] sm:$0xff] %v282
                  %v284 = vld [vmem:[%s262 + $0xa0] sm:$0xff]
                  %285 = vst [vmem:[%s263 + $0x50] sm:$0xff] %v284
                  %v286 = vld [vmem:[%s262 + $0xb0] sm:$0xff]
                  %287 = vst [vmem:[%s263 + $0x58] sm:$0xff] %v286
                  %v288 = vld [vmem:[%s262 + $0xc0] sm:$0xff]
                  %289 = vst [vmem:[%s263 + $0x60] sm:$0xff] %v288
                  %v290 = vld [vmem:[%s262 + $0xd0] sm:$0xff]
                  %291 = vst [vmem:[%s263 + $0x68] sm:$0xff] %v290
                  %v292 = vld [vmem:[%s262 + $0xe0] sm:$0xff]
                  %293 = vst [vmem:[%s263 + $0x70] sm:$0xff] %v292
                  %v294 = vld [vmem:[%s262 + $0xf0] sm:$0xff]
                  %295 = vst [vmem:[%s263 + $0x78] sm:$0xff] %v294
                  %v296 = vld [vmem:[%s262 + $0x100] sm:$0xff]
                  %297 = vst [vmem:[%s263 + $0x80] sm:$0xff] %v296
                  %v298 = vld [vmem:[%s262 + $0x110] sm:$0xff]
                  %299 = vst [vmem:[%s263 + $0x88] sm:$0xff] %v298
                  %v300 = vld [vmem:[%s262 + $0x120] sm:$0xff]
                  %301 = vst [vmem:[%s263 + $0x90] sm:$0xff] %v300
                  %v302 = vld [vmem:[%s262 + $0x130] sm:$0xff]
                  %303 = vst [vmem:[%s263 + $0x98] sm:$0xff] %v302
                  %v304 = vld [vmem:[%s262 + $0x140] sm:$0xff]
                  %305 = vst [vmem:[%s263 + $0xa0] sm:$0xff] %v304
                  %v306 = vld [vmem:[%s262 + $0x150] sm:$0xff]
                  %307 = vst [vmem:[%s263 + $0xa8] sm:$0xff] %v306
                  %v308 = vld [vmem:[%s262 + $0x160] sm:$0xff]
                  %309 = vst [vmem:[%s263 + $0xb0] sm:$0xff] %v308
                  %v310 = vld [vmem:[%s262 + $0x170] sm:$0xff]
                  %311 = vst [vmem:[%s263 + $0xb8] sm:$0xff] %v310
                  %v312 = vld [vmem:[%s262 + $0x180] sm:$0xff]
                  %313 = vst [vmem:[%s263 + $0xc0] sm:$0xff] %v312
                  %v314 = vld [vmem:[%s262 + $0x190] sm:$0xff]
                  %315 = vst [vmem:[%s263 + $0xc8] sm:$0xff] %v314
                  %v316 = vld [vmem:[%s262 + $0x1a0] sm:$0xff]
                  %317 = vst [vmem:[%s263 + $0xd0] sm:$0xff] %v316
                  %v318 = vld [vmem:[%s262 + $0x1b0] sm:$0xff]
                  %319 = vst [vmem:[%s263 + $0xd8] sm:$0xff] %v318
                  %v320 = vld [vmem:[%s262 + $0x1c0] sm:$0xff]
                  %321 = vst [vmem:[%s263 + $0xe0] sm:$0xff] %v320
                  %v322 = vld [vmem:[%s262 + $0x1d0] sm:$0xff]
                  %323 = vst [vmem:[%s263 + $0xe8] sm:$0xff] %v322
                  %v324 = vld [vmem:[%s262 + $0x1e0] sm:$0xff]
                  %325 = vst [vmem:[%s263 + $0xf0] sm:$0xff] %v324
                  %v326 = vld [vmem:[%s262 + $0x1f0] sm:$0xff]
                  %327 = vst [vmem:[%s263 + $0xf8] sm:$0xff] %v326
                $region52: #{styled_conv_block_forward.9} parent=46 // loop_footer
                  %s261 = sadd.s32 1, %s257
                $region53: #{styled_conv_block_forward.9} parent=46 // loop_footer_branch
                  %256 = sbr.rel target = $region49
                $region54: #{styled_conv_block_forward.9} parent=46 // loop_exit
                  _
              $region47: #{styled_conv_block_forward.9} parent=31 // pred_fallthru
                _
              // Predicated region
              $region55: #{styled_conv_block_forward.9} parent=31 // pred_check
                _
              $region56: #{styled_conv_block_forward.9} parent=31 // pred_check_branch
                %329 = sbr.rel target = $region58
              $region57: #{styled_conv_block_forward.9} parent=31 // pred_region
                _
              $region58: #{styled_conv_block_forward.9} parent=31 // pred_fallthru
                _
            $region32: #{styled_conv_block_forward.9} parent=27 // pred_fallthru
              _
            // Predicated region
            $region33: #{styled_conv_block_forward.9} parent=27 // pred_check
              _
            $region34: #{styled_conv_block_forward.9} parent=27 // pred_check_branch
              %180 = sbr.rel target = $region36
            $region35: #{styled_conv_block_forward.9} parent=27 // pred_region
              loop: start=0, step=1, limit=1
              $region37: #{styled_conv_block_forward.9} parent=35 // loop_pre_header
                _
              $region38: #{styled_conv_block_forward.9} parent=35 // loop_header
                %s183 = sphi 0, %s187
                %p184 = scmp.ge.s32.totalorder %s183, 1
                %s188 = sphi %s174, %s174
                %s189 = sphi %s169, %s169
              $region39: #{styled_conv_block_forward.9} parent=35 // loop_header_branch
                %186 = sbr.rel (%p184) target = $region43
              $region40: #{styled_conv_block_forward.9} parent=35 // loop_body
                %v190 = vld [vmem:[%s188] sm:$0xff]
                %191 = vst [vmem:[%s189] sm:$0xff] %v190
                %v192 = vld [vmem:[%s188 + $0x10] sm:$0xff]
                %193 = vst [vmem:[%s189 + $0x8] sm:$0xff] %v192
                %v194 = vld [vmem:[%s188 + $0x20] sm:$0xff]
                %195 = vst [vmem:[%s189 + $0x10] sm:$0xff] %v194
                %v196 = vld [vmem:[%s188 + $0x30] sm:$0xff]
                %197 = vst [vmem:[%s189 + $0x18] sm:$0xff] %v196
                %v198 = vld [vmem:[%s188 + $0x40] sm:$0xff]
                %199 = vst [vmem:[%s189 + $0x20] sm:$0xff] %v198
                %v200 = vld [vmem:[%s188 + $0x50] sm:$0xff]
                %201 = vst [vmem:[%s189 + $0x28] sm:$0xff] %v200
                %v202 = vld [vmem:[%s188 + $0x60] sm:$0xff]
                %203 = vst [vmem:[%s189 + $0x30] sm:$0xff] %v202
                %v204 = vld [vmem:[%s188 + $0x70] sm:$0xff]
                %205 = vst [vmem:[%s189 + $0x38] sm:$0xff] %v204
                %v206 = vld [vmem:[%s188 + $0x80] sm:$0xff]
                %207 = vst [vmem:[%s189 + $0x40] sm:$0xff] %v206
                %v208 = vld [vmem:[%s188 + $0x90] sm:$0xff]
                %209 = vst [vmem:[%s189 + $0x48] sm:$0xff] %v208
                %v210 = vld [vmem:[%s188 + $0xa0] sm:$0xff]
                %211 = vst [vmem:[%s189 + $0x50] sm:$0xff] %v210
                %v212 = vld [vmem:[%s188 + $0xb0] sm:$0xff]
                %213 = vst [vmem:[%s189 + $0x58] sm:$0xff] %v212
                %v214 = vld [vmem:[%s188 + $0xc0] sm:$0xff]
                %215 = vst [vmem:[%s189 + $0x60] sm:$0xff] %v214
                %v216 = vld [vmem:[%s188 + $0xd0] sm:$0xff]
                %217 = vst [vmem:[%s189 + $0x68] sm:$0xff] %v216
                %v218 = vld [vmem:[%s188 + $0xe0] sm:$0xff]
                %219 = vst [vmem:[%s189 + $0x70] sm:$0xff] %v218
                %v220 = vld [vmem:[%s188 + $0xf0] sm:$0xff]
                %221 = vst [vmem:[%s189 + $0x78] sm:$0xff] %v220
                %v222 = vld [vmem:[%s188 + $0x100] sm:$0xff]
                %223 = vst [vmem:[%s189 + $0x80] sm:$0xff] %v222
                %v224 = vld [vmem:[%s188 + $0x110] sm:$0xff]
                %225 = vst [vmem:[%s189 + $0x88] sm:$0xff] %v224
                %v226 = vld [vmem:[%s188 + $0x120] sm:$0xff]
                %227 = vst [vmem:[%s189 + $0x90] sm:$0xff] %v226
                %v228 = vld [vmem:[%s188 + $0x130] sm:$0xff]
                %229 = vst [vmem:[%s189 + $0x98] sm:$0xff] %v228
                %v230 = vld [vmem:[%s188 + $0x140] sm:$0xff]
                %231 = vst [vmem:[%s189 + $0xa0] sm:$0xff] %v230
                %v232 = vld [vmem:[%s188 + $0x150] sm:$0xff]
                %233 = vst [vmem:[%s189 + $0xa8] sm:$0xff] %v232
                %v234 = vld [vmem:[%s188 + $0x160] sm:$0xff]
                %235 = vst [vmem:[%s189 + $0xb0] sm:$0xff] %v234
                %v236 = vld [vmem:[%s188 + $0x170] sm:$0xff]
                %237 = vst [vmem:[%s189 + $0xb8] sm:$0xff] %v236
                %v238 = vld [vmem:[%s188 + $0x180] sm:$0xff]
                %239 = vst [vmem:[%s189 + $0xc0] sm:$0xff] %v238
                %v240 = vld [vmem:[%s188 + $0x190] sm:$0xff]
                %241 = vst [vmem:[%s189 + $0xc8] sm:$0xff] %v240
                %v242 = vld [vmem:[%s188 + $0x1a0] sm:$0xff]
                %243 = vst [vmem:[%s189 + $0xd0] sm:$0xff] %v242
                %v244 = vld [vmem:[%s188 + $0x1b0] sm:$0xff]
                %245 = vst [vmem:[%s189 + $0xd8] sm:$0xff] %v244
                %v246 = vld [vmem:[%s188 + $0x1c0] sm:$0xff]
                %247 = vst [vmem:[%s189 + $0xe0] sm:$0xff] %v246
                %v248 = vld [vmem:[%s188 + $0x1d0] sm:$0xff]
                %249 = vst [vmem:[%s189 + $0xe8] sm:$0xff] %v248
                %v250 = vld [vmem:[%s188 + $0x1e0] sm:$0xff]
                %251 = vst [vmem:[%s189 + $0xf0] sm:$0xff] %v250
                %v252 = vld [vmem:[%s188 + $0x1f0] sm:$0xff]
                %253 = vst [vmem:[%s189 + $0xf8] sm:$0xff] %v252
              $region41: #{styled_conv_block_forward.9} parent=35 // loop_footer
                %s187 = sadd.s32 1, %s183
              $region42: #{styled_conv_block_forward.9} parent=35 // loop_footer_branch
                %182 = sbr.rel target = $region38
              $region43: #{styled_conv_block_forward.9} parent=35 // loop_exit
                _
            $region36: #{styled_conv_block_forward.9} parent=27 // pred_fallthru
              _
          $region28: #{styled_conv_block_forward.9} parent=23 // pred_fallthru
            _
          %330 = vnop
        $region24: #{styled_conv_block_forward.9} parent=19 // pred_fallthru
          _
        // Predicated region
        $region59: #{styled_conv_block_forward.9} parent=19 // pred_check
          %p331 = pneg %p78
        $region60: #{styled_conv_block_forward.9} parent=19 // pred_check_branch
          %333 = sbr.rel (%p331) target = $region62
        $region61: #{styled_conv_block_forward.9} parent=19 // pred_region
          %s334 = smul.u32 16, %s18
          %p335 = scmp.lt.s32.totalorder %s334, 31
          %s336 = scalar_select %p335, %s334, 31
          %p337 = scmp.lt.s32.totalorder %s17, 0
          %s338 = scalar_select %p337, %s17, 0
          %s339 = sadd.s32 %s338, %s336
          %s340 = smul.addr %s339, 8
          %s341 = scalar_lea.vmem %s1, %s340
          %s342 = smul.u32 16, %s18
        $region62: #{styled_conv_block_forward.9} parent=19 // pred_fallthru
          _
      $region20: #{styled_conv_block_forward.9} parent=5 // pred_fallthru
        _
      %p343 = scmp.le.s32.totalorder 1, %s9
      %p344 = scmp.lt.s32.totalorder %s9, 9
      %p345 = pnand %p343, %p344
      %p346 = pneg %p345
      // Predicated region
      $region63: #{styled_conv_block_forward.9} parent=5 // pred_check
        _
      $region64: #{styled_conv_block_forward.9} parent=5 // pred_check_branch
        %348 = sbr.rel (%p345) target = $region66
      $region65: #{styled_conv_block_forward.9} parent=5 // pred_region
        %s349 = ssub.s32 %s9, 1
        %s350 = sand.u32 %s43, 1
        %s351 = sand.u32 %s43, 1
        %s352 = smul.addr %s351, 256
        %s353 = scalar_lea.vmem [#allocation3], %s352
        // Predicated region
        $region67: #{styled_conv_block_forward.9} parent=65 // pred_check
          %p354 = pneg %p56
        $region68: #{styled_conv_block_forward.9} parent=65 // pred_check_branch
          %356 = sbr.rel (%p354) target = $region70
        $region69: #{styled_conv_block_forward.9} parent=65 // pred_region
          _
        $region70: #{styled_conv_block_forward.9} parent=65 // pred_fallthru
          _
        %s357 = sand.u32 %s43, 1
        %s358 = sand.u32 %s43, 1
        %s359 = smul.addr %s358, 256
        %s360 = scalar_lea.vmem [#allocation3], %s359
        %p361 = pneg %p56
        %p362 = pneg %p53
        %s363 = smul.u32 16, %s21
        %p364 = scmp.lt.s32.totalorder %s363, 31
        %s365 = scalar_select %p364, %s363, 31
        %p366 = scmp.lt.s32.totalorder %s20, 0
        %s367 = scalar_select %p366, %s20, 0
        %s368 = sadd.s32 %s367, %s365
        %s369 = smul.addr %s368, 8
        %s370 = scalar_lea.vmem %s1, %s369
        %p371 = pneg %p84
        %p372 = pneg %p81
        %p373 = scmp.lt.s32.totalorder %s20, 0
        %s374 = scalar_select %p373, %s20, 0
        %s375 = scalar_lea.vmem %s2, %s374
        %p376 = pneg %p110
        %p377 = pneg %p107
        %p378 = pneg %p138
        %p379 = pneg %p135
        %s380 = smul.u32 32, %s19
        %p381 = scmp.lt.s32.totalorder %s380, 127
        %s382 = scalar_select %p381, %s380, 127
        %p383 = scmp.lt.s32.totalorder %s20, 0
        %s384 = scalar_select %p383, %s20, 0
        %s385 = sadd.s32 %s384, %s382
        %s386 = smul.addr %s385, 8
        %s387 = scalar_lea.vmem %s3, %s386
        %s388 = smul.u32 32, %s19
        %s389 = smul.u32 16, %s21
        %p390 = scmp.lt.s32.totalorder %s389, 31
        %s391 = scalar_select %p390, %s389, 31
        %p392 = scmp.lt.s32.totalorder %s20, 0
        %s393 = scalar_select %p392, %s20, 0
        %s394 = sadd.s32 %s393, %s391
        %s395 = smul.addr %s394, 8
        %s396 = scalar_lea.vmem %s1, %s395
        %s397 = smul.u32 16, %s21
        %p398 = scmp.lt.s32.totalorder %s20, 0
        %s399 = scalar_select %p398, %s20, 0
        %s400 = scalar_lea.vmem %s2, %s399
        %s401 = smul.u32 32, %s19
        %p402 = scmp.lt.s32.totalorder %s401, 127
        %s403 = scalar_select %p402, %s401, 127
        %p404 = scmp.lt.s32.totalorder %s20, 0
        %s405 = scalar_select %p404, %s20, 0
        %s406 = sadd.s32 %s405, %s403
        %s407 = smul.addr %s406, 8
        %s408 = scalar_lea.vmem %s3, %s407
        %s409 = smul.u32 32, %s19
        %p410 = scmp.eq.s32.totalorder %s21, 0
        // Predicated region
        $region71: #{styled_conv_block_forward.9} parent=65 // pred_check
          %p411 = pneg %p410
        $region72: #{styled_conv_block_forward.9} parent=65 // pred_check_branch
          %413 = sbr.rel (%p411) target = $region74
        $region73: #{styled_conv_block_forward.9} parent=65 // pred_region
          %414 = vst [vmem:[#allocation2] sm:$0xff] 0.0
          %415 = vst [vmem:[#allocation2 + $0x8] sm:$0xff] 0.0
          %416 = vst [vmem:[#allocation2 + $0x10] sm:$0xff] 0.0
          %417 = vst [vmem:[#allocation2 + $0x18] sm:$0xff] 0.0
          %418 = vst [vmem:[#allocation2 + $0x20] sm:$0xff] 0.0
          %419 = vst [vmem:[#allocation2 + $0x28] sm:$0xff] 0.0
          %420 = vst [vmem:[#allocation2 + $0x30] sm:$0xff] 0.0
          %421 = vst [vmem:[#allocation2 + $0x38] sm:$0xff] 0.0
          %422 = vst [vmem:[#allocation2 + $0x40] sm:$0xff] 0.0
          %423 = vst [vmem:[#allocation2 + $0x48] sm:$0xff] 0.0
          %424 = vst [vmem:[#allocation2 + $0x50] sm:$0xff] 0.0
          %425 = vst [vmem:[#allocation2 + $0x58] sm:$0xff] 0.0
          %426 = vst [vmem:[#allocation2 + $0x60] sm:$0xff] 0.0
          %427 = vst [vmem:[#allocation2 + $0x68] sm:$0xff] 0.0
          %428 = vst [vmem:[#allocation2 + $0x70] sm:$0xff] 0.0
          %429 = vst [vmem:[#allocation2 + $0x78] sm:$0xff] 0.0
          %430 = vst [vmem:[#allocation2 + $0x80] sm:$0xff] 0.0
          %431 = vst [vmem:[#allocation2 + $0x88] sm:$0xff] 0.0
          %432 = vst [vmem:[#allocation2 + $0x90] sm:$0xff] 0.0
          %433 = vst [vmem:[#allocation2 + $0x98] sm:$0xff] 0.0
          %434 = vst [vmem:[#allocation2 + $0xa0] sm:$0xff] 0.0
          %435 = vst [vmem:[#allocation2 + $0xa8] sm:$0xff] 0.0
          %436 = vst [vmem:[#allocation2 + $0xb0] sm:$0xff] 0.0
          %437 = vst [vmem:[#allocation2 + $0xb8] sm:$0xff] 0.0
          %438 = vst [vmem:[#allocation2 + $0xc0] sm:$0xff] 0.0
          %439 = vst [vmem:[#allocation2 + $0xc8] sm:$0xff] 0.0
          %440 = vst [vmem:[#allocation2 + $0xd0] sm:$0xff] 0.0
          %441 = vst [vmem:[#allocation2 + $0xd8] sm:$0xff] 0.0
          %442 = vst [vmem:[#allocation2 + $0xe0] sm:$0xff] 0.0
          %443 = vst [vmem:[#allocation2 + $0xe8] sm:$0xff] 0.0
          %444 = vst [vmem:[#allocation2 + $0xf0] sm:$0xff] 0.0
          %445 = vst [vmem:[#allocation2 + $0xf8] sm:$0xff] 0.0
        $region74: #{styled_conv_block_forward.9} parent=65 // pred_fallthru
          _
        %v446 = vld [vmem:[#allocation2] sm:$0xff]
        %v447 = vld [vmem:[#allocation2 + $0x8] sm:$0xff]
        %v448 = vld [vmem:[#allocation2 + $0x10] sm:$0xff]
        %v449 = vld [vmem:[#allocation2 + $0x18] sm:$0xff]
        %v450 = vld [vmem:[#allocation2 + $0x20] sm:$0xff]
        %v451 = vld [vmem:[#allocation2 + $0x28] sm:$0xff]
        %v452 = vld [vmem:[#allocation2 + $0x30] sm:$0xff]
        %v453 = vld [vmem:[#allocation2 + $0x38] sm:$0xff]
        %v454 = vld [vmem:[#allocation2 + $0x40] sm:$0xff]
        %v455 = vld [vmem:[#allocation2 + $0x48] sm:$0xff]
        %v456 = vld [vmem:[#allocation2 + $0x50] sm:$0xff]
        %v457 = vld [vmem:[#allocation2 + $0x58] sm:$0xff]
        %v458 = vld [vmem:[#allocation2 + $0x60] sm:$0xff]
        %v459 = vld [vmem:[#allocation2 + $0x68] sm:$0xff]
        %v460 = vld [vmem:[#allocation2 + $0x70] sm:$0xff]
        %v461 = vld [vmem:[#allocation2 + $0x78] sm:$0xff]
        %v462 = vld [vmem:[#allocation2 + $0x80] sm:$0xff]
        %v463 = vld [vmem:[#allocation2 + $0x88] sm:$0xff]
        %v464 = vld [vmem:[#allocation2 + $0x90] sm:$0xff]
        %v465 = vld [vmem:[#allocation2 + $0x98] sm:$0xff]
        %v466 = vld [vmem:[#allocation2 + $0xa0] sm:$0xff]
        %v467 = vld [vmem:[#allocation2 + $0xa8] sm:$0xff]
        %v468 = vld [vmem:[#allocation2 + $0xb0] sm:$0xff]
        %v469 = vld [vmem:[#allocation2 + $0xb8] sm:$0xff]
        %v470 = vld [vmem:[#allocation2 + $0xc0] sm:$0xff]
        %v471 = vld [vmem:[#allocation2 + $0xc8] sm:$0xff]
        %v472 = vld [vmem:[#allocation2 + $0xd0] sm:$0xff]
        %v473 = vld [vmem:[#allocation2 + $0xd8] sm:$0xff]
        %v474 = vld [vmem:[#allocation2 + $0xe0] sm:$0xff]
        %v475 = vld [vmem:[#allocation2 + $0xe8] sm:$0xff]
        %v476 = vld [vmem:[#allocation2 + $0xf0] sm:$0xff]
        %v477 = vld [vmem:[#allocation2 + $0xf8] sm:$0xff]
        %v478 = vld [vmem:[%s353] sm:$0xff]
        %v479 = vld [vmem:[%s353 + $0x8] sm:$0xff]
        %v480 = vld [vmem:[%s353 + $0x10] sm:$0xff]
        %v481 = vld [vmem:[%s353 + $0x18] sm:$0xff]
        %v482 = vld [vmem:[%s353 + $0x20] sm:$0xff]
        %v483 = vld [vmem:[%s353 + $0x28] sm:$0xff]
        %v484 = vld [vmem:[%s353 + $0x30] sm:$0xff]
        %v485 = vld [vmem:[%s353 + $0x38] sm:$0xff]
        %v486 = vld [vmem:[%s353 + $0x40] sm:$0xff]
        %v487 = vld [vmem:[%s353 + $0x48] sm:$0xff]
        %v488 = vld [vmem:[%s353 + $0x50] sm:$0xff]
        %v489 = vld [vmem:[%s353 + $0x58] sm:$0xff]
        %v490 = vld [vmem:[%s353 + $0x60] sm:$0xff]
        %v491 = vld [vmem:[%s353 + $0x68] sm:$0xff]
        %v492 = vld [vmem:[%s353 + $0x70] sm:$0xff]
        %v493 = vld [vmem:[%s353 + $0x78] sm:$0xff]
        %v494 = vld [vmem:[%s353 + $0x80] sm:$0xff]
        %v495 = vld [vmem:[%s353 + $0x88] sm:$0xff]
        %v496 = vld [vmem:[%s353 + $0x90] sm:$0xff]
        %v497 = vld [vmem:[%s353 + $0x98] sm:$0xff]
        %v498 = vld [vmem:[%s353 + $0xa0] sm:$0xff]
        %v499 = vld [vmem:[%s353 + $0xa8] sm:$0xff]
        %v500 = vld [vmem:[%s353 + $0xb0] sm:$0xff]
        %v501 = vld [vmem:[%s353 + $0xb8] sm:$0xff]
        %v502 = vld [vmem:[%s353 + $0xc0] sm:$0xff]
        %v503 = vld [vmem:[%s353 + $0xc8] sm:$0xff]
        %v504 = vld [vmem:[%s353 + $0xd0] sm:$0xff]
        %v505 = vld [vmem:[%s353 + $0xd8] sm:$0xff]
        %v506 = vld [vmem:[%s353 + $0xe0] sm:$0xff]
        %v507 = vld [vmem:[%s353 + $0xe8] sm:$0xff]
        %v508 = vld [vmem:[%s353 + $0xf0] sm:$0xff]
        %v509 = vld [vmem:[%s353 + $0xf8] sm:$0xff]
        %v510 = vld [vmem:[%s396] sm:$0xff]
        %v511 = vld [vmem:[%s396 + $0x8] sm:$0xff]
        %v512 = vld [vmem:[%s396 + $0x10] sm:$0xff]
        %v513 = vld [vmem:[%s396 + $0x18] sm:$0xff]
        %v514 = vld [vmem:[%s396 + $0x20] sm:$0xff]
        %v515 = vld [vmem:[%s396 + $0x28] sm:$0xff]
        %v516 = vld [vmem:[%s396 + $0x30] sm:$0xff]
        %v517 = vld [vmem:[%s396 + $0x38] sm:$0xff]
        %v518 = vld [vmem:[%s396 + $0x40] sm:$0xff]
        %v519 = vld [vmem:[%s396 + $0x48] sm:$0xff]
        %v520 = vld [vmem:[%s396 + $0x50] sm:$0xff]
        %v521 = vld [vmem:[%s396 + $0x58] sm:$0xff]
        %v522 = vld [vmem:[%s396 + $0x60] sm:$0xff]
        %v523 = vld [vmem:[%s396 + $0x68] sm:$0xff]
        %v524 = vld [vmem:[%s396 + $0x70] sm:$0xff]
        %v525 = vld [vmem:[%s396 + $0x78] sm:$0xff]
        %526 = vmatprep.subr.mxu0 0.0
        %527 = vmatpush1.msra.mxu0 %v510
        %528 = vmatprep.subr.mxu0 0.0
        %529 = vmatpush1.msra.mxu0 %v511
        %530 = vmatprep.subr.mxu0 0.0
        %531 = vmatpush1.msra.mxu0 %v512
        %532 = vmatprep.subr.mxu0 0.0
        %533 = vmatpush1.msra.mxu0 %v513
        %534 = vmatprep.subr.mxu0 0.0
        %535 = vmatpush1.msra.mxu0 %v514
        %536 = vmatprep.subr.mxu0 0.0
        %537 = vmatpush1.msra.mxu0 %v515
        %538 = vmatprep.subr.mxu0 0.0
        %539 = vmatpush1.msra.mxu0 %v516
        %540 = vmatprep.subr.mxu0 0.0
        %541 = vmatpush1.msra.mxu0 %v517
        %542 = vmatprep.subr.mxu0 0.0
        %543 = vmatpush1.msra.mxu0 %v518
        %544 = vmatprep.subr.mxu0 0.0
        %545 = vmatpush1.msra.mxu0 %v519
        %546 = vmatprep.subr.mxu0 0.0
        %547 = vmatpush1.msra.mxu0 %v520
        %548 = vmatprep.subr.mxu0 0.0
        %549 = vmatpush1.msra.mxu0 %v521
        %550 = vmatprep.subr.mxu0 0.0
        %551 = vmatpush1.msra.mxu0 %v522
        %552 = vmatprep.subr.mxu0 0.0
        %553 = vmatpush1.msra.mxu0 %v523
        %554 = vmatprep.subr.mxu0 0.0
        %555 = vmatpush1.msra.mxu0 %v524
        %556 = vmatprep.subr.mxu0 0.0
        %557 = vmatpush1.msra.mxu0 %v525
        %558 = vmatprep.subr.mxu0 0.0
        %559 = vmatpush1.msra.mxu0 0.0
        %560 = vmatprep.subr.mxu0 0.0
        %561 = vmatpush1.msra.mxu0 0.0
        %562 = vmatprep.subr.mxu0 0.0
        %563 = vmatpush1.msra.mxu0 0.0
        %564 = vmatprep.subr.mxu0 0.0
        %565 = vmatpush1.msra.mxu0 0.0
        %566 = vmatprep.subr.mxu0 0.0
        %567 = vmatpush1.msra.mxu0 0.0
        %568 = vmatprep.subr.mxu0 0.0
        %569 = vmatpush1.msra.mxu0 0.0
        %570 = vmatprep.subr.mxu0 0.0
        %571 = vmatpush1.msra.mxu0 0.0
        %572 = vmatprep.subr.mxu0 0.0
        %573 = vmatpush1.msra.mxu0 0.0
        %574 = vmatprep.subr.mxu0 0.0
        %575 = vmatpush1.msra.mxu0 0.0
        %576 = vmatprep.subr.mxu0 0.0
        %577 = vmatpush1.msra.mxu0 0.0
        %578 = vmatprep.subr.mxu0 0.0
        %579 = vmatpush1.msra.mxu0 0.0
        %580 = vmatprep.subr.mxu0 0.0
        %581 = vmatpush1.msra.mxu0 0.0
        %582 = vmatprep.subr.mxu0 0.0
        %583 = vmatpush1.msra.mxu0 0.0
        %584 = vmatprep.subr.mxu0 0.0
        %585 = vmatpush1.msra.mxu0 0.0
        %586 = vmatprep.subr.mxu0 0.0
        %587 = vmatpush1.msra.mxu0 0.0
        %588 = vmatprep.subr.mxu0 0.0
        %589 = vmatpush1.msra.mxu0 0.0
        %590 = vmatprep.mubr.f32.mxu0 0.0
        %591 = vmatmul.mubr.f32.gmra.mrb[0].mxu0 %v478
        %v592 = vpop.f32.mrb[0].mxu0
        %v593 = vadd.f32 0.0, %v592
        %v594 = vpop.f32.mrb[0].mxu0
        %595 = vmatprep.mubr.f32.mxu0 0.0
        %596 = vmatmul.mubr.f32.gmra.mrb[0].mxu0 %v479
        %v597 = vpop.f32.mrb[0].mxu0
        %v598 = vadd.f32 0.0, %v597
        %v599 = vpop.f32.mrb[0].mxu0
        %600 = vmatprep.mubr.f32.mxu0 0.0
        %601 = vmatmul.mubr.f32.gmra.mrb[0].mxu0 %v480
        %v602 = vpop.f32.mrb[0].mxu0
        %v603 = vadd.f32 0.0, %v602
        %v604 = vpop.f32.mrb[0].mxu0
        %605 = vmatprep.mubr.f32.mxu0 0.0
        %606 = vmatmul.mubr.f32.gmra.mrb[0].mxu0 %v481
        %v607 = vpop.f32.mrb[0].mxu0
        %v608 = vadd.f32 0.0, %v607
        %v609 = vpop.f32.mrb[0].mxu0
        %610 = vmatprep.mubr.f32.mxu0 0.0
        %611 = vmatmul.mubr.f32.gmra.mrb[0].mxu0 %v482
        %v612 = vpop.f32.mrb[0].mxu0
        %v613 = vadd.f32 0.0, %v612
        %v614 = vpop.f32.mrb[0].mxu0
        %615 = vmatprep.mubr.f32.mxu0 0.0
        %616 = vmatmul.mubr.f32.gmra.mrb[0].mxu0 %v483
        %v617 = vpop.f32.mrb[0].mxu0
        %v618 = vadd.f32 0.0, %v617
        %v619 = vpop.f32.mrb[0].mxu0
        %620 = vmatprep.mubr.f32.mxu0 0.0
        %621 = vmatmul.mubr.f32.gmra.mrb[0].mxu0 %v484
        %v622 = vpop.f32.mrb[0].mxu0
        %v623 = vadd.f32 0.0, %v622
        %v624 = vpop.f32.mrb[0].mxu0
        %625 = vmatprep.mubr.f32.mxu0 0.0
        %626 = vmatmul.mubr.f32.gmra.mrb[0].mxu0 %v485
        %v627 = vpop.f32.mrb[0].mxu0
        %v628 = vadd.f32 0.0, %v627
        %v629 = vpop.f32.mrb[0].mxu0
        %630 = vmatprep.mubr.f32.mxu0 0.0
        %631 = vmatmul.mubr.f32.gmra.mrb[0].mxu0 %v486
        %v632 = vpop.f32.mrb[0].mxu0
        %v633 = vadd.f32 0.0, %v632
        %v634 = vpop.f32.mrb[0].mxu0
        %635 = vmatprep.mubr.f32.mxu0 0.0
        %636 = vmatmul.mubr.f32.gmra.mrb[0].mxu0 %v487
        %v637 = vpop.f32.mrb[0].mxu0
        %v638 = vadd.f32 0.0, %v637
        %v639 = vpop.f32.mrb[0].mxu0
        %640 = vmatprep.mubr.f32.mxu0 0.0
        %641 = vmatmul.mubr.f32.gmra.mrb[0].mxu0 %v488
        %v642 = vpop.f32.mrb[0].mxu0
        %v643 = vadd.f32 0.0, %v642
        %v644 = vpop.f32.mrb[0].mxu0
        %645 = vmatprep.mubr.f32.mxu0 0.0
        %646 = vmatmul.mubr.f32.gmra.mrb[0].mxu0 %v489
        %v647 = vpop.f32.mrb[0].mxu0
        %v648 = vadd.f32 0.0, %v647
        %v649 = vpop.f32.mrb[0].mxu0
        %650 = vmatprep.mubr.f32.mxu0 0.0
        %651 = vmatmul.mubr.f32.gmra.mrb[0].mxu0 %v490
        %v652 = vpop.f32.mrb[0].mxu0
        %v653 = vadd.f32 0.0, %v652
        %v654 = vpop.f32.mrb[0].mxu0
        %655 = vmatprep.mubr.f32.mxu0 0.0
        %656 = vmatmul.mubr.f32.gmra.mrb[0].mxu0 %v491
        %v657 = vpop.f32.mrb[0].mxu0
        %v658 = vadd.f32 0.0, %v657
        %v659 = vpop.f32.mrb[0].mxu0
        %660 = vmatprep.mubr.f32.mxu0 0.0
        %661 = vmatmul.mubr.f32.gmra.mrb[0].mxu0 %v492
        %v662 = vpop.f32.mrb[0].mxu0
        %v663 = vadd.f32 0.0, %v662
        %v664 = vpop.f32.mrb[0].mxu0
        %665 = vmatprep.mubr.f32.mxu0 0.0
        %666 = vmatmul.mubr.f32.gmra.mrb[0].mxu0 %v493
        %v667 = vpop.f32.mrb[0].mxu0
        %v668 = vadd.f32 0.0, %v667
        %v669 = vpop.f32.mrb[0].mxu0
        %670 = vmatprep.mubr.f32.mxu0 0.0
        %671 = vmatmul.mubr.f32.gmra.mrb[0].mxu0 %v494
        %v672 = vpop.f32.mrb[0].mxu0
        %v673 = vadd.f32 0.0, %v672
        %v674 = vpop.f32.mrb[0].mxu0
        %675 = vmatprep.mubr.f32.mxu0 0.0
        %676 = vmatmul.mubr.f32.gmra.mrb[0].mxu0 %v495
        %v677 = vpop.f32.mrb[0].mxu0
        %v678 = vadd.f32 0.0, %v677
        %v679 = vpop.f32.mrb[0].mxu0
        %680 = vmatprep.mubr.f32.mxu0 0.0
        %681 = vmatmul.mubr.f32.gmra.mrb[0].mxu0 %v496
        %v682 = vpop.f32.mrb[0].mxu0
        %v683 = vadd.f32 0.0, %v682
        %v684 = vpop.f32.mrb[0].mxu0
        %685 = vmatprep.mubr.f32.mxu0 0.0
        %686 = vmatmul.mubr.f32.gmra.mrb[0].mxu0 %v497
        %v687 = vpop.f32.mrb[0].mxu0
        %v688 = vadd.f32 0.0, %v687
        %v689 = vpop.f32.mrb[0].mxu0
        %690 = vmatprep.mubr.f32.mxu0 0.0
        %691 = vmatmul.mubr.f32.gmra.mrb[0].mxu0 %v498
        %v692 = vpop.f32.mrb[0].mxu0
        %v693 = vadd.f32 0.0, %v692
        %v694 = vpop.f32.mrb[0].mxu0
        %695 = vmatprep.mubr.f32.mxu0 0.0
        %696 = vmatmul.mubr.f32.gmra.mrb[0].mxu0 %v499
        %v697 = vpop.f32.mrb[0].mxu0
        %v698 = vadd.f32 0.0, %v697
        %v699 = vpop.f32.mrb[0].mxu0
        %700 = vmatprep.mubr.f32.mxu0 0.0
        %701 = vmatmul.mubr.f32.gmra.mrb[0].mxu0 %v500
        %v702 = vpop.f32.mrb[0].mxu0
        %v703 = vadd.f32 0.0, %v702
        %v704 = vpop.f32.mrb[0].mxu0
        %705 = vmatprep.mubr.f32.mxu0 0.0
        %706 = vmatmul.mubr.f32.gmra.mrb[0].mxu0 %v501
        %v707 = vpop.f32.mrb[0].mxu0
        %v708 = vadd.f32 0.0, %v707
        %v709 = vpop.f32.mrb[0].mxu0
        %710 = vmatprep.mubr.f32.mxu0 0.0
        %711 = vmatmul.mubr.f32.gmra.mrb[0].mxu0 %v502
        %v712 = vpop.f32.mrb[0].mxu0
        %v713 = vadd.f32 0.0, %v712
        %v714 = vpop.f32.mrb[0].mxu0
        %715 = vmatprep.mubr.f32.mxu0 0.0
        %716 = vmatmul.mubr.f32.gmra.mrb[0].mxu0 %v503
        %v717 = vpop.f32.mrb[0].mxu0
        %v718 = vadd.f32 0.0, %v717
        %v719 = vpop.f32.mrb[0].mxu0
        %720 = vmatprep.mubr.f32.mxu0 0.0
        %721 = vmatmul.mubr.f32.gmra.mrb[0].mxu0 %v504
        %v722 = vpop.f32.mrb[0].mxu0
        %v723 = vadd.f32 0.0, %v722
        %v724 = vpop.f32.mrb[0].mxu0
        %725 = vmatprep.mubr.f32.mxu0 0.0
        %726 = vmatmul.mubr.f32.gmra.mrb[0].mxu0 %v505
        %v727 = vpop.f32.mrb[0].mxu0
        %v728 = vadd.f32 0.0, %v727
        %v729 = vpop.f32.mrb[0].mxu0
        %730 = vmatprep.mubr.f32.mxu0 0.0
        %731 = vmatmul.mubr.f32.gmra.mrb[0].mxu0 %v506
        %v732 = vpop.f32.mrb[0].mxu0
        %v733 = vadd.f32 0.0, %v732
        %v734 = vpop.f32.mrb[0].mxu0
        %735 = vmatprep.mubr.f32.mxu0 0.0
        %736 = vmatmul.mubr.f32.gmra.mrb[0].mxu0 %v507
        %v737 = vpop.f32.mrb[0].mxu0
        %v738 = vadd.f32 0.0, %v737
        %v739 = vpop.f32.mrb[0].mxu0
        %740 = vmatprep.mubr.f32.mxu0 0.0
        %741 = vmatmul.mubr.f32.gmra.mrb[0].mxu0 %v508
        %v742 = vpop.f32.mrb[0].mxu0
        %v743 = vadd.f32 0.0, %v742
        %v744 = vpop.f32.mrb[0].mxu0
        %745 = vmatprep.mubr.f32.mxu0 0.0
        %746 = vmatmul.mubr.f32.gmra.mrb[0].mxu0 %v509
        %v747 = vpop.f32.mrb[0].mxu0
        %v748 = vadd.f32 0.0, %v747
        %v749 = vpop.f32.mrb[0].mxu0
        %750 = vdwg.mxu0
        %v751 = vadd.f32 %v446, %v593
        %v752 = vadd.f32 %v447, %v598
        %v753 = vadd.f32 %v448, %v603
        %v754 = vadd.f32 %v449, %v608
        %v755 = vadd.f32 %v450, %v613
        %v756 = vadd.f32 %v451, %v618
        %v757 = vadd.f32 %v452, %v623
        %v758 = vadd.f32 %v453, %v628
        %v759 = vadd.f32 %v454, %v633
        %v760 = vadd.f32 %v455, %v638
        %v761 = vadd.f32 %v456, %v643
        %v762 = vadd.f32 %v457, %v648
        %v763 = vadd.f32 %v458, %v653
        %v764 = vadd.f32 %v459, %v658
        %v765 = vadd.f32 %v460, %v663
        %v766 = vadd.f32 %v461, %v668
        %v767 = vadd.f32 %v462, %v673
        %v768 = vadd.f32 %v463, %v678
        %v769 = vadd.f32 %v464, %v683
        %v770 = vadd.f32 %v465, %v688
        %v771 = vadd.f32 %v466, %v693
        %v772 = vadd.f32 %v467, %v698
        %v773 = vadd.f32 %v468, %v703
        %v774 = vadd.f32 %v469, %v708
        %v775 = vadd.f32 %v470, %v713
        %v776 = vadd.f32 %v471, %v718
        %v777 = vadd.f32 %v472, %v723
        %v778 = vadd.f32 %v473, %v728
        %v779 = vadd.f32 %v474, %v733
        %v780 = vadd.f32 %v475, %v738
        %v781 = vadd.f32 %v476, %v743
        %v782 = vadd.f32 %v477, %v748
        %783 = vst [vmem:[#allocation2] sm:$0xff] %v751
        %784 = vst [vmem:[#allocation2 + $0x8] sm:$0xff] %v752
        %785 = vst [vmem:[#allocation2 + $0x10] sm:$0xff] %v753
        %786 = vst [vmem:[#allocation2 + $0x18] sm:$0xff] %v754
        %787 = vst [vmem:[#allocation2 + $0x20] sm:$0xff] %v755
        %788 = vst [vmem:[#allocation2 + $0x28] sm:$0xff] %v756
        %789 = vst [vmem:[#allocation2 + $0x30] sm:$0xff] %v757
        %790 = vst [vmem:[#allocation2 + $0x38] sm:$0xff] %v758
        %791 = vst [vmem:[#allocation2 + $0x40] sm:$0xff] %v759
        %792 = vst [vmem:[#allocation2 + $0x48] sm:$0xff] %v760
        %793 = vst [vmem:[#allocation2 + $0x50] sm:$0xff] %v761
        %794 = vst [vmem:[#allocation2 + $0x58] sm:$0xff] %v762
        %795 = vst [vmem:[#allocation2 + $0x60] sm:$0xff] %v763
        %796 = vst [vmem:[#allocation2 + $0x68] sm:$0xff] %v764
        %797 = vst [vmem:[#allocation2 + $0x70] sm:$0xff] %v765
        %798 = vst [vmem:[#allocation2 + $0x78] sm:$0xff] %v766
        %799 = vst [vmem:[#allocation2 + $0x80] sm:$0xff] %v767
        %800 = vst [vmem:[#allocation2 + $0x88] sm:$0xff] %v768
        %801 = vst [vmem:[#allocation2 + $0x90] sm:$0xff] %v769
        %802 = vst [vmem:[#allocation2 + $0x98] sm:$0xff] %v770
        %803 = vst [vmem:[#allocation2 + $0xa0] sm:$0xff] %v771
        %804 = vst [vmem:[#allocation2 + $0xa8] sm:$0xff] %v772
        %805 = vst [vmem:[#allocation2 + $0xb0] sm:$0xff] %v773
        %806 = vst [vmem:[#allocation2 + $0xb8] sm:$0xff] %v774
        %807 = vst [vmem:[#allocation2 + $0xc0] sm:$0xff] %v775
        %808 = vst [vmem:[#allocation2 + $0xc8] sm:$0xff] %v776
        %809 = vst [vmem:[#allocation2 + $0xd0] sm:$0xff] %v777
        %810 = vst [vmem:[#allocation2 + $0xd8] sm:$0xff] %v778
        %811 = vst [vmem:[#allocation2 + $0xe0] sm:$0xff] %v779
        %812 = vst [vmem:[#allocation2 + $0xe8] sm:$0xff] %v780
        %813 = vst [vmem:[#allocation2 + $0xf0] sm:$0xff] %v781
        %814 = vst [vmem:[#allocation2 + $0xf8] sm:$0xff] %v782
        %p815 = scmp.eq.s32.totalorder %s21, 1
        // Predicated region
        $region75: #{styled_conv_block_forward.9} parent=65 // pred_check
          %p816 = pneg %p815
        $region76: #{styled_conv_block_forward.9} parent=65 // pred_check_branch
          %818 = sbr.rel (%p816) target = $region78
        $region77: #{styled_conv_block_forward.9} parent=65 // pred_region
          %v819 = vld [vmem:[#allocation2] sm:$0xff]
          %v820 = vld [vmem:[#allocation2 + $0x8] sm:$0xff]
          %v821 = vld [vmem:[#allocation2 + $0x10] sm:$0xff]
          %v822 = vld [vmem:[#allocation2 + $0x18] sm:$0xff]
          %v823 = vld [vmem:[#allocation2 + $0x20] sm:$0xff]
          %v824 = vld [vmem:[#allocation2 + $0x28] sm:$0xff]
          %v825 = vld [vmem:[#allocation2 + $0x30] sm:$0xff]
          %v826 = vld [vmem:[#allocation2 + $0x38] sm:$0xff]
          %v827 = vld [vmem:[#allocation2 + $0x40] sm:$0xff]
          %v828 = vld [vmem:[#allocation2 + $0x48] sm:$0xff]
          %v829 = vld [vmem:[#allocation2 + $0x50] sm:$0xff]
          %v830 = vld [vmem:[#allocation2 + $0x58] sm:$0xff]
          %v831 = vld [vmem:[#allocation2 + $0x60] sm:$0xff]
          %v832 = vld [vmem:[#allocation2 + $0x68] sm:$0xff]
          %v833 = vld [vmem:[#allocation2 + $0x70] sm:$0xff]
          %v834 = vld [vmem:[#allocation2 + $0x78] sm:$0xff]
          %v835 = vld [vmem:[#allocation2 + $0x80] sm:$0xff]
          %v836 = vld [vmem:[#allocation2 + $0x88] sm:$0xff]
          %v837 = vld [vmem:[#allocation2 + $0x90] sm:$0xff]
          %v838 = vld [vmem:[#allocation2 + $0x98] sm:$0xff]
          %v839 = vld [vmem:[#allocation2 + $0xa0] sm:$0xff]
          %v840 = vld [vmem:[#allocation2 + $0xa8] sm:$0xff]
          %v841 = vld [vmem:[#allocation2 + $0xb0] sm:$0xff]
          %v842 = vld [vmem:[#allocation2 + $0xb8] sm:$0xff]
          %v843 = vld [vmem:[#allocation2 + $0xc0] sm:$0xff]
          %v844 = vld [vmem:[#allocation2 + $0xc8] sm:$0xff]
          %v845 = vld [vmem:[#allocation2 + $0xd0] sm:$0xff]
          %v846 = vld [vmem:[#allocation2 + $0xd8] sm:$0xff]
          %v847 = vld [vmem:[#allocation2 + $0xe0] sm:$0xff]
          %v848 = vld [vmem:[#allocation2 + $0xe8] sm:$0xff]
          %v849 = vld [vmem:[#allocation2 + $0xf0] sm:$0xff]
          %v850 = vld [vmem:[#allocation2 + $0xf8] sm:$0xff]
          %v851 = vld [vmem:[%s400] sm:$0x1]
          %v853 = vlaneseq
          %v854 = vshrl.u32 %v853, 7
          %v855 = vsub.s32 0, %v854
          %v856 = vrot.slane %v851, %v855
          %v858 = vadd.f32 %v819, %v856
          %v859 = vadd.f32 %v820, %v856
          %v860 = vadd.f32 %v821, %v856
          %v861 = vadd.f32 %v822, %v856
          %v862 = vadd.f32 %v823, %v856
          %v863 = vadd.f32 %v824, %v856
          %v864 = vadd.f32 %v825, %v856
          %v865 = vadd.f32 %v826, %v856
          %v866 = vadd.f32 %v827, %v856
          %v867 = vadd.f32 %v828, %v856
          %v868 = vadd.f32 %v829, %v856
          %v869 = vadd.f32 %v830, %v856
          %v870 = vadd.f32 %v831, %v856
          %v871 = vadd.f32 %v832, %v856
          %v872 = vadd.f32 %v833, %v856
          %v873 = vadd.f32 %v834, %v856
          %v874 = vadd.f32 %v835, %v856
          %v875 = vadd.f32 %v836, %v856
          %v876 = vadd.f32 %v837, %v856
          %v877 = vadd.f32 %v838, %v856
          %v878 = vadd.f32 %v839, %v856
          %v879 = vadd.f32 %v840, %v856
          %v880 = vadd.f32 %v841, %v856
          %v881 = vadd.f32 %v842, %v856
          %v882 = vadd.f32 %v843, %v856
          %v883 = vadd.f32 %v844, %v856
          %v884 = vadd.f32 %v845, %v856
          %v885 = vadd.f32 %v846, %v856
          %v886 = vadd.f32 %v847, %v856
          %v887 = vadd.f32 %v848, %v856
          %v888 = vadd.f32 %v849, %v856
          %v889 = vadd.f32 %v850, %v856
          %890 = vst [vmem:[%s408] sm:$0xff] %v858
          %891 = vst [vmem:[%s408 + $0x8] sm:$0xff] %v859
          %892 = vst [vmem:[%s408 + $0x10] sm:$0xff] %v860
          %893 = vst [vmem:[%s408 + $0x18] sm:$0xff] %v861
          %894 = vst [vmem:[%s408 + $0x20] sm:$0xff] %v862
          %895 = vst [vmem:[%s408 + $0x28] sm:$0xff] %v863
          %896 = vst [vmem:[%s408 + $0x30] sm:$0xff] %v864
          %897 = vst [vmem:[%s408 + $0x38] sm:$0xff] %v865
          %898 = vst [vmem:[%s408 + $0x40] sm:$0xff] %v866
          %899 = vst [vmem:[%s408 + $0x48] sm:$0xff] %v867
          %900 = vst [vmem:[%s408 + $0x50] sm:$0xff] %v868
          %901 = vst [vmem:[%s408 + $0x58] sm:$0xff] %v869
          %902 = vst [vmem:[%s408 + $0x60] sm:$0xff] %v870
          %903 = vst [vmem:[%s408 + $0x68] sm:$0xff] %v871
          %904 = vst [vmem:[%s408 + $0x70] sm:$0xff] %v872
          %905 = vst [vmem:[%s408 + $0x78] sm:$0xff] %v873
          %906 = vst [vmem:[%s408 + $0x80] sm:$0xff] %v874
          %907 = vst [vmem:[%s408 + $0x88] sm:$0xff] %v875
          %908 = vst [vmem:[%s408 + $0x90] sm:$0xff] %v876
          %909 = vst [vmem:[%s408 + $0x98] sm:$0xff] %v877
          %910 = vst [vmem:[%s408 + $0xa0] sm:$0xff] %v878
          %911 = vst [vmem:[%s408 + $0xa8] sm:$0xff] %v879
          %912 = vst [vmem:[%s408 + $0xb0] sm:$0xff] %v880
          %913 = vst [vmem:[%s408 + $0xb8] sm:$0xff] %v881
          %914 = vst [vmem:[%s408 + $0xc0] sm:$0xff] %v882
          %915 = vst [vmem:[%s408 + $0xc8] sm:$0xff] %v883
          %916 = vst [vmem:[%s408 + $0xd0] sm:$0xff] %v884
          %917 = vst [vmem:[%s408 + $0xd8] sm:$0xff] %v885
          %918 = vst [vmem:[%s408 + $0xe0] sm:$0xff] %v886
          %919 = vst [vmem:[%s408 + $0xe8] sm:$0xff] %v887
          %920 = vst [vmem:[%s408 + $0xf0] sm:$0xff] %v888
          %921 = vst [vmem:[%s408 + $0xf8] sm:$0xff] %v889
        $region78: #{styled_conv_block_forward.9} parent=65 // pred_fallthru
          _
        %s922 = smul.u32 32, %s19
        %p923 = scmp.lt.s32.totalorder %s922, 127
        %s924 = scalar_select %p923, %s922, 127
        %p925 = scmp.lt.s32.totalorder %s20, 0
        %s926 = scalar_select %p925, %s20, 0
        %s927 = sadd.s32 %s926, %s924
        %s928 = smul.addr %s927, 8
        %s929 = scalar_lea.vmem %s3, %s928
        // Predicated region
        $region79: #{styled_conv_block_forward.9} parent=65 // pred_check
          %p930 = pneg %p135
        $region80: #{styled_conv_block_forward.9} parent=65 // pred_check_branch
          %932 = sbr.rel (%p930) target = $region82
        $region81: #{styled_conv_block_forward.9} parent=65 // pred_region
          %s933 = smul.u32 32, %s19
        $region82: #{styled_conv_block_forward.9} parent=65 // pred_fallthru
          _
      $region66: #{styled_conv_block_forward.9} parent=5 // pred_fallthru
        _
      %p934 = scmp.le.s32.totalorder 2, %s9
      // Predicated region
      $region83: #{styled_conv_block_forward.9} parent=5 // pred_check
        %p935 = pneg %p934
      $region84: #{styled_conv_block_forward.9} parent=5 // pred_check_branch
        %937 = sbr.rel (%p935) target = $region86
      $region85: #{styled_conv_block_forward.9} parent=5 // pred_region
        %s938 = ssub.s32 %s9, 2
        // Predicated region
        $region87: #{styled_conv_block_forward.9} parent=85 // pred_check
          %p939 = pneg %p141
        $region88: #{styled_conv_block_forward.9} parent=85 // pred_check_branch
          %941 = sbr.rel (%p939) target = $region90
        $region89: #{styled_conv_block_forward.9} parent=85 // pred_region
          %s942 = smul.u32 32, %s22
          %p943 = scmp.lt.s32.totalorder %s942, 127
          %s944 = scalar_select %p943, %s942, 127
          %p945 = scmp.lt.s32.totalorder %s23, 0
          %s946 = scalar_select %p945, %s23, 0
          %s947 = sadd.s32 %s946, %s944
          %s948 = smul.addr %s947, 8
          %s949 = scalar_lea.vmem %s3, %s948
        $region90: #{styled_conv_block_forward.9} parent=85 // pred_fallthru
          _
      $region86: #{styled_conv_block_forward.9} parent=5 // pred_fallthru
        _
    $region6: #{styled_conv_block_forward.9} parent=1 // loop_footer
      %s13 = sadd.s32 1, %s9
    $region7: #{styled_conv_block_forward.9} parent=1 // loop_footer_branch
      %8 = sbr.rel target = $region3
    $region8: #{styled_conv_block_forward.9} parent=1 // loop_exit
      _

</llo_original>
